<compile_context>
chip_gen: v7x
topology: tpu7x:2x2x1
jax: 0.10.0
libtpu: 0.0.40
codegen_flags: <defaults>
</compile_context>

<pallas_src>
import jax
import jax.numpy as jnp
from jax import lax
from jax.experimental import pallas as pl
from jax.experimental.pallas import tpu as pltpu


# Row indices into the packed (N_VEC_F, F) per-feature vector bundle.
(F1_LNG, F1_LNB, F1_B2,
 A_LNG, A_LNB, BQ, BK, BV, BO,
 C_LNG, C_LNB, PW1_BA, PW1_BB, DW_B, BN_S, BN_B, PW2_B,
 F2_LNG, F2_LNB, F2_B2,
 FIN_G, FIN_B) = range(22)
N_VEC_F = 22

# Row indices into the packed (N_VEC_H, H) bundle.
F1_B1, F2_B1 = range(2)
N_VEC_H = 2


def make_conformer_kernel(T, F, n_heads, K):
    Dh = F // n_heads
    P = (K - 1) // 2

    def layer_norm(x, g, b, eps=1e-5):
        mu = jnp.mean(x, axis=-1, keepdims=True)
        var = jnp.mean((x - mu) ** 2, axis=-1, keepdims=True)
        return (x - mu) * lax.rsqrt(var + eps) * g + b

    def silu(x):
        return x * jax.nn.sigmoid(x)

    def bf16(x):
        return x.astype(jnp.bfloat16)

    def kernel(x_ref, vecf_ref, vech_ref,
               f1_w1, f1_w2,
               wq, wk, wv, wo,
               pw1_wa, pw1_wb, dw_w, pw2_w,
               f2_w1, f2_w2,
               o_ref):
        vf = vecf_ref[...]            # (N_VEC_F, F) f32 packed small vectors
        vh = vech_ref[...]            # (N_VEC_H, H) f32 packed hidden biases

        def ffn(x, lng, lnb, w1, b1, w2, b2):
            h = layer_norm(x, lng, lnb)
            h = jnp.dot(bf16(h), w1[...], preferred_element_type=jnp.float32) + b1
            h = silu(h)
            return jnp.dot(bf16(h), w2[...], preferred_element_type=jnp.float32) + b2

        def attention(x):
            h = layer_norm(x, vf[A_LNG], vf[A_LNB])
            hb = bf16(h)
            # attn scale 1/sqrt(Dh) is folded into wq / bq at prep time.
            q = jnp.dot(hb, wq[...], preferred_element_type=jnp.float32) + vf[BQ]
            k = jnp.dot(hb, wk[...], preferred_element_type=jnp.float32) + vf[BK]
            v = jnp.dot(hb, wv[...], preferred_element_type=jnp.float32) + vf[BV]
            heads = []
            for hh in range(n_heads):
                sl = slice(hh * Dh, (hh + 1) * Dh)
                qs, ks, vs = bf16(q[:, sl]), bf16(k[:, sl]), bf16(v[:, sl])
                # q @ k^T without an explicit transpose: contract head dims.
                s = lax.dot_general(qs, ks, (((1,), (1,)), ((), ())),
                                    preferred_element_type=jnp.float32)
                s = s - jnp.max(s, axis=-1, keepdims=True)
                p = jnp.exp(s)
                p = p * pl.reciprocal(jnp.sum(p, axis=-1, keepdims=True), approx=True)
                heads.append(bf16(jnp.dot(bf16(p), vs,
                                          preferred_element_type=jnp.float32)))
            # Single full-depth (T,F)@(F,F) out-projection (MXU runs at full
            # contraction depth instead of n_heads Dh-deep matmuls).
            attn = jnp.concatenate(heads, axis=-1)                       # (T, F) bf16
            return jnp.dot(attn, wo[...], preferred_element_type=jnp.float32) + vf[BO]

        def conv(x):
            h = layer_norm(x, vf[C_LNG], vf[C_LNB])
            hb = bf16(h)
            a = jnp.dot(hb, pw1_wa[...], preferred_element_type=jnp.float32) + vf[PW1_BA]
            g = jnp.dot(hb, pw1_wb[...], preferred_element_type=jnp.float32) + vf[PW1_BB]
            h = a * jax.nn.sigmoid(g)                                    # GLU, (T, F) f32

            # Depthwise conv1d along time (SAME zero padding, groups=F):
            # K static sublane rolls on the XLU + edge masks + VPU fmas.
            # O(K*T*F) work; no (T,T) shift matrices, no padded copies.
            t_idx = lax.broadcasted_iota(jnp.int32, (T, 1), 0)
            dww = dw_w[...]                                              # (K, F) f32
            y = jnp.zeros((T, F), jnp.float32)
            for j in range(K):
                d = j - P                                                # tap offset
                tap = h if d == 0 else pltpu.roll(h, shift=(-d) % T, axis=0)
                if d > 0:                                                # zero the wrapped tail
                    tap = jnp.where(t_idx < T - d, tap, 0.0)
                elif d < 0:                                              # zero the wrapped head
                    tap = jnp.where(t_idx >= -d, tap, 0.0)
                y = y + tap * dww[j]
            y = y + vf[DW_B]
            # BatchNorm1d (eval): running stats folded into scale/bias at prep.
            y = y * vf[BN_S] + vf[BN_B]
            y = silu(y)
            return jnp.dot(bf16(y), pw2_w[...], preferred_element_type=jnp.float32) + vf[PW2_B]

        # Single layout flip fused into the kernel: (F, T) HBM tile -> (T, F).
        x = x_ref[...].astype(jnp.float32).T                             # (T, F)
        # Residual scalings follow the reference forward literally:
        #   x = 0.5*x + ffn1(x); x += attn(x); x += conv(x); x = 0.5*x + ffn2(x)
        x = x * 0.5 + ffn(x, vf[F1_LNG], vf[F1_LNB], f1_w1, vh[F1_B1], f1_w2, vf[F1_B2])
        x = x + attention(x)
        x = x + conv(x)
        x = x * 0.5 + ffn(x, vf[F2_LNG], vf[F2_LNB], f2_w1, vh[F2_B1], f2_w2, vf[F2_B2])
        x = layer_norm(x, vf[FIN_G], vf[FIN_B])
        # Lane-dense store: (T, F) with features on lanes, no output transpose.
        o_ref[...] = x

    return kernel


def _prep_params(params, F, n_heads):
    """Fold scales, split GLU projection, pack tiny vectors, cast matmul weights to bf16."""
    (f1_lng, f1_lnb, f1_w1, f1_b1, f1_w2, f1_b2,
     a_lng, a_lnb, wq, bq, wk, bk, wv, bv, wo, bo,
     c_lng, c_lnb, pw1_w, pw1_b, dw_w, dw_b,
     bn_g, bn_b, bn_mean, bn_var, pw2_w, pw2_b,
     f2_lng, f2_lnb, f2_w1, f2_b1, f2_w2, f2_b2,
     fin_g, fin_b) = params

    Dh = F // n_heads
    attn_scale = 1.0 / (Dh ** 0.5)

    bf = lambda w: jnp.asarray(w, jnp.bfloat16)
    row = lambda v: jnp.asarray(v, jnp.float32).reshape(-1)

    # Fold attention scale into wq / bq (zero runtime cost).
    wq_s = jnp.asarray(wq, jnp.float32) * attn_scale
    bq_s = jnp.asarray(bq, jnp.float32) * attn_scale

    # Fold BatchNorm1d (eval) running stats into an effective scale / bias.
    bn_eps = 1e-5
    bn_s = jnp.asarray(bn_g, jnp.float32) / jnp.sqrt(jnp.asarray(bn_var, jnp.float32) + bn_eps)
    bn_bias = jnp.asarray(bn_b, jnp.float32) - jnp.asarray(bn_mean, jnp.float32) * bn_s

    # Split the F->2F GLU pointwise projection so the kernel never lane-slices
    # a (T, 2F) tile at a non-128 offset.
    pw1_wa, pw1_wb = pw1_w[:, :F], pw1_w[:, F:]
    pw1_ba, pw1_bb = pw1_b[..., :F], pw1_b[..., F:]

    # Pack all per-feature / per-hidden vectors into two stacked f32 arrays.
    vec_f = jnp.stack([
        row(f1_lng), row(f1_lnb), row(f1_b2),
        row(a_lng), row(a_lnb), row(bq_s), row(bk), row(bv), row(bo),
        row(c_lng), row(c_lnb), row(pw1_ba), row(pw1_bb), row(dw_b),
        row(bn_s), row(bn_bias), row(pw2_b),
        row(f2_lng), row(f2_lnb), row(f2_b2),
        row(fin_g), row(fin_b),
    ])                                                    # (N_VEC_F, F)
    vec_h = jnp.stack([row(f1_b1), row(f2_b1)])           # (N_VEC_H, H)

    return [
        vec_f, vec_h,
        bf(f1_w1), bf(f1_w2),
        bf(wq_s), bf(wk), bf(wv), bf(wo),
        bf(pw1_wa), bf(pw1_wb),
        jnp.asarray(dw_w, jnp.float32),                   # depthwise taps stay f32 (VPU)
        bf(pw2_w),
        bf(f2_w1), bf(f2_w2),
    ]


def conformer_relative_block(spectrogram, params, *, n_heads, kernel_size):
    """spectrogram: [B, n_features, seq_len] (matches the PyTorch docstring)."""
    B, Fdim, T = spectrogram.shape
    kernel_args = _prep_params(params, Fdim, n_heads)
    kernel = make_conformer_kernel(T, Fdim, n_heads, kernel_size)

    in_specs = [pl.BlockSpec((None, Fdim, T), lambda b: (b, 0, 0))]
    for p in kernel_args:
        in_specs.append(pl.BlockSpec(p.shape, lambda b, nd=p.ndim: (0,) * nd))

    out = pl.pallas_call(
        kernel,
        # Lane-dense output layout [B, T, F] (features on lanes).
        out_shape=jax.ShapeDtypeStruct((B, T, Fdim), jnp.float32),
        grid=(B,),
        in_specs=in_specs,
        out_specs=pl.BlockSpec((None, T, Fdim), lambda b: (b, 0, 0)),
        compiler_params=pltpu.CompilerParams(
            dimension_semantics=("parallel",),        # batch -> megacore on v7x
            vmem_limit_bytes=48 * 1024 * 1024,        # explicit, with headroom on all gens
        ),
    )(spectrogram, *kernel_args)                      # input dtype passed through (bf16-friendly)

    # Restore the module's [B, F, T] layout outside the kernel; skip this
    # transpose entirely if downstream consumers accept [B, T, F].
    return jnp.transpose(out, (0, 2, 1))


def init_params(key, F, H, n_heads, K):
    """Deterministic synthetic weights (shapes implied by the module's __init__)."""
    ks = jax.random.split(key, 12)

    def dense(k, fin, fout, scale=0.05):
        return jax.random.normal(k, (fin, fout), jnp.float32) * scale

    ones = lambda n: jnp.ones((1, n), jnp.float32)
    zeros = lambda n: jnp.zeros((1, n), jnp.float32)

    return [
        # ffn1: LayerNorm(F), Linear(F,H), Linear(H,F)
        ones(F), zeros(F), dense(ks[0], F, H), zeros(H), dense(ks[1], H, F), zeros(F),
        # attention: LayerNorm(F), Wq/Wk/Wv/Wo (F,F) + biases
        ones(F), zeros(F),
        dense(ks[2], F, F), zeros(F),
        dense(ks[3], F, F), zeros(F),
        dense(ks[4], F, F), zeros(F),
        dense(ks[5], F, F), zeros(F),
        # conv: LayerNorm(F), pointwise(F,2F), depthwise (K,F),
        #       BatchNorm(F) {gamma, beta, running_mean, running_var}, pointwise(F,F)
        ones(F), zeros(F),
        dense(ks[6], F, 2 * F), zeros(2 * F),
        jax.random.normal(ks[7], (K, F), jnp.float32) * 0.1, zeros(F),
        ones(F), zeros(F), zeros(F), ones(F),
        dense(ks[8], F, F), zeros(F),
        # ffn2
        ones(F), zeros(F), dense(ks[9], F, H), zeros(H), dense(ks[10], H, F), zeros(F),
        # final LayerNorm(F)
        ones(F), zeros(F),
    ]


if __name__ == "__main__":
    B, F, T = 2, 32, 16          # batch, n_features, seq_len
    H, n_heads, K = 64, 4, 7     # ffn hidden, attention heads, depthwise kernel

    key = jax.random.PRNGKey(0)
    kx, kp = jax.random.split(key)
    spectrogram = jax.random.normal(kx, (B, F, T), jnp.float32)
    params = init_params(kp, F, H, n_heads, K)

    out = conformer_relative_block(spectrogram, params, n_heads=n_heads, kernel_size=K)
    out = jax.block_until_ready(out)

    assert out.shape == (B, F, T), out.shape
    assert bool(jnp.all(jnp.isfinite(out)))
    print("KERNEL_OK")
</pallas_src>

<mosaic_0001>
module attributes {stable_mosaic.version = 11 : i64} {
  func.func @kernel(%arg0: i32, %arg1: memref<1x32x16xf32, #tpu.memory_space<vmem>>, %arg2: memref<22x32xf32, #tpu.memory_space<vmem>>, %arg3: memref<2x64xf32, #tpu.memory_space<vmem>>, %arg4: memref<32x64xbf16, #tpu.memory_space<vmem>>, %arg5: memref<64x32xbf16, #tpu.memory_space<vmem>>, %arg6: memref<32x32xbf16, #tpu.memory_space<vmem>>, %arg7: memref<32x32xbf16, #tpu.memory_space<vmem>>, %arg8: memref<32x32xbf16, #tpu.memory_space<vmem>>, %arg9: memref<32x32xbf16, #tpu.memory_space<vmem>>, %arg10: memref<32x32xbf16, #tpu.memory_space<vmem>>, %arg11: memref<32x32xbf16, #tpu.memory_space<vmem>>, %arg12: memref<7x32xf32, #tpu.memory_space<vmem>>, %arg13: memref<32x32xbf16, #tpu.memory_space<vmem>>, %arg14: memref<32x64xbf16, #tpu.memory_space<vmem>>, %arg15: memref<64x32xbf16, #tpu.memory_space<vmem>>, %arg16: memref<1x16x32xf32, #tpu.memory_space<vmem>>) attributes {dimension_semantics = [#tpu.dimension_semantics<parallel>], iteration_bounds = array<i64: 2>, scalar_prefetch = 0 : i64, scratch_operands = 0 : i64, tpu.core_type = #tpu.core_type<tc>, window_params = [{transform_indices = @transform_0, window_bounds = array<i64: 1, 32, 16>}, {pipeline_mode = #tpu.pipeline_mode<synchronous>, transform_indices = @transform_1, window_bounds = array<i64: 22, 32>}, {pipeline_mode = #tpu.pipeline_mode<synchronous>, transform_indices = @transform_2, window_bounds = array<i64: 2, 64>}, {pipeline_mode = #tpu.pipeline_mode<synchronous>, transform_indices = @transform_3, window_bounds = array<i64: 32, 64>}, {pipeline_mode = #tpu.pipeline_mode<synchronous>, transform_indices = @transform_4, window_bounds = array<i64: 64, 32>}, {pipeline_mode = #tpu.pipeline_mode<synchronous>, transform_indices = @transform_5, window_bounds = array<i64: 32, 32>}, {pipeline_mode = #tpu.pipeline_mode<synchronous>, transform_indices = @transform_6, window_bounds = array<i64: 32, 32>}, {pipeline_mode = #tpu.pipeline_mode<synchronous>, transform_indices = @transform_7, window_bounds = array<i64: 32, 32>}, {pipeline_mode = #tpu.pipeline_mode<synchronous>, transform_indices = @transform_8, window_bounds = array<i64: 32, 32>}, {pipeline_mode = #tpu.pipeline_mode<synchronous>, transform_indices = @transform_9, window_bounds = array<i64: 32, 32>}, {pipeline_mode = #tpu.pipeline_mode<synchronous>, transform_indices = @transform_10, window_bounds = array<i64: 32, 32>}, {pipeline_mode = #tpu.pipeline_mode<synchronous>, transform_indices = @transform_11, window_bounds = array<i64: 7, 32>}, {pipeline_mode = #tpu.pipeline_mode<synchronous>, transform_indices = @transform_12, window_bounds = array<i64: 32, 32>}, {pipeline_mode = #tpu.pipeline_mode<synchronous>, transform_indices = @transform_13, window_bounds = array<i64: 32, 64>}, {pipeline_mode = #tpu.pipeline_mode<synchronous>, transform_indices = @transform_14, window_bounds = array<i64: 64, 32>}, {transform_indices = @transform_15, window_bounds = array<i64: 1, 16, 32>}]} {
    %c0 = arith.constant 0 : index
    %c0_0 = arith.constant 0 : index
    %0 = vector.load %arg2[%c0, %c0_0] : memref<22x32xf32, #tpu.memory_space<vmem>>, vector<22x32xf32>
    %c0_1 = arith.constant 0 : index
    %c0_2 = arith.constant 0 : index
    %1 = vector.load %arg3[%c0_1, %c0_2] : memref<2x64xf32, #tpu.memory_space<vmem>>, vector<2x64xf32>
    %c0_3 = arith.constant 0 : index
    %c0_4 = arith.constant 0 : index
    %c0_5 = arith.constant 0 : index
    %2 = vector.load %arg1[%c0_3, %c0_4, %c0_5] : memref<1x32x16xf32, #tpu.memory_space<vmem>>, vector<1x32x16xf32>
    %3 = vector.shape_cast %2 : vector<1x32x16xf32> to vector<32x16xf32>
    %4 = tpu.transpose %3, [1, 0] : vector<32x16xf32> -> vector<16x32xf32>
    %cst = arith.constant 5.000000e-01 : f32
    %5 = vector.broadcast %cst : f32 to vector<16x32xf32>
    %6 = arith.mulf %4, %5 : vector<16x32xf32>
    %7 = vector.extract_strided_slice %0 {offsets = [0, 0], sizes = [1, 32], strides = [1, 1]} : vector<22x32xf32> to vector<1x32xf32>
    %8 = vector.shape_cast %7 : vector<1x32xf32> to vector<32xf32>
    %9 = vector.extract_strided_slice %0 {offsets = [1, 0], sizes = [1, 32], strides = [1, 1]} : vector<22x32xf32> to vector<1x32xf32>
    %10 = vector.shape_cast %9 : vector<1x32xf32> to vector<32xf32>
    %11 = vector.extract_strided_slice %1 {offsets = [0, 0], sizes = [1, 64], strides = [1, 1]} : vector<2x64xf32> to vector<1x64xf32>
    %12 = vector.shape_cast %11 : vector<1x64xf32> to vector<64xf32>
    %13 = vector.extract_strided_slice %0 {offsets = [2, 0], sizes = [1, 32], strides = [1, 1]} : vector<22x32xf32> to vector<1x32xf32>
    %14 = vector.shape_cast %13 : vector<1x32xf32> to vector<32xf32>
    %cst_6 = arith.constant dense<0.000000e+00> : vector<16xf32>
    %15 = vector.multi_reduction <add>, %4, %cst_6 [1] : vector<16x32xf32> to vector<16xf32>
    %16 = vector.shape_cast %15 : vector<16xf32> to vector<16x1xf32>
    %cst_7 = arith.constant 3.200000e+01 : f32
    %17 = vector.broadcast %cst_7 : f32 to vector<16x1xf32>
    %18 = arith.divf %16, %17 : vector<16x1xf32>
    %19 = vector.broadcast %18 : vector<16x1xf32> to vector<16x32xf32>
    %20 = arith.subf %4, %19 : vector<16x32xf32>
    %21 = arith.mulf %20, %20 : vector<16x32xf32>
    %cst_8 = arith.constant dense<0.000000e+00> : vector<16xf32>
    %22 = vector.multi_reduction <add>, %21, %cst_8 [1] : vector<16x32xf32> to vector<16xf32>
    %23 = vector.shape_cast %22 : vector<16xf32> to vector<16x1xf32>
    %cst_9 = arith.constant 3.200000e+01 : f32
    %24 = vector.broadcast %cst_9 : f32 to vector<16x1xf32>
    %25 = arith.divf %23, %24 : vector<16x1xf32>
    %26 = vector.broadcast %18 : vector<16x1xf32> to vector<16x32xf32>
    %27 = arith.subf %4, %26 : vector<16x32xf32>
    %cst_10 = arith.constant 9.99999974E-6 : f32
    %28 = vector.broadcast %cst_10 : f32 to vector<16x1xf32>
    %29 = arith.addf %25, %28 : vector<16x1xf32>
    %30 = math.rsqrt %29 : vector<16x1xf32>
    %31 = vector.broadcast %30 : vector<16x1xf32> to vector<16x32xf32>
    %32 = arith.mulf %27, %31 : vector<16x32xf32>
    %33 = vector.shape_cast %8 : vector<32xf32> to vector<1x32xf32>
    %34 = vector.broadcast %33 : vector<1x32xf32> to vector<16x32xf32>
    %35 = arith.mulf %32, %34 : vector<16x32xf32>
    %36 = vector.shape_cast %10 : vector<32xf32> to vector<1x32xf32>
    %37 = vector.broadcast %36 : vector<1x32xf32> to vector<16x32xf32>
    %38 = arith.addf %35, %37 : vector<16x32xf32>
    %39 = arith.truncf %38 : vector<16x32xf32> to vector<16x32xbf16>
    %c0_11 = arith.constant 0 : index
    %c0_12 = arith.constant 0 : index
    %40 = vector.load %arg4[%c0_11, %c0_12] : memref<32x64xbf16, #tpu.memory_space<vmem>>, vector<32x64xbf16>
    %cst_13 = arith.constant dense<0.000000e+00> : vector<16x64xf32>
    %41 = tpu.matmul %39, %40, %cst_13 {dimension_numbers = #tpu.dot_dimension_numbers<[1], [0], [0], [1], [0, 0, 1, 1], [], []>} : vector<16x32xbf16>, vector<32x64xbf16>, vector<16x64xf32> -> vector<16x64xf32>
    %42 = vector.shape_cast %12 : vector<64xf32> to vector<1x64xf32>
    %43 = vector.broadcast %42 : vector<1x64xf32> to vector<16x64xf32>
    %44 = arith.addf %41, %43 : vector<16x64xf32>
    %45 = arith.negf %44 : vector<16x64xf32>
    %46 = math.exp %45 : vector<16x64xf32>
    %cst_14 = arith.constant 1.000000e+00 : f32
    %47 = vector.broadcast %cst_14 : f32 to vector<16x64xf32>
    %48 = arith.addf %47, %46 : vector<16x64xf32>
    %49 = arith.divf %47, %48 : vector<16x64xf32>
    %50 = arith.mulf %44, %49 : vector<16x64xf32>
    %51 = arith.truncf %50 : vector<16x64xf32> to vector<16x64xbf16>
    %c0_15 = arith.constant 0 : index
    %c0_16 = arith.constant 0 : index
    %52 = vector.load %arg5[%c0_15, %c0_16] : memref<64x32xbf16, #tpu.memory_space<vmem>>, vector<64x32xbf16>
    %cst_17 = arith.constant dense<0.000000e+00> : vector<16x32xf32>
    %53 = tpu.matmul %51, %52, %cst_17 {dimension_numbers = #tpu.dot_dimension_numbers<[1], [0], [0], [1], [0, 0, 1, 1], [], []>} : vector<16x64xbf16>, vector<64x32xbf16>, vector<16x32xf32> -> vector<16x32xf32>
    %54 = vector.shape_cast %14 : vector<32xf32> to vector<1x32xf32>
    %55 = vector.broadcast %54 : vector<1x32xf32> to vector<16x32xf32>
    %56 = arith.addf %53, %55 : vector<16x32xf32>
    %57 = arith.addf %6, %56 : vector<16x32xf32>
    %58 = vector.extract_strided_slice %0 {offsets = [3, 0], sizes = [1, 32], strides = [1, 1]} : vector<22x32xf32> to vector<1x32xf32>
    %59 = vector.shape_cast %58 : vector<1x32xf32> to vector<32xf32>
    %60 = vector.extract_strided_slice %0 {offsets = [4, 0], sizes = [1, 32], strides = [1, 1]} : vector<22x32xf32> to vector<1x32xf32>
    %61 = vector.shape_cast %60 : vector<1x32xf32> to vector<32xf32>
    %cst_18 = arith.constant dense<0.000000e+00> : vector<16xf32>
    %62 = vector.multi_reduction <add>, %57, %cst_18 [1] : vector<16x32xf32> to vector<16xf32>
    %63 = vector.shape_cast %62 : vector<16xf32> to vector<16x1xf32>
    %cst_19 = arith.constant 3.200000e+01 : f32
    %64 = vector.broadcast %cst_19 : f32 to vector<16x1xf32>
    %65 = arith.divf %63, %64 : vector<16x1xf32>
    %66 = vector.broadcast %65 : vector<16x1xf32> to vector<16x32xf32>
    %67 = arith.subf %57, %66 : vector<16x32xf32>
    %68 = arith.mulf %67, %67 : vector<16x32xf32>
    %cst_20 = arith.constant dense<0.000000e+00> : vector<16xf32>
    %69 = vector.multi_reduction <add>, %68, %cst_20 [1] : vector<16x32xf32> to vector<16xf32>
    %70 = vector.shape_cast %69 : vector<16xf32> to vector<16x1xf32>
    %cst_21 = arith.constant 3.200000e+01 : f32
    %71 = vector.broadcast %cst_21 : f32 to vector<16x1xf32>
    %72 = arith.divf %70, %71 : vector<16x1xf32>
    %73 = vector.broadcast %65 : vector<16x1xf32> to vector<16x32xf32>
    %74 = arith.subf %57, %73 : vector<16x32xf32>
    %cst_22 = arith.constant 9.99999974E-6 : f32
    %75 = vector.broadcast %cst_22 : f32 to vector<16x1xf32>
    %76 = arith.addf %72, %75 : vector<16x1xf32>
    %77 = math.rsqrt %76 : vector<16x1xf32>
    %78 = vector.broadcast %77 : vector<16x1xf32> to vector<16x32xf32>
    %79 = arith.mulf %74, %78 : vector<16x32xf32>
    %80 = vector.shape_cast %59 : vector<32xf32> to vector<1x32xf32>
    %81 = vector.broadcast %80 : vector<1x32xf32> to vector<16x32xf32>
    %82 = arith.mulf %79, %81 : vector<16x32xf32>
    %83 = vector.shape_cast %61 : vector<32xf32> to vector<1x32xf32>
    %84 = vector.broadcast %83 : vector<1x32xf32> to vector<16x32xf32>
    %85 = arith.addf %82, %84 : vector<16x32xf32>
    %86 = arith.truncf %85 : vector<16x32xf32> to vector<16x32xbf16>
    %c0_23 = arith.constant 0 : index
    %c0_24 = arith.constant 0 : index
    %87 = vector.load %arg6[%c0_23, %c0_24] : memref<32x32xbf16, #tpu.memory_space<vmem>>, vector<32x32xbf16>
    %cst_25 = arith.constant dense<0.000000e+00> : vector<16x32xf32>
    %88 = tpu.matmul %86, %87, %cst_25 {dimension_numbers = #tpu.dot_dimension_numbers<[1], [0], [0], [1], [0, 0, 1, 1], [], []>} : vector<16x32xbf16>, vector<32x32xbf16>, vector<16x32xf32> -> vector<16x32xf32>
    %89 = vector.extract_strided_slice %0 {offsets = [5, 0], sizes = [1, 32], strides = [1, 1]} : vector<22x32xf32> to vector<1x32xf32>
    %90 = vector.shape_cast %89 : vector<1x32xf32> to vector<32xf32>
    %91 = vector.shape_cast %90 : vector<32xf32> to vector<1x32xf32>
    %92 = vector.broadcast %91 : vector<1x32xf32> to vector<16x32xf32>
    %93 = arith.addf %88, %92 : vector<16x32xf32>
    %c0_26 = arith.constant 0 : index
    %c0_27 = arith.constant 0 : index
    %94 = vector.load %arg7[%c0_26, %c0_27] : memref<32x32xbf16, #tpu.memory_space<vmem>>, vector<32x32xbf16>
    %cst_28 = arith.constant dense<0.000000e+00> : vector<16x32xf32>
    %95 = tpu.matmul %86, %94, %cst_28 {dimension_numbers = #tpu.dot_dimension_numbers<[1], [0], [0], [1], [0, 0, 1, 1], [], []>} : vector<16x32xbf16>, vector<32x32xbf16>, vector<16x32xf32> -> vector<16x32xf32>
    %96 = vector.extract_strided_slice %0 {offsets = [6, 0], sizes = [1, 32], strides = [1, 1]} : vector<22x32xf32> to vector<1x32xf32>
    %97 = vector.shape_cast %96 : vector<1x32xf32> to vector<32xf32>
    %98 = vector.shape_cast %97 : vector<32xf32> to vector<1x32xf32>
    %99 = vector.broadcast %98 : vector<1x32xf32> to vector<16x32xf32>
    %100 = arith.addf %95, %99 : vector<16x32xf32>
    %c0_29 = arith.constant 0 : index
    %c0_30 = arith.constant 0 : index
    %101 = vector.load %arg8[%c0_29, %c0_30] : memref<32x32xbf16, #tpu.memory_space<vmem>>, vector<32x32xbf16>
    %cst_31 = arith.constant dense<0.000000e+00> : vector<16x32xf32>
    %102 = tpu.matmul %86, %101, %cst_31 {dimension_numbers = #tpu.dot_dimension_numbers<[1], [0], [0], [1], [0, 0, 1, 1], [], []>} : vector<16x32xbf16>, vector<32x32xbf16>, vector<16x32xf32> -> vector<16x32xf32>
    %103 = vector.extract_strided_slice %0 {offsets = [7, 0], sizes = [1, 32], strides = [1, 1]} : vector<22x32xf32> to vector<1x32xf32>
    %104 = vector.shape_cast %103 : vector<1x32xf32> to vector<32xf32>
    %105 = vector.shape_cast %104 : vector<32xf32> to vector<1x32xf32>
    %106 = vector.broadcast %105 : vector<1x32xf32> to vector<16x32xf32>
    %107 = arith.addf %102, %106 : vector<16x32xf32>
    %108 = vector.extract_strided_slice %93 {offsets = [0, 0], sizes = [16, 8], strides = [1, 1]} : vector<16x32xf32> to vector<16x8xf32>
    %109 = arith.truncf %108 : vector<16x8xf32> to vector<16x8xbf16>
    %110 = vector.extract_strided_slice %100 {offsets = [0, 0], sizes = [16, 8], strides = [1, 1]} : vector<16x32xf32> to vector<16x8xf32>
    %111 = arith.truncf %110 : vector<16x8xf32> to vector<16x8xbf16>
    %112 = vector.extract_strided_slice %107 {offsets = [0, 0], sizes = [16, 8], strides = [1, 1]} : vector<16x32xf32> to vector<16x8xf32>
    %113 = arith.truncf %112 : vector<16x8xf32> to vector<16x8xbf16>
    %cst_32 = arith.constant dense<0.000000e+00> : vector<16x16xf32>
    %114 = tpu.matmul %109, %111, %cst_32 {dimension_numbers = #tpu.dot_dimension_numbers<[1], [1], [0], [0], [0, 0, 1, 0], [], []>} : vector<16x8xbf16>, vector<16x8xbf16>, vector<16x16xf32> -> vector<16x16xf32>
    %cst_33 = arith.constant dense<0xFF800000> : vector<16xf32>
    %115 = vector.multi_reduction <maximumf>, %114, %cst_33 [1] : vector<16x16xf32> to vector<16xf32>
    %116 = vector.shape_cast %115 : vector<16xf32> to vector<16x1xf32>
    %117 = vector.broadcast %116 : vector<16x1xf32> to vector<16x16xf32>
    %118 = arith.subf %114, %117 : vector<16x16xf32>
    %119 = math.exp %118 : vector<16x16xf32>
    %cst_34 = arith.constant dense<0.000000e+00> : vector<16xf32>
    %120 = vector.multi_reduction <add>, %119, %cst_34 [1] : vector<16x16xf32> to vector<16xf32>
    %121 = vector.shape_cast %120 : vector<16xf32> to vector<16x1xf32>
    %122 = tpu.reciprocal %121 {approx = true} : vector<16x1xf32> -> vector<16x1xf32>
    %123 = vector.broadcast %122 : vector<16x1xf32> to vector<16x16xf32>
    %124 = arith.mulf %119, %123 : vector<16x16xf32>
    %125 = arith.truncf %124 : vector<16x16xf32> to vector<16x16xbf16>
    %cst_35 = arith.constant dense<0.000000e+00> : vector<16x8xf32>
    %126 = tpu.matmul %125, %113, %cst_35 {dimension_numbers = #tpu.dot_dimension_numbers<[1], [0], [0], [1], [0, 0, 1, 1], [], []>} : vector<16x16xbf16>, vector<16x8xbf16>, vector<16x8xf32> -> vector<16x8xf32>
    %127 = arith.truncf %126 : vector<16x8xf32> to vector<16x8xbf16>
    %128 = vector.extract_strided_slice %93 {offsets = [0, 8], sizes = [16, 8], strides = [1, 1]} : vector<16x32xf32> to vector<16x8xf32>
    %129 = arith.truncf %128 : vector<16x8xf32> to vector<16x8xbf16>
    %130 = vector.extract_strided_slice %100 {offsets = [0, 8], sizes = [16, 8], strides = [1, 1]} : vector<16x32xf32> to vector<16x8xf32>
    %131 = arith.truncf %130 : vector<16x8xf32> to vector<16x8xbf16>
    %132 = vector.extract_strided_slice %107 {offsets = [0, 8], sizes = [16, 8], strides = [1, 1]} : vector<16x32xf32> to vector<16x8xf32>
    %133 = arith.truncf %132 : vector<16x8xf32> to vector<16x8xbf16>
    %cst_36 = arith.constant dense<0.000000e+00> : vector<16x16xf32>
    %134 = tpu.matmul %129, %131, %cst_36 {dimension_numbers = #tpu.dot_dimension_numbers<[1], [1], [0], [0], [0, 0, 1, 0], [], []>} : vector<16x8xbf16>, vector<16x8xbf16>, vector<16x16xf32> -> vector<16x16xf32>
    %cst_37 = arith.constant dense<0xFF800000> : vector<16xf32>
    %135 = vector.multi_reduction <maximumf>, %134, %cst_37 [1] : vector<16x16xf32> to vector<16xf32>
    %136 = vector.shape_cast %135 : vector<16xf32> to vector<16x1xf32>
    %137 = vector.broadcast %136 : vector<16x1xf32> to vector<16x16xf32>
    %138 = arith.subf %134, %137 : vector<16x16xf32>
    %139 = math.exp %138 : vector<16x16xf32>
    %cst_38 = arith.constant dense<0.000000e+00> : vector<16xf32>
    %140 = vector.multi_reduction <add>, %139, %cst_38 [1] : vector<16x16xf32> to vector<16xf32>
    %141 = vector.shape_cast %140 : vector<16xf32> to vector<16x1xf32>
    %142 = tpu.reciprocal %141 {approx = true} : vector<16x1xf32> -> vector<16x1xf32>
    %143 = vector.broadcast %142 : vector<16x1xf32> to vector<16x16xf32>
    %144 = arith.mulf %139, %143 : vector<16x16xf32>
    %145 = arith.truncf %144 : vector<16x16xf32> to vector<16x16xbf16>
    %cst_39 = arith.constant dense<0.000000e+00> : vector<16x8xf32>
    %146 = tpu.matmul %145, %133, %cst_39 {dimension_numbers = #tpu.dot_dimension_numbers<[1], [0], [0], [1], [0, 0, 1, 1], [], []>} : vector<16x16xbf16>, vector<16x8xbf16>, vector<16x8xf32> -> vector<16x8xf32>
    %147 = arith.truncf %146 : vector<16x8xf32> to vector<16x8xbf16>
    %148 = vector.extract_strided_slice %93 {offsets = [0, 16], sizes = [16, 8], strides = [1, 1]} : vector<16x32xf32> to vector<16x8xf32>
    %149 = arith.truncf %148 : vector<16x8xf32> to vector<16x8xbf16>
    %150 = vector.extract_strided_slice %100 {offsets = [0, 16], sizes = [16, 8], strides = [1, 1]} : vector<16x32xf32> to vector<16x8xf32>
    %151 = arith.truncf %150 : vector<16x8xf32> to vector<16x8xbf16>
    %152 = vector.extract_strided_slice %107 {offsets = [0, 16], sizes = [16, 8], strides = [1, 1]} : vector<16x32xf32> to vector<16x8xf32>
    %153 = arith.truncf %152 : vector<16x8xf32> to vector<16x8xbf16>
    %cst_40 = arith.constant dense<0.000000e+00> : vector<16x16xf32>
    %154 = tpu.matmul %149, %151, %cst_40 {dimension_numbers = #tpu.dot_dimension_numbers<[1], [1], [0], [0], [0, 0, 1, 0], [], []>} : vector<16x8xbf16>, vector<16x8xbf16>, vector<16x16xf32> -> vector<16x16xf32>
    %cst_41 = arith.constant dense<0xFF800000> : vector<16xf32>
    %155 = vector.multi_reduction <maximumf>, %154, %cst_41 [1] : vector<16x16xf32> to vector<16xf32>
    %156 = vector.shape_cast %155 : vector<16xf32> to vector<16x1xf32>
    %157 = vector.broadcast %156 : vector<16x1xf32> to vector<16x16xf32>
    %158 = arith.subf %154, %157 : vector<16x16xf32>
    %159 = math.exp %158 : vector<16x16xf32>
    %cst_42 = arith.constant dense<0.000000e+00> : vector<16xf32>
    %160 = vector.multi_reduction <add>, %159, %cst_42 [1] : vector<16x16xf32> to vector<16xf32>
    %161 = vector.shape_cast %160 : vector<16xf32> to vector<16x1xf32>
    %162 = tpu.reciprocal %161 {approx = true} : vector<16x1xf32> -> vector<16x1xf32>
    %163 = vector.broadcast %162 : vector<16x1xf32> to vector<16x16xf32>
    %164 = arith.mulf %159, %163 : vector<16x16xf32>
    %165 = arith.truncf %164 : vector<16x16xf32> to vector<16x16xbf16>
    %cst_43 = arith.constant dense<0.000000e+00> : vector<16x8xf32>
    %166 = tpu.matmul %165, %153, %cst_43 {dimension_numbers = #tpu.dot_dimension_numbers<[1], [0], [0], [1], [0, 0, 1, 1], [], []>} : vector<16x16xbf16>, vector<16x8xbf16>, vector<16x8xf32> -> vector<16x8xf32>
    %167 = arith.truncf %166 : vector<16x8xf32> to vector<16x8xbf16>
    %168 = vector.extract_strided_slice %93 {offsets = [0, 24], sizes = [16, 8], strides = [1, 1]} : vector<16x32xf32> to vector<16x8xf32>
    %169 = arith.truncf %168 : vector<16x8xf32> to vector<16x8xbf16>
    %170 = vector.extract_strided_slice %100 {offsets = [0, 24], sizes = [16, 8], strides = [1, 1]} : vector<16x32xf32> to vector<16x8xf32>
    %171 = arith.truncf %170 : vector<16x8xf32> to vector<16x8xbf16>
    %172 = vector.extract_strided_slice %107 {offsets = [0, 24], sizes = [16, 8], strides = [1, 1]} : vector<16x32xf32> to vector<16x8xf32>
    %173 = arith.truncf %172 : vector<16x8xf32> to vector<16x8xbf16>
    %cst_44 = arith.constant dense<0.000000e+00> : vector<16x16xf32>
    %174 = tpu.matmul %169, %171, %cst_44 {dimension_numbers = #tpu.dot_dimension_numbers<[1], [1], [0], [0], [0, 0, 1, 0], [], []>} : vector<16x8xbf16>, vector<16x8xbf16>, vector<16x16xf32> -> vector<16x16xf32>
    %cst_45 = arith.constant dense<0xFF800000> : vector<16xf32>
    %175 = vector.multi_reduction <maximumf>, %174, %cst_45 [1] : vector<16x16xf32> to vector<16xf32>
    %176 = vector.shape_cast %175 : vector<16xf32> to vector<16x1xf32>
    %177 = vector.broadcast %176 : vector<16x1xf32> to vector<16x16xf32>
    %178 = arith.subf %174, %177 : vector<16x16xf32>
    %179 = math.exp %178 : vector<16x16xf32>
    %cst_46 = arith.constant dense<0.000000e+00> : vector<16xf32>
    %180 = vector.multi_reduction <add>, %179, %cst_46 [1] : vector<16x16xf32> to vector<16xf32>
    %181 = vector.shape_cast %180 : vector<16xf32> to vector<16x1xf32>
    %182 = tpu.reciprocal %181 {approx = true} : vector<16x1xf32> -> vector<16x1xf32>
    %183 = vector.broadcast %182 : vector<16x1xf32> to vector<16x16xf32>
    %184 = arith.mulf %179, %183 : vector<16x16xf32>
    %185 = arith.truncf %184 : vector<16x16xf32> to vector<16x16xbf16>
    %cst_47 = arith.constant dense<0.000000e+00> : vector<16x8xf32>
    %186 = tpu.matmul %185, %173, %cst_47 {dimension_numbers = #tpu.dot_dimension_numbers<[1], [0], [0], [1], [0, 0, 1, 1], [], []>} : vector<16x16xbf16>, vector<16x8xbf16>, vector<16x8xf32> -> vector<16x8xf32>
    %187 = arith.truncf %186 : vector<16x8xf32> to vector<16x8xbf16>
    %188 = tpu.concatenate %127, %147, %167, %187 in 1 : vector<16x8xbf16>, vector<16x8xbf16>, vector<16x8xbf16>, vector<16x8xbf16> -> vector<16x32xbf16>
    %c0_48 = arith.constant 0 : index
    %c0_49 = arith.constant 0 : index
    %189 = vector.load %arg9[%c0_48, %c0_49] : memref<32x32xbf16, #tpu.memory_space<vmem>>, vector<32x32xbf16>
    %cst_50 = arith.constant dense<0.000000e+00> : vector<16x32xf32>
    %190 = tpu.matmul %188, %189, %cst_50 {dimension_numbers = #tpu.dot_dimension_numbers<[1], [0], [0], [1], [0, 0, 1, 1], [], []>} : vector<16x32xbf16>, vector<32x32xbf16>, vector<16x32xf32> -> vector<16x32xf32>
    %191 = vector.extract_strided_slice %0 {offsets = [8, 0], sizes = [1, 32], strides = [1, 1]} : vector<22x32xf32> to vector<1x32xf32>
    %192 = vector.shape_cast %191 : vector<1x32xf32> to vector<32xf32>
    %193 = vector.shape_cast %192 : vector<32xf32> to vector<1x32xf32>
    %194 = vector.broadcast %193 : vector<1x32xf32> to vector<16x32xf32>
    %195 = arith.addf %190, %194 : vector<16x32xf32>
    %196 = arith.addf %57, %195 : vector<16x32xf32>
    %197 = vector.extract_strided_slice %0 {offsets = [9, 0], sizes = [1, 32], strides = [1, 1]} : vector<22x32xf32> to vector<1x32xf32>
    %198 = vector.shape_cast %197 : vector<1x32xf32> to vector<32xf32>
    %199 = vector.extract_strided_slice %0 {offsets = [10, 0], sizes = [1, 32], strides = [1, 1]} : vector<22x32xf32> to vector<1x32xf32>
    %200 = vector.shape_cast %199 : vector<1x32xf32> to vector<32xf32>
    %cst_51 = arith.constant dense<0.000000e+00> : vector<16xf32>
    %201 = vector.multi_reduction <add>, %196, %cst_51 [1] : vector<16x32xf32> to vector<16xf32>
    %202 = vector.shape_cast %201 : vector<16xf32> to vector<16x1xf32>
    %cst_52 = arith.constant 3.200000e+01 : f32
    %203 = vector.broadcast %cst_52 : f32 to vector<16x1xf32>
    %204 = arith.divf %202, %203 : vector<16x1xf32>
    %205 = vector.broadcast %204 : vector<16x1xf32> to vector<16x32xf32>
    %206 = arith.subf %196, %205 : vector<16x32xf32>
    %207 = arith.mulf %206, %206 : vector<16x32xf32>
    %cst_53 = arith.constant dense<0.000000e+00> : vector<16xf32>
    %208 = vector.multi_reduction <add>, %207, %cst_53 [1] : vector<16x32xf32> to vector<16xf32>
    %209 = vector.shape_cast %208 : vector<16xf32> to vector<16x1xf32>
    %cst_54 = arith.constant 3.200000e+01 : f32
    %210 = vector.broadcast %cst_54 : f32 to vector<16x1xf32>
    %211 = arith.divf %209, %210 : vector<16x1xf32>
    %212 = vector.broadcast %204 : vector<16x1xf32> to vector<16x32xf32>
    %213 = arith.subf %196, %212 : vector<16x32xf32>
    %cst_55 = arith.constant 9.99999974E-6 : f32
    %214 = vector.broadcast %cst_55 : f32 to vector<16x1xf32>
    %215 = arith.addf %211, %214 : vector<16x1xf32>
    %216 = math.rsqrt %215 : vector<16x1xf32>
    %217 = vector.broadcast %216 : vector<16x1xf32> to vector<16x32xf32>
    %218 = arith.mulf %213, %217 : vector<16x32xf32>
    %219 = vector.shape_cast %198 : vector<32xf32> to vector<1x32xf32>
    %220 = vector.broadcast %219 : vector<1x32xf32> to vector<16x32xf32>
    %221 = arith.mulf %218, %220 : vector<16x32xf32>
    %222 = vector.shape_cast %200 : vector<32xf32> to vector<1x32xf32>
    %223 = vector.broadcast %222 : vector<1x32xf32> to vector<16x32xf32>
    %224 = arith.addf %221, %223 : vector<16x32xf32>
    %225 = arith.truncf %224 : vector<16x32xf32> to vector<16x32xbf16>
    %c0_56 = arith.constant 0 : index
    %c0_57 = arith.constant 0 : index
    %226 = vector.load %arg10[%c0_56, %c0_57] : memref<32x32xbf16, #tpu.memory_space<vmem>>, vector<32x32xbf16>
    %cst_58 = arith.constant dense<0.000000e+00> : vector<16x32xf32>
    %227 = tpu.matmul %225, %226, %cst_58 {dimension_numbers = #tpu.dot_dimension_numbers<[1], [0], [0], [1], [0, 0, 1, 1], [], []>} : vector<16x32xbf16>, vector<32x32xbf16>, vector<16x32xf32> -> vector<16x32xf32>
    %228 = vector.extract_strided_slice %0 {offsets = [11, 0], sizes = [1, 32], strides = [1, 1]} : vector<22x32xf32> to vector<1x32xf32>
    %229 = vector.shape_cast %228 : vector<1x32xf32> to vector<32xf32>
    %230 = vector.shape_cast %229 : vector<32xf32> to vector<1x32xf32>
    %231 = vector.broadcast %230 : vector<1x32xf32> to vector<16x32xf32>
    %232 = arith.addf %227, %231 : vector<16x32xf32>
    %c0_59 = arith.constant 0 : index
    %c0_60 = arith.constant 0 : index
    %233 = vector.load %arg11[%c0_59, %c0_60] : memref<32x32xbf16, #tpu.memory_space<vmem>>, vector<32x32xbf16>
    %cst_61 = arith.constant dense<0.000000e+00> : vector<16x32xf32>
    %234 = tpu.matmul %225, %233, %cst_61 {dimension_numbers = #tpu.dot_dimension_numbers<[1], [0], [0], [1], [0, 0, 1, 1], [], []>} : vector<16x32xbf16>, vector<32x32xbf16>, vector<16x32xf32> -> vector<16x32xf32>
    %235 = vector.extract_strided_slice %0 {offsets = [12, 0], sizes = [1, 32], strides = [1, 1]} : vector<22x32xf32> to vector<1x32xf32>
    %236 = vector.shape_cast %235 : vector<1x32xf32> to vector<32xf32>
    %237 = vector.shape_cast %236 : vector<32xf32> to vector<1x32xf32>
    %238 = vector.broadcast %237 : vector<1x32xf32> to vector<16x32xf32>
    %239 = arith.addf %234, %238 : vector<16x32xf32>
    %240 = arith.negf %239 : vector<16x32xf32>
    %241 = math.exp %240 : vector<16x32xf32>
    %cst_62 = arith.constant 1.000000e+00 : f32
    %242 = vector.broadcast %cst_62 : f32 to vector<16x32xf32>
    %243 = arith.addf %242, %241 : vector<16x32xf32>
    %244 = arith.divf %242, %243 : vector<16x32xf32>
    %245 = arith.mulf %232, %244 : vector<16x32xf32>
    %246 = tpu.iota {dimensions = array<i32: 0>} : vector<16x1xi32>
    %c0_63 = arith.constant 0 : index
    %c0_64 = arith.constant 0 : index
    %247 = vector.load %arg12[%c0_63, %c0_64] : memref<7x32xf32, #tpu.memory_space<vmem>>, vector<7x32xf32>
    %cst_65 = arith.constant 0.000000e+00 : f32
    %248 = vector.broadcast %cst_65 : f32 to vector<16x32xf32>
    %c3_i32 = arith.constant 3 : i32
    %249 = tpu.dynamic_rotate %245 by %c3_i32 dim 0 : vector<16x32xf32>, i32 -> vector<16x32xf32>
    %c3_i32_66 = arith.constant 3 : i32
    %250 = vector.broadcast %c3_i32_66 : i32 to vector<16x1xi32>
    %251 = arith.cmpi sge, %246, %250 : vector<16x1xi32>
    %cst_67 = arith.constant 0.000000e+00 : f32
    %252 = vector.shape_cast %251 : vector<16x1xi1> to vector<16x1xi1>
    %253 = vector.broadcast %252 : vector<16x1xi1> to vector<16x32xi1>
    %254 = vector.broadcast %cst_67 : f32 to vector<16x32xf32>
    %255 = arith.select %253, %249, %254 : vector<16x32xi1>, vector<16x32xf32>
    %256 = vector.extract_strided_slice %247 {offsets = [0, 0], sizes = [1, 32], strides = [1, 1]} : vector<7x32xf32> to vector<1x32xf32>
    %257 = vector.shape_cast %256 : vector<1x32xf32> to vector<32xf32>
    %258 = vector.shape_cast %257 : vector<32xf32> to vector<1x32xf32>
    %259 = vector.broadcast %258 : vector<1x32xf32> to vector<16x32xf32>
    %260 = arith.mulf %255, %259 : vector<16x32xf32>
    %261 = arith.addf %248, %260 : vector<16x32xf32>
    %c2_i32 = arith.constant 2 : i32
    %262 = tpu.dynamic_rotate %245 by %c2_i32 dim 0 : vector<16x32xf32>, i32 -> vector<16x32xf32>
    %c2_i32_68 = arith.constant 2 : i32
    %263 = vector.broadcast %c2_i32_68 : i32 to vector<16x1xi32>
    %264 = arith.cmpi sge, %246, %263 : vector<16x1xi32>
    %cst_69 = arith.constant 0.000000e+00 : f32
    %265 = vector.shape_cast %264 : vector<16x1xi1> to vector<16x1xi1>
    %266 = vector.broadcast %265 : vector<16x1xi1> to vector<16x32xi1>
    %267 = vector.broadcast %cst_69 : f32 to vector<16x32xf32>
    %268 = arith.select %266, %262, %267 : vector<16x32xi1>, vector<16x32xf32>
    %269 = vector.extract_strided_slice %247 {offsets = [1, 0], sizes = [1, 32], strides = [1, 1]} : vector<7x32xf32> to vector<1x32xf32>
    %270 = vector.shape_cast %269 : vector<1x32xf32> to vector<32xf32>
    %271 = vector.shape_cast %270 : vector<32xf32> to vector<1x32xf32>
    %272 = vector.broadcast %271 : vector<1x32xf32> to vector<16x32xf32>
    %273 = arith.mulf %268, %272 : vector<16x32xf32>
    %274 = arith.addf %261, %273 : vector<16x32xf32>
    %c1_i32 = arith.constant 1 : i32
    %275 = tpu.dynamic_rotate %245 by %c1_i32 dim 0 : vector<16x32xf32>, i32 -> vector<16x32xf32>
    %c1_i32_70 = arith.constant 1 : i32
    %276 = vector.broadcast %c1_i32_70 : i32 to vector<16x1xi32>
    %277 = arith.cmpi sge, %246, %276 : vector<16x1xi32>
    %cst_71 = arith.constant 0.000000e+00 : f32
    %278 = vector.shape_cast %277 : vector<16x1xi1> to vector<16x1xi1>
    %279 = vector.broadcast %278 : vector<16x1xi1> to vector<16x32xi1>
    %280 = vector.broadcast %cst_71 : f32 to vector<16x32xf32>
    %281 = arith.select %279, %275, %280 : vector<16x32xi1>, vector<16x32xf32>
    %282 = vector.extract_strided_slice %247 {offsets = [2, 0], sizes = [1, 32], strides = [1, 1]} : vector<7x32xf32> to vector<1x32xf32>
    %283 = vector.shape_cast %282 : vector<1x32xf32> to vector<32xf32>
    %284 = vector.shape_cast %283 : vector<32xf32> to vector<1x32xf32>
    %285 = vector.broadcast %284 : vector<1x32xf32> to vector<16x32xf32>
    %286 = arith.mulf %281, %285 : vector<16x32xf32>
    %287 = arith.addf %274, %286 : vector<16x32xf32>
    %288 = vector.extract_strided_slice %247 {offsets = [3, 0], sizes = [1, 32], strides = [1, 1]} : vector<7x32xf32> to vector<1x32xf32>
    %289 = vector.shape_cast %288 : vector<1x32xf32> to vector<32xf32>
    %290 = vector.shape_cast %289 : vector<32xf32> to vector<1x32xf32>
    %291 = vector.broadcast %290 : vector<1x32xf32> to vector<16x32xf32>
    %292 = arith.mulf %245, %291 : vector<16x32xf32>
    %293 = arith.addf %287, %292 : vector<16x32xf32>
    %c15_i32 = arith.constant 15 : i32
    %294 = tpu.dynamic_rotate %245 by %c15_i32 dim 0 : vector<16x32xf32>, i32 -> vector<16x32xf32>
    %c15_i32_72 = arith.constant 15 : i32
    %295 = vector.broadcast %c15_i32_72 : i32 to vector<16x1xi32>
    %296 = arith.cmpi slt, %246, %295 : vector<16x1xi32>
    %cst_73 = arith.constant 0.000000e+00 : f32
    %297 = vector.shape_cast %296 : vector<16x1xi1> to vector<16x1xi1>
    %298 = vector.broadcast %297 : vector<16x1xi1> to vector<16x32xi1>
    %299 = vector.broadcast %cst_73 : f32 to vector<16x32xf32>
    %300 = arith.select %298, %294, %299 : vector<16x32xi1>, vector<16x32xf32>
    %301 = vector.extract_strided_slice %247 {offsets = [4, 0], sizes = [1, 32], strides = [1, 1]} : vector<7x32xf32> to vector<1x32xf32>
    %302 = vector.shape_cast %301 : vector<1x32xf32> to vector<32xf32>
    %303 = vector.shape_cast %302 : vector<32xf32> to vector<1x32xf32>
    %304 = vector.broadcast %303 : vector<1x32xf32> to vector<16x32xf32>
    %305 = arith.mulf %300, %304 : vector<16x32xf32>
    %306 = arith.addf %293, %305 : vector<16x32xf32>
    %c14_i32 = arith.constant 14 : i32
    %307 = tpu.dynamic_rotate %245 by %c14_i32 dim 0 : vector<16x32xf32>, i32 -> vector<16x32xf32>
    %c14_i32_74 = arith.constant 14 : i32
    %308 = vector.broadcast %c14_i32_74 : i32 to vector<16x1xi32>
    %309 = arith.cmpi slt, %246, %308 : vector<16x1xi32>
    %cst_75 = arith.constant 0.000000e+00 : f32
    %310 = vector.shape_cast %309 : vector<16x1xi1> to vector<16x1xi1>
    %311 = vector.broadcast %310 : vector<16x1xi1> to vector<16x32xi1>
    %312 = vector.broadcast %cst_75 : f32 to vector<16x32xf32>
    %313 = arith.select %311, %307, %312 : vector<16x32xi1>, vector<16x32xf32>
    %314 = vector.extract_strided_slice %247 {offsets = [5, 0], sizes = [1, 32], strides = [1, 1]} : vector<7x32xf32> to vector<1x32xf32>
    %315 = vector.shape_cast %314 : vector<1x32xf32> to vector<32xf32>
    %316 = vector.shape_cast %315 : vector<32xf32> to vector<1x32xf32>
    %317 = vector.broadcast %316 : vector<1x32xf32> to vector<16x32xf32>
    %318 = arith.mulf %313, %317 : vector<16x32xf32>
    %319 = arith.addf %306, %318 : vector<16x32xf32>
    %c13_i32 = arith.constant 13 : i32
    %320 = tpu.dynamic_rotate %245 by %c13_i32 dim 0 : vector<16x32xf32>, i32 -> vector<16x32xf32>
    %c13_i32_76 = arith.constant 13 : i32
    %321 = vector.broadcast %c13_i32_76 : i32 to vector<16x1xi32>
    %322 = arith.cmpi slt, %246, %321 : vector<16x1xi32>
    %cst_77 = arith.constant 0.000000e+00 : f32
    %323 = vector.shape_cast %322 : vector<16x1xi1> to vector<16x1xi1>
    %324 = vector.broadcast %323 : vector<16x1xi1> to vector<16x32xi1>
    %325 = vector.broadcast %cst_77 : f32 to vector<16x32xf32>
    %326 = arith.select %324, %320, %325 : vector<16x32xi1>, vector<16x32xf32>
    %327 = vector.extract_strided_slice %247 {offsets = [6, 0], sizes = [1, 32], strides = [1, 1]} : vector<7x32xf32> to vector<1x32xf32>
    %328 = vector.shape_cast %327 : vector<1x32xf32> to vector<32xf32>
    %329 = vector.shape_cast %328 : vector<32xf32> to vector<1x32xf32>
    %330 = vector.broadcast %329 : vector<1x32xf32> to vector<16x32xf32>
    %331 = arith.mulf %326, %330 : vector<16x32xf32>
    %332 = arith.addf %319, %331 : vector<16x32xf32>
    %333 = vector.extract_strided_slice %0 {offsets = [13, 0], sizes = [1, 32], strides = [1, 1]} : vector<22x32xf32> to vector<1x32xf32>
    %334 = vector.shape_cast %333 : vector<1x32xf32> to vector<32xf32>
    %335 = vector.shape_cast %334 : vector<32xf32> to vector<1x32xf32>
    %336 = vector.broadcast %335 : vector<1x32xf32> to vector<16x32xf32>
    %337 = arith.addf %332, %336 : vector<16x32xf32>
    %338 = vector.extract_strided_slice %0 {offsets = [14, 0], sizes = [1, 32], strides = [1, 1]} : vector<22x32xf32> to vector<1x32xf32>
    %339 = vector.shape_cast %338 : vector<1x32xf32> to vector<32xf32>
    %340 = vector.shape_cast %339 : vector<32xf32> to vector<1x32xf32>
    %341 = vector.broadcast %340 : vector<1x32xf32> to vector<16x32xf32>
    %342 = arith.mulf %337, %341 : vector<16x32xf32>
    %343 = vector.extract_strided_slice %0 {offsets = [15, 0], sizes = [1, 32], strides = [1, 1]} : vector<22x32xf32> to vector<1x32xf32>
    %344 = vector.shape_cast %343 : vector<1x32xf32> to vector<32xf32>
    %345 = vector.shape_cast %344 : vector<32xf32> to vector<1x32xf32>
    %346 = vector.broadcast %345 : vector<1x32xf32> to vector<16x32xf32>
    %347 = arith.addf %342, %346 : vector<16x32xf32>
    %348 = arith.negf %347 : vector<16x32xf32>
    %349 = math.exp %348 : vector<16x32xf32>
    %cst_78 = arith.constant 1.000000e+00 : f32
    %350 = vector.broadcast %cst_78 : f32 to vector<16x32xf32>
    %351 = arith.addf %350, %349 : vector<16x32xf32>
    %352 = arith.divf %350, %351 : vector<16x32xf32>
    %353 = arith.mulf %347, %352 : vector<16x32xf32>
    %354 = arith.truncf %353 : vector<16x32xf32> to vector<16x32xbf16>
    %c0_79 = arith.constant 0 : index
    %c0_80 = arith.constant 0 : index
    %355 = vector.load %arg13[%c0_79, %c0_80] : memref<32x32xbf16, #tpu.memory_space<vmem>>, vector<32x32xbf16>
    %cst_81 = arith.constant dense<0.000000e+00> : vector<16x32xf32>
    %356 = tpu.matmul %354, %355, %cst_81 {dimension_numbers = #tpu.dot_dimension_numbers<[1], [0], [0], [1], [0, 0, 1, 1], [], []>} : vector<16x32xbf16>, vector<32x32xbf16>, vector<16x32xf32> -> vector<16x32xf32>
    %357 = vector.extract_strided_slice %0 {offsets = [16, 0], sizes = [1, 32], strides = [1, 1]} : vector<22x32xf32> to vector<1x32xf32>
    %358 = vector.shape_cast %357 : vector<1x32xf32> to vector<32xf32>
    %359 = vector.shape_cast %358 : vector<32xf32> to vector<1x32xf32>
    %360 = vector.broadcast %359 : vector<1x32xf32> to vector<16x32xf32>
    %361 = arith.addf %356, %360 : vector<16x32xf32>
    %362 = arith.addf %196, %361 : vector<16x32xf32>
    %cst_82 = arith.constant 5.000000e-01 : f32
    %363 = vector.broadcast %cst_82 : f32 to vector<16x32xf32>
    %364 = arith.mulf %362, %363 : vector<16x32xf32>
    %365 = vector.extract_strided_slice %0 {offsets = [17, 0], sizes = [1, 32], strides = [1, 1]} : vector<22x32xf32> to vector<1x32xf32>
    %366 = vector.shape_cast %365 : vector<1x32xf32> to vector<32xf32>
    %367 = vector.extract_strided_slice %0 {offsets = [18, 0], sizes = [1, 32], strides = [1, 1]} : vector<22x32xf32> to vector<1x32xf32>
    %368 = vector.shape_cast %367 : vector<1x32xf32> to vector<32xf32>
    %369 = vector.extract_strided_slice %1 {offsets = [1, 0], sizes = [1, 64], strides = [1, 1]} : vector<2x64xf32> to vector<1x64xf32>
    %370 = vector.shape_cast %369 : vector<1x64xf32> to vector<64xf32>
    %371 = vector.extract_strided_slice %0 {offsets = [19, 0], sizes = [1, 32], strides = [1, 1]} : vector<22x32xf32> to vector<1x32xf32>
    %372 = vector.shape_cast %371 : vector<1x32xf32> to vector<32xf32>
    %cst_83 = arith.constant dense<0.000000e+00> : vector<16xf32>
    %373 = vector.multi_reduction <add>, %362, %cst_83 [1] : vector<16x32xf32> to vector<16xf32>
    %374 = vector.shape_cast %373 : vector<16xf32> to vector<16x1xf32>
    %cst_84 = arith.constant 3.200000e+01 : f32
    %375 = vector.broadcast %cst_84 : f32 to vector<16x1xf32>
    %376 = arith.divf %374, %375 : vector<16x1xf32>
    %377 = vector.broadcast %376 : vector<16x1xf32> to vector<16x32xf32>
    %378 = arith.subf %362, %377 : vector<16x32xf32>
    %379 = arith.mulf %378, %378 : vector<16x32xf32>
    %cst_85 = arith.constant dense<0.000000e+00> : vector<16xf32>
    %380 = vector.multi_reduction <add>, %379, %cst_85 [1] : vector<16x32xf32> to vector<16xf32>
    %381 = vector.shape_cast %380 : vector<16xf32> to vector<16x1xf32>
    %cst_86 = arith.constant 3.200000e+01 : f32
    %382 = vector.broadcast %cst_86 : f32 to vector<16x1xf32>
    %383 = arith.divf %381, %382 : vector<16x1xf32>
    %384 = vector.broadcast %376 : vector<16x1xf32> to vector<16x32xf32>
    %385 = arith.subf %362, %384 : vector<16x32xf32>
    %cst_87 = arith.constant 9.99999974E-6 : f32
    %386 = vector.broadcast %cst_87 : f32 to vector<16x1xf32>
    %387 = arith.addf %383, %386 : vector<16x1xf32>
    %388 = math.rsqrt %387 : vector<16x1xf32>
    %389 = vector.broadcast %388 : vector<16x1xf32> to vector<16x32xf32>
    %390 = arith.mulf %385, %389 : vector<16x32xf32>
    %391 = vector.shape_cast %366 : vector<32xf32> to vector<1x32xf32>
    %392 = vector.broadcast %391 : vector<1x32xf32> to vector<16x32xf32>
    %393 = arith.mulf %390, %392 : vector<16x32xf32>
    %394 = vector.shape_cast %368 : vector<32xf32> to vector<1x32xf32>
    %395 = vector.broadcast %394 : vector<1x32xf32> to vector<16x32xf32>
    %396 = arith.addf %393, %395 : vector<16x32xf32>
    %397 = arith.truncf %396 : vector<16x32xf32> to vector<16x32xbf16>
    %c0_88 = arith.constant 0 : index
    %c0_89 = arith.constant 0 : index
    %398 = vector.load %arg14[%c0_88, %c0_89] : memref<32x64xbf16, #tpu.memory_space<vmem>>, vector<32x64xbf16>
    %cst_90 = arith.constant dense<0.000000e+00> : vector<16x64xf32>
    %399 = tpu.matmul %397, %398, %cst_90 {dimension_numbers = #tpu.dot_dimension_numbers<[1], [0], [0], [1], [0, 0, 1, 1], [], []>} : vector<16x32xbf16>, vector<32x64xbf16>, vector<16x64xf32> -> vector<16x64xf32>
    %400 = vector.shape_cast %370 : vector<64xf32> to vector<1x64xf32>
    %401 = vector.broadcast %400 : vector<1x64xf32> to vector<16x64xf32>
    %402 = arith.addf %399, %401 : vector<16x64xf32>
    %403 = arith.negf %402 : vector<16x64xf32>
    %404 = math.exp %403 : vector<16x64xf32>
    %cst_91 = arith.constant 1.000000e+00 : f32
    %405 = vector.broadcast %cst_91 : f32 to vector<16x64xf32>
    %406 = arith.addf %405, %404 : vector<16x64xf32>
    %407 = arith.divf %405, %406 : vector<16x64xf32>
    %408 = arith.mulf %402, %407 : vector<16x64xf32>
    %409 = arith.truncf %408 : vector<16x64xf32> to vector<16x64xbf16>
    %c0_92 = arith.constant 0 : index
    %c0_93 = arith.constant 0 : index
    %410 = vector.load %arg15[%c0_92, %c0_93] : memref<64x32xbf16, #tpu.memory_space<vmem>>, vector<64x32xbf16>
    %cst_94 = arith.constant dense<0.000000e+00> : vector<16x32xf32>
    %411 = tpu.matmul %409, %410, %cst_94 {dimension_numbers = #tpu.dot_dimension_numbers<[1], [0], [0], [1], [0, 0, 1, 1], [], []>} : vector<16x64xbf16>, vector<64x32xbf16>, vector<16x32xf32> -> vector<16x32xf32>
    %412 = vector.shape_cast %372 : vector<32xf32> to vector<1x32xf32>
    %413 = vector.broadcast %412 : vector<1x32xf32> to vector<16x32xf32>
    %414 = arith.addf %411, %413 : vector<16x32xf32>
    %415 = arith.addf %364, %414 : vector<16x32xf32>
    %416 = vector.extract_strided_slice %0 {offsets = [20, 0], sizes = [1, 32], strides = [1, 1]} : vector<22x32xf32> to vector<1x32xf32>
    %417 = vector.shape_cast %416 : vector<1x32xf32> to vector<32xf32>
    %418 = vector.extract_strided_slice %0 {offsets = [21, 0], sizes = [1, 32], strides = [1, 1]} : vector<22x32xf32> to vector<1x32xf32>
    %419 = vector.shape_cast %418 : vector<1x32xf32> to vector<32xf32>
    %cst_95 = arith.constant dense<0.000000e+00> : vector<16xf32>
    %420 = vector.multi_reduction <add>, %415, %cst_95 [1] : vector<16x32xf32> to vector<16xf32>
    %421 = vector.shape_cast %420 : vector<16xf32> to vector<16x1xf32>
    %cst_96 = arith.constant 3.200000e+01 : f32
    %422 = vector.broadcast %cst_96 : f32 to vector<16x1xf32>
    %423 = arith.divf %421, %422 : vector<16x1xf32>
    %424 = vector.broadcast %423 : vector<16x1xf32> to vector<16x32xf32>
    %425 = arith.subf %415, %424 : vector<16x32xf32>
    %426 = arith.mulf %425, %425 : vector<16x32xf32>
    %cst_97 = arith.constant dense<0.000000e+00> : vector<16xf32>
    %427 = vector.multi_reduction <add>, %426, %cst_97 [1] : vector<16x32xf32> to vector<16xf32>
    %428 = vector.shape_cast %427 : vector<16xf32> to vector<16x1xf32>
    %cst_98 = arith.constant 3.200000e+01 : f32
    %429 = vector.broadcast %cst_98 : f32 to vector<16x1xf32>
    %430 = arith.divf %428, %429 : vector<16x1xf32>
    %431 = vector.broadcast %423 : vector<16x1xf32> to vector<16x32xf32>
    %432 = arith.subf %415, %431 : vector<16x32xf32>
    %cst_99 = arith.constant 9.99999974E-6 : f32
    %433 = vector.broadcast %cst_99 : f32 to vector<16x1xf32>
    %434 = arith.addf %430, %433 : vector<16x1xf32>
    %435 = math.rsqrt %434 : vector<16x1xf32>
    %436 = vector.broadcast %435 : vector<16x1xf32> to vector<16x32xf32>
    %437 = arith.mulf %432, %436 : vector<16x32xf32>
    %438 = vector.shape_cast %417 : vector<32xf32> to vector<1x32xf32>
    %439 = vector.broadcast %438 : vector<1x32xf32> to vector<16x32xf32>
    %440 = arith.mulf %437, %439 : vector<16x32xf32>
    %441 = vector.shape_cast %419 : vector<32xf32> to vector<1x32xf32>
    %442 = vector.broadcast %441 : vector<1x32xf32> to vector<16x32xf32>
    %443 = arith.addf %440, %442 : vector<16x32xf32>
    %c0_100 = arith.constant 0 : index
    %c0_101 = arith.constant 0 : index
    %c0_102 = arith.constant 0 : index
    %444 = vector.load %arg16[%c0_100, %c0_101, %c0_102] : memref<1x16x32xf32, #tpu.memory_space<vmem>>, vector<1x16x32xf32>
    %445 = vector.shape_cast %444 : vector<1x16x32xf32> to vector<16x32xf32>
    %446 = vector.shape_cast %443 : vector<16x32xf32> to vector<1x16x32xf32>
    tpu.vector_store %arg16[%c0_100, %c0_101, %c0_102], %446 {strides = array<i32>} : memref<1x16x32xf32, #tpu.memory_space<vmem>>, vector<1x16x32xf32>,
    return
  }
  func.func @transform_0(%arg0: i32) -> (i32, i32, i32) {
    %c0_i32 = arith.constant 0 : i32
    %c0_i32_0 = arith.constant 0 : i32
    %c0_i32_1 = arith.constant 0 : i32
    return %arg0, %c0_i32, %c0_i32_0 : i32, i32, i32
  }
  func.func @transform_1(%arg0: i32) -> (i32, i32) {
    %c0_i32 = arith.constant 0 : i32
    %c0_i32_0 = arith.constant 0 : i32
    %c0_i32_1 = arith.constant 0 : i32
    return %c0_i32, %c0_i32_0 : i32, i32
  }
  func.func @transform_2(%arg0: i32) -> (i32, i32) {
    %c0_i32 = arith.constant 0 : i32
    %c0_i32_0 = arith.constant 0 : i32
    %c0_i32_1 = arith.constant 0 : i32
    return %c0_i32, %c0_i32_0 : i32, i32
  }
  func.func @transform_3(%arg0: i32) -> (i32, i32) {
    %c0_i32 = arith.constant 0 : i32
    %c0_i32_0 = arith.constant 0 : i32
    %c0_i32_1 = arith.constant 0 : i32
    return %c0_i32, %c0_i32_0 : i32, i32
  }
  func.func @transform_4(%arg0: i32) -> (i32, i32) {
    %c0_i32 = arith.constant 0 : i32
    %c0_i32_0 = arith.constant 0 : i32
    %c0_i32_1 = arith.constant 0 : i32
    return %c0_i32, %c0_i32_0 : i32, i32
  }
  func.func @transform_5(%arg0: i32) -> (i32, i32) {
    %c0_i32 = arith.constant 0 : i32
    %c0_i32_0 = arith.constant 0 : i32
    %c0_i32_1 = arith.constant 0 : i32
    return %c0_i32, %c0_i32_0 : i32, i32
  }
  func.func @transform_6(%arg0: i32) -> (i32, i32) {
    %c0_i32 = arith.constant 0 : i32
    %c0_i32_0 = arith.constant 0 : i32
    %c0_i32_1 = arith.constant 0 : i32
    return %c0_i32, %c0_i32_0 : i32, i32
  }
  func.func @transform_7(%arg0: i32) -> (i32, i32) {
    %c0_i32 = arith.constant 0 : i32
    %c0_i32_0 = arith.constant 0 : i32
    %c0_i32_1 = arith.constant 0 : i32
    return %c0_i32, %c0_i32_0 : i32, i32
  }
  func.func @transform_8(%arg0: i32) -> (i32, i32) {
    %c0_i32 = arith.constant 0 : i32
    %c0_i32_0 = arith.constant 0 : i32
    %c0_i32_1 = arith.constant 0 : i32
    return %c0_i32, %c0_i32_0 : i32, i32
  }
  func.func @transform_9(%arg0: i32) -> (i32, i32) {
    %c0_i32 = arith.constant 0 : i32
    %c0_i32_0 = arith.constant 0 : i32
    %c0_i32_1 = arith.constant 0 : i32
    return %c0_i32, %c0_i32_0 : i32, i32
  }
  func.func @transform_10(%arg0: i32) -> (i32, i32) {
    %c0_i32 = arith.constant 0 : i32
    %c0_i32_0 = arith.constant 0 : i32
    %c0_i32_1 = arith.constant 0 : i32
    return %c0_i32, %c0_i32_0 : i32, i32
  }
  func.func @transform_11(%arg0: i32) -> (i32, i32) {
    %c0_i32 = arith.constant 0 : i32
    %c0_i32_0 = arith.constant 0 : i32
    %c0_i32_1 = arith.constant 0 : i32
    return %c0_i32, %c0_i32_0 : i32, i32
  }
  func.func @transform_12(%arg0: i32) -> (i32, i32) {
    %c0_i32 = arith.constant 0 : i32
    %c0_i32_0 = arith.constant 0 : i32
    %c0_i32_1 = arith.constant 0 : i32
    return %c0_i32, %c0_i32_0 : i32, i32
  }
  func.func @transform_13(%arg0: i32) -> (i32, i32) {
    %c0_i32 = arith.constant 0 : i32
    %c0_i32_0 = arith.constant 0 : i32
    %c0_i32_1 = arith.constant 0 : i32
    return %c0_i32, %c0_i32_0 : i32, i32
  }
  func.func @transform_14(%arg0: i32) -> (i32, i32) {
    %c0_i32 = arith.constant 0 : i32
    %c0_i32_0 = arith.constant 0 : i32
    %c0_i32_1 = arith.constant 0 : i32
    return %c0_i32, %c0_i32_0 : i32, i32
  }
  func.func @transform_15(%arg0: i32) -> (i32, i32, i32) {
    %c0_i32 = arith.constant 0 : i32
    %c0_i32_0 = arith.constant 0 : i32
    %c0_i32_1 = arith.constant 0 : i32
    return %arg0, %c0_i32, %c0_i32_0 : i32, i32, i32
  }
}

</mosaic_0001>

<llo_original>
// kernel: tpu_custom_call.1
$region0: #{tpu_custom_call.1}
  #allocation0 [shape = 'u32[]', space=smem, size = 0x4, offset = 0x4, fixed_abs, tag = 'smem constant byte address 0x4 - core index']
  #allocation1 [shape = 'u32[144,128]{1,0:T(1,128)}', space=vmem, size = 0x12000, scoped, tag = 'internal scratch']
  %s0 = inlined_call_operand.vmem [shape: f32[2,32,16], index: 0, kind: input, shape index: {}]
  %s1 = inlined_call_operand.vmem [shape: f32[22,32], index: 1, kind: input, shape index: {}]
  %s2 = inlined_call_operand.vmem [shape: f32[2,64], index: 2, kind: input, shape index: {}]
  %s3 = inlined_call_operand.vmem [shape: bf16[32,64], index: 3, kind: input, shape index: {}]
  %s4 = inlined_call_operand.vmem [shape: bf16[64,32], index: 4, kind: input, shape index: {}]
  %s5 = inlined_call_operand.vmem [shape: bf16[32,32], index: 5, kind: input, shape index: {}]
  %s6 = inlined_call_operand.vmem [shape: bf16[32,32], index: 6, kind: input, shape index: {}]
  %s7 = inlined_call_operand.vmem [shape: bf16[32,32], index: 7, kind: input, shape index: {}]
  %s8 = inlined_call_operand.vmem [shape: bf16[32,32], index: 8, kind: input, shape index: {}]
  %s9 = inlined_call_operand.vmem [shape: bf16[32,32], index: 9, kind: input, shape index: {}]
  %s10 = inlined_call_operand.vmem [shape: bf16[32,32], index: 10, kind: input, shape index: {}]
  %s11 = inlined_call_operand.vmem [shape: f32[7,32], index: 11, kind: input, shape index: {}]
  %s12 = inlined_call_operand.vmem [shape: bf16[32,32], index: 12, kind: input, shape index: {}]
  %s13 = inlined_call_operand.vmem [shape: bf16[32,64], index: 13, kind: input, shape index: {}]
  %s14 = inlined_call_operand.vmem [shape: bf16[64,32], index: 14, kind: input, shape index: {}]
  %s15 = inlined_call_operand.hbm [shape: f32[2,16,32], index: 15, kind: output, shape index: {}]
  %s16 = sld [smem:[#allocation0]]
  $region93: #{tpu_custom_call.1} parent=0
    _
  %s18 = ssub.s32 1, %s16
  %s19 = scalar_select 0, %s18, %s16
  $region1: #{tpu_custom_call.1} parent=0
    #allocation2 [shape = 'u8[16384]{0}', space=vmem, size = 0x4000, scoped, tag = 'output window, operand 0']
    #allocation3 [shape = 's32[2]{0}', space=sflag, size = 0x8, scoped, tag = 'scoped memory for tpu_custom_call.1']
    %20 = vsyncpa [#allocation3], 0
    %s21 = scalar_lea.sflag [#allocation3], 1
    %22 = vsyncpa %s21, 0
    loop: start=0, step=1, limit=4
    $region2: #{tpu_custom_call.1} parent=1 // loop_pre_header
      _
    $region3: #{tpu_custom_call.1} parent=1 // loop_header
      %s24 = sphi 0, %s28
      %p25 = scmp.ge.s32.totalorder %s24, 4
      %s34 = sphi 0, %s36
      %s37 = sphi 0, %s34
      %s38 = sphi 0, %s37
      %s54 = sphi 0, %s38
      %s58 = sphi 0, %s58
      %s60 = sphi 0, %s58
      %s61 = sphi 0, %s60
      %s75 = sphi 0, %s61
      %s79 = sphi 0, %s79
      %s81 = sphi 0, %s79
      %s82 = sphi 0, %s81
      %s96 = sphi 0, %s82
      %s100 = sphi 0, %s100
      %s102 = sphi 0, %s100
      %s103 = sphi 0, %s102
      %s117 = sphi 0, %s103
      %s121 = sphi 0, %s121
      %s123 = sphi 0, %s121
      %s124 = sphi 0, %s123
      %s138 = sphi 0, %s124
      %s142 = sphi 0, %s142
      %s144 = sphi 0, %s142
      %s145 = sphi 0, %s144
      %s159 = sphi 0, %s145
      %s163 = sphi 0, %s163
      %s165 = sphi 0, %s163
      %s166 = sphi 0, %s165
      %s180 = sphi 0, %s166
      %s184 = sphi 0, %s184
      %s186 = sphi 0, %s184
      %s187 = sphi 0, %s186
      %s201 = sphi 0, %s187
      %s205 = sphi 0, %s205
      %s207 = sphi 0, %s205
      %s208 = sphi 0, %s207
      %s222 = sphi 0, %s208
      %s226 = sphi 0, %s226
      %s228 = sphi 0, %s226
      %s229 = sphi 0, %s228
      %s243 = sphi 0, %s229
      %s247 = sphi 0, %s247
      %s249 = sphi 0, %s247
      %s250 = sphi 0, %s249
      %s264 = sphi 0, %s250
      %s268 = sphi 0, %s268
      %s270 = sphi 0, %s268
      %s271 = sphi 0, %s270
      %s285 = sphi 0, %s271
      %s289 = sphi 0, %s289
      %s291 = sphi 0, %s289
      %s292 = sphi 0, %s291
      %s306 = sphi 0, %s292
      %s310 = sphi 0, %s310
      %s312 = sphi 0, %s310
      %s313 = sphi 0, %s312
      %s327 = sphi 0, %s313
      %s331 = sphi 0, %s331
      %s333 = sphi 0, %s331
      %s334 = sphi 0, %s333
      %s348 = sphi 0, %s334
      %s354 = sphi 0, %s356
      %s357 = sphi 0, %s354
      %s358 = sphi 0, %s357
      %s374 = sphi 0, %s358
    $region4: #{tpu_custom_call.1} parent=1 // loop_header_branch
      %27 = sbr.rel (%p25) target = $region8
    $region5: #{tpu_custom_call.1} parent=1 // loop_body
      %s29 = ssub.s32 %s24, 1
      %s30 = ssub.s32 %s24, 2
      %s31 = sadd.s32 %s24, 1
      %s32 = ssub.s32 %s24, %s31
      %p33 = scmp.eq.s32.totalorder %s32, 0
      %s35 = sadd.s32 %s34, 1
      %s36 = scalar_select %p33, %s34, %s35
      %p39 = pneg %p33
      %p40 = scmp.eq.s32.totalorder %s24, 1
      %p41 = por %p39, %p40
      %p42 = scmp.ne.s32.totalorder %s34, %s37
      %p43 = scmp.eq.s32.totalorder %s24, 0
      %p44 = por %p42, %p43
      %p45 = scmp.ne.s32.totalorder %s34, %s37
      %p46 = scmp.eq.s32.totalorder %s29, 1
      %p47 = por %p45, %p46
      %p48 = scmp.ne.s32.totalorder %s37, %s38
      %p49 = scmp.eq.s32.totalorder %s29, 0
      %p50 = por %p48, %p49
      %p51 = scmp.ne.s32.totalorder %s37, %s38
      %p52 = scmp.eq.s32.totalorder %s30, 1
      %p53 = por %p51, %p52
      %p55 = scmp.ne.s32.totalorder %s38, %s54
      %p56 = scmp.eq.s32.totalorder %s30, 0
      %p57 = por %p55, %p56
      %s59 = sadd.s32 %s58, 1
      %p62 = scmp.eq.s32.totalorder %s24, 1
      %p63 = scmp.ne.s32.totalorder %s58, %s60
      %p64 = scmp.eq.s32.totalorder %s24, 0
      %p65 = por %p63, %p64
      %p66 = scmp.ne.s32.totalorder %s58, %s60
      %p67 = scmp.eq.s32.totalorder %s29, 1
      %p68 = por %p66, %p67
      %p69 = scmp.ne.s32.totalorder %s60, %s61
      %p70 = scmp.eq.s32.totalorder %s29, 0
      %p71 = por %p69, %p70
      %p72 = scmp.ne.s32.totalorder %s60, %s61
      %p73 = scmp.eq.s32.totalorder %s30, 1
      %p74 = por %p72, %p73
      %p76 = scmp.ne.s32.totalorder %s61, %s75
      %p77 = scmp.eq.s32.totalorder %s30, 0
      %p78 = por %p76, %p77
      %s80 = sadd.s32 %s79, 1
      %p83 = scmp.eq.s32.totalorder %s24, 1
      %p84 = scmp.ne.s32.totalorder %s79, %s81
      %p85 = scmp.eq.s32.totalorder %s24, 0
      %p86 = por %p84, %p85
      %p87 = scmp.ne.s32.totalorder %s79, %s81
      %p88 = scmp.eq.s32.totalorder %s29, 1
      %p89 = por %p87, %p88
      %p90 = scmp.ne.s32.totalorder %s81, %s82
      %p91 = scmp.eq.s32.totalorder %s29, 0
      %p92 = por %p90, %p91
      %p93 = scmp.ne.s32.totalorder %s81, %s82
      %p94 = scmp.eq.s32.totalorder %s30, 1
      %p95 = por %p93, %p94
      %p97 = scmp.ne.s32.totalorder %s82, %s96
      %p98 = scmp.eq.s32.totalorder %s30, 0
      %p99 = por %p97, %p98
      %s101 = sadd.s32 %s100, 1
      %p104 = scmp.eq.s32.totalorder %s24, 1
      %p105 = scmp.ne.s32.totalorder %s100, %s102
      %p106 = scmp.eq.s32.totalorder %s24, 0
      %p107 = por %p105, %p106
      %p108 = scmp.ne.s32.totalorder %s100, %s102
      %p109 = scmp.eq.s32.totalorder %s29, 1
      %p110 = por %p108, %p109
      %p111 = scmp.ne.s32.totalorder %s102, %s103
      %p112 = scmp.eq.s32.totalorder %s29, 0
      %p113 = por %p111, %p112
      %p114 = scmp.ne.s32.totalorder %s102, %s103
      %p115 = scmp.eq.s32.totalorder %s30, 1
      %p116 = por %p114, %p115
      %p118 = scmp.ne.s32.totalorder %s103, %s117
      %p119 = scmp.eq.s32.totalorder %s30, 0
      %p120 = por %p118, %p119
      %s122 = sadd.s32 %s121, 1
      %p125 = scmp.eq.s32.totalorder %s24, 1
      %p126 = scmp.ne.s32.totalorder %s121, %s123
      %p127 = scmp.eq.s32.totalorder %s24, 0
      %p128 = por %p126, %p127
      %p129 = scmp.ne.s32.totalorder %s121, %s123
      %p130 = scmp.eq.s32.totalorder %s29, 1
      %p131 = por %p129, %p130
      %p132 = scmp.ne.s32.totalorder %s123, %s124
      %p133 = scmp.eq.s32.totalorder %s29, 0
      %p134 = por %p132, %p133
      %p135 = scmp.ne.s32.totalorder %s123, %s124
      %p136 = scmp.eq.s32.totalorder %s30, 1
      %p137 = por %p135, %p136
      %p139 = scmp.ne.s32.totalorder %s124, %s138
      %p140 = scmp.eq.s32.totalorder %s30, 0
      %p141 = por %p139, %p140
      %s143 = sadd.s32 %s142, 1
      %p146 = scmp.eq.s32.totalorder %s24, 1
      %p147 = scmp.ne.s32.totalorder %s142, %s144
      %p148 = scmp.eq.s32.totalorder %s24, 0
      %p149 = por %p147, %p148
      %p150 = scmp.ne.s32.totalorder %s142, %s144
      %p151 = scmp.eq.s32.totalorder %s29, 1
      %p152 = por %p150, %p151
      %p153 = scmp.ne.s32.totalorder %s144, %s145
      %p154 = scmp.eq.s32.totalorder %s29, 0
      %p155 = por %p153, %p154
      %p156 = scmp.ne.s32.totalorder %s144, %s145
      %p157 = scmp.eq.s32.totalorder %s30, 1
      %p158 = por %p156, %p157
      %p160 = scmp.ne.s32.totalorder %s145, %s159
      %p161 = scmp.eq.s32.totalorder %s30, 0
      %p162 = por %p160, %p161
      %s164 = sadd.s32 %s163, 1
      %p167 = scmp.eq.s32.totalorder %s24, 1
      %p168 = scmp.ne.s32.totalorder %s163, %s165
      %p169 = scmp.eq.s32.totalorder %s24, 0
      %p170 = por %p168, %p169
      %p171 = scmp.ne.s32.totalorder %s163, %s165
      %p172 = scmp.eq.s32.totalorder %s29, 1
      %p173 = por %p171, %p172
      %p174 = scmp.ne.s32.totalorder %s165, %s166
      %p175 = scmp.eq.s32.totalorder %s29, 0
      %p176 = por %p174, %p175
      %p177 = scmp.ne.s32.totalorder %s165, %s166
      %p178 = scmp.eq.s32.totalorder %s30, 1
      %p179 = por %p177, %p178
      %p181 = scmp.ne.s32.totalorder %s166, %s180
      %p182 = scmp.eq.s32.totalorder %s30, 0
      %p183 = por %p181, %p182
      %s185 = sadd.s32 %s184, 1
      %p188 = scmp.eq.s32.totalorder %s24, 1
      %p189 = scmp.ne.s32.totalorder %s184, %s186
      %p190 = scmp.eq.s32.totalorder %s24, 0
      %p191 = por %p189, %p190
      %p192 = scmp.ne.s32.totalorder %s184, %s186
      %p193 = scmp.eq.s32.totalorder %s29, 1
      %p194 = por %p192, %p193
      %p195 = scmp.ne.s32.totalorder %s186, %s187
      %p196 = scmp.eq.s32.totalorder %s29, 0
      %p197 = por %p195, %p196
      %p198 = scmp.ne.s32.totalorder %s186, %s187
      %p199 = scmp.eq.s32.totalorder %s30, 1
      %p200 = por %p198, %p199
      %p202 = scmp.ne.s32.totalorder %s187, %s201
      %p203 = scmp.eq.s32.totalorder %s30, 0
      %p204 = por %p202, %p203
      %s206 = sadd.s32 %s205, 1
      %p209 = scmp.eq.s32.totalorder %s24, 1
      %p210 = scmp.ne.s32.totalorder %s205, %s207
      %p211 = scmp.eq.s32.totalorder %s24, 0
      %p212 = por %p210, %p211
      %p213 = scmp.ne.s32.totalorder %s205, %s207
      %p214 = scmp.eq.s32.totalorder %s29, 1
      %p215 = por %p213, %p214
      %p216 = scmp.ne.s32.totalorder %s207, %s208
      %p217 = scmp.eq.s32.totalorder %s29, 0
      %p218 = por %p216, %p217
      %p219 = scmp.ne.s32.totalorder %s207, %s208
      %p220 = scmp.eq.s32.totalorder %s30, 1
      %p221 = por %p219, %p220
      %p223 = scmp.ne.s32.totalorder %s208, %s222
      %p224 = scmp.eq.s32.totalorder %s30, 0
      %p225 = por %p223, %p224
      %s227 = sadd.s32 %s226, 1
      %p230 = scmp.eq.s32.totalorder %s24, 1
      %p231 = scmp.ne.s32.totalorder %s226, %s228
      %p232 = scmp.eq.s32.totalorder %s24, 0
      %p233 = por %p231, %p232
      %p234 = scmp.ne.s32.totalorder %s226, %s228
      %p235 = scmp.eq.s32.totalorder %s29, 1
      %p236 = por %p234, %p235
      %p237 = scmp.ne.s32.totalorder %s228, %s229
      %p238 = scmp.eq.s32.totalorder %s29, 0
      %p239 = por %p237, %p238
      %p240 = scmp.ne.s32.totalorder %s228, %s229
      %p241 = scmp.eq.s32.totalorder %s30, 1
      %p242 = por %p240, %p241
      %p244 = scmp.ne.s32.totalorder %s229, %s243
      %p245 = scmp.eq.s32.totalorder %s30, 0
      %p246 = por %p244, %p245
      %s248 = sadd.s32 %s247, 1
      %p251 = scmp.eq.s32.totalorder %s24, 1
      %p252 = scmp.ne.s32.totalorder %s247, %s249
      %p253 = scmp.eq.s32.totalorder %s24, 0
      %p254 = por %p252, %p253
      %p255 = scmp.ne.s32.totalorder %s247, %s249
      %p256 = scmp.eq.s32.totalorder %s29, 1
      %p257 = por %p255, %p256
      %p258 = scmp.ne.s32.totalorder %s249, %s250
      %p259 = scmp.eq.s32.totalorder %s29, 0
      %p260 = por %p258, %p259
      %p261 = scmp.ne.s32.totalorder %s249, %s250
      %p262 = scmp.eq.s32.totalorder %s30, 1
      %p263 = por %p261, %p262
      %p265 = scmp.ne.s32.totalorder %s250, %s264
      %p266 = scmp.eq.s32.totalorder %s30, 0
      %p267 = por %p265, %p266
      %s269 = sadd.s32 %s268, 1
      %p272 = scmp.eq.s32.totalorder %s24, 1
      %p273 = scmp.ne.s32.totalorder %s268, %s270
      %p274 = scmp.eq.s32.totalorder %s24, 0
      %p275 = por %p273, %p274
      %p276 = scmp.ne.s32.totalorder %s268, %s270
      %p277 = scmp.eq.s32.totalorder %s29, 1
      %p278 = por %p276, %p277
      %p279 = scmp.ne.s32.totalorder %s270, %s271
      %p280 = scmp.eq.s32.totalorder %s29, 0
      %p281 = por %p279, %p280
      %p282 = scmp.ne.s32.totalorder %s270, %s271
      %p283 = scmp.eq.s32.totalorder %s30, 1
      %p284 = por %p282, %p283
      %p286 = scmp.ne.s32.totalorder %s271, %s285
      %p287 = scmp.eq.s32.totalorder %s30, 0
      %p288 = por %p286, %p287
      %s290 = sadd.s32 %s289, 1
      %p293 = scmp.eq.s32.totalorder %s24, 1
      %p294 = scmp.ne.s32.totalorder %s289, %s291
      %p295 = scmp.eq.s32.totalorder %s24, 0
      %p296 = por %p294, %p295
      %p297 = scmp.ne.s32.totalorder %s289, %s291
      %p298 = scmp.eq.s32.totalorder %s29, 1
      %p299 = por %p297, %p298
      %p300 = scmp.ne.s32.totalorder %s291, %s292
      %p301 = scmp.eq.s32.totalorder %s29, 0
      %p302 = por %p300, %p301
      %p303 = scmp.ne.s32.totalorder %s291, %s292
      %p304 = scmp.eq.s32.totalorder %s30, 1
      %p305 = por %p303, %p304
      %p307 = scmp.ne.s32.totalorder %s292, %s306
      %p308 = scmp.eq.s32.totalorder %s30, 0
      %p309 = por %p307, %p308
      %s311 = sadd.s32 %s310, 1
      %p314 = scmp.eq.s32.totalorder %s24, 1
      %p315 = scmp.ne.s32.totalorder %s310, %s312
      %p316 = scmp.eq.s32.totalorder %s24, 0
      %p317 = por %p315, %p316
      %p318 = scmp.ne.s32.totalorder %s310, %s312
      %p319 = scmp.eq.s32.totalorder %s29, 1
      %p320 = por %p318, %p319
      %p321 = scmp.ne.s32.totalorder %s312, %s313
      %p322 = scmp.eq.s32.totalorder %s29, 0
      %p323 = por %p321, %p322
      %p324 = scmp.ne.s32.totalorder %s312, %s313
      %p325 = scmp.eq.s32.totalorder %s30, 1
      %p326 = por %p324, %p325
      %p328 = scmp.ne.s32.totalorder %s313, %s327
      %p329 = scmp.eq.s32.totalorder %s30, 0
      %p330 = por %p328, %p329
      %s332 = sadd.s32 %s331, 1
      %p335 = scmp.eq.s32.totalorder %s24, 1
      %p336 = scmp.ne.s32.totalorder %s331, %s333
      %p337 = scmp.eq.s32.totalorder %s24, 0
      %p338 = por %p336, %p337
      %p339 = scmp.ne.s32.totalorder %s331, %s333
      %p340 = scmp.eq.s32.totalorder %s29, 1
      %p341 = por %p339, %p340
      %p342 = scmp.ne.s32.totalorder %s333, %s334
      %p343 = scmp.eq.s32.totalorder %s29, 0
      %p344 = por %p342, %p343
      %p345 = scmp.ne.s32.totalorder %s333, %s334
      %p346 = scmp.eq.s32.totalorder %s30, 1
      %p347 = por %p345, %p346
      %p349 = scmp.ne.s32.totalorder %s334, %s348
      %p350 = scmp.eq.s32.totalorder %s30, 0
      %p351 = por %p349, %p350
      %s352 = ssub.s32 %s24, %s31
      %p353 = scmp.eq.s32.totalorder %s352, 0
      %s355 = sadd.s32 %s354, 1
      %s356 = scalar_select %p353, %s354, %s355
      %p359 = pneg %p353
      %p360 = scmp.eq.s32.totalorder %s24, 1
      %p361 = por %p359, %p360
      %p362 = scmp.ne.s32.totalorder %s354, %s357
      %p363 = scmp.eq.s32.totalorder %s24, 0
      %p364 = por %p362, %p363
      %p365 = scmp.ne.s32.totalorder %s354, %s357
      %p366 = scmp.eq.s32.totalorder %s29, 1
      %p367 = por %p365, %p366
      %p368 = scmp.ne.s32.totalorder %s357, %s358
      %p369 = scmp.eq.s32.totalorder %s29, 0
      %p370 = por %p368, %p369
      %p371 = scmp.ne.s32.totalorder %s357, %s358
      %p372 = scmp.eq.s32.totalorder %s30, 1
      %p373 = por %p371, %p372
      %p375 = scmp.ne.s32.totalorder %s358, %s374
      %p376 = scmp.eq.s32.totalorder %s30, 0
      %p377 = por %p375, %p376
      %p378 = scmp.le.s32.totalorder 1, %s24
      %p379 = scmp.lt.s32.totalorder %s24, 3
      %p380 = pnand %p378, %p379
      %p381 = pneg %p380
      // Predicated region
      $region9: #{tpu_custom_call.1} parent=5 // pred_check
        _
      $region10: #{tpu_custom_call.1} parent=5 // pred_check_branch
        %383 = sbr.rel (%p380) target = $region12
      $region11: #{tpu_custom_call.1} parent=5 // pred_region
        %s384 = ssub.s32 %s24, 1
        // Predicated region
        $region13: #{tpu_custom_call.1} parent=11 // pred_check
          %p385 = pneg %p71
        $region14: #{tpu_custom_call.1} parent=11 // pred_check_branch
          %387 = sbr.rel (%p385) target = $region16
        $region15: #{tpu_custom_call.1} parent=11 // pred_region
          _
        $region16: #{tpu_custom_call.1} parent=11 // pred_fallthru
          _
        // Predicated region
        $region17: #{tpu_custom_call.1} parent=11 // pred_check
          %p388 = pneg %p92
        $region18: #{tpu_custom_call.1} parent=11 // pred_check_branch
          %390 = sbr.rel (%p388) target = $region20
        $region19: #{tpu_custom_call.1} parent=11 // pred_region
          _
        $region20: #{tpu_custom_call.1} parent=11 // pred_fallthru
          _
        // Predicated region
        $region21: #{tpu_custom_call.1} parent=11 // pred_check
          %p391 = pneg %p113
        $region22: #{tpu_custom_call.1} parent=11 // pred_check_branch
          %393 = sbr.rel (%p391) target = $region24
        $region23: #{tpu_custom_call.1} parent=11 // pred_region
          _
        $region24: #{tpu_custom_call.1} parent=11 // pred_fallthru
          _
        // Predicated region
        $region25: #{tpu_custom_call.1} parent=11 // pred_check
          %p394 = pneg %p134
        $region26: #{tpu_custom_call.1} parent=11 // pred_check_branch
          %396 = sbr.rel (%p394) target = $region28
        $region27: #{tpu_custom_call.1} parent=11 // pred_region
          _
        $region28: #{tpu_custom_call.1} parent=11 // pred_fallthru
          _
        // Predicated region
        $region29: #{tpu_custom_call.1} parent=11 // pred_check
          %p397 = pneg %p155
        $region30: #{tpu_custom_call.1} parent=11 // pred_check_branch
          %399 = sbr.rel (%p397) target = $region32
        $region31: #{tpu_custom_call.1} parent=11 // pred_region
          _
        $region32: #{tpu_custom_call.1} parent=11 // pred_fallthru
          _
        // Predicated region
        $region33: #{tpu_custom_call.1} parent=11 // pred_check
          %p400 = pneg %p176
        $region34: #{tpu_custom_call.1} parent=11 // pred_check_branch
          %402 = sbr.rel (%p400) target = $region36
        $region35: #{tpu_custom_call.1} parent=11 // pred_region
          _
        $region36: #{tpu_custom_call.1} parent=11 // pred_fallthru
          _
        // Predicated region
        $region37: #{tpu_custom_call.1} parent=11 // pred_check
          %p403 = pneg %p197
        $region38: #{tpu_custom_call.1} parent=11 // pred_check_branch
          %405 = sbr.rel (%p403) target = $region40
        $region39: #{tpu_custom_call.1} parent=11 // pred_region
          _
        $region40: #{tpu_custom_call.1} parent=11 // pred_fallthru
          _
        // Predicated region
        $region41: #{tpu_custom_call.1} parent=11 // pred_check
          %p406 = pneg %p218
        $region42: #{tpu_custom_call.1} parent=11 // pred_check_branch
          %408 = sbr.rel (%p406) target = $region44
        $region43: #{tpu_custom_call.1} parent=11 // pred_region
          _
        $region44: #{tpu_custom_call.1} parent=11 // pred_fallthru
          _
        // Predicated region
        $region45: #{tpu_custom_call.1} parent=11 // pred_check
          %p409 = pneg %p239
        $region46: #{tpu_custom_call.1} parent=11 // pred_check_branch
          %411 = sbr.rel (%p409) target = $region48
        $region47: #{tpu_custom_call.1} parent=11 // pred_region
          _
        $region48: #{tpu_custom_call.1} parent=11 // pred_fallthru
          _
        // Predicated region
        $region49: #{tpu_custom_call.1} parent=11 // pred_check
          %p412 = pneg %p260
        $region50: #{tpu_custom_call.1} parent=11 // pred_check_branch
          %414 = sbr.rel (%p412) target = $region52
        $region51: #{tpu_custom_call.1} parent=11 // pred_region
          _
        $region52: #{tpu_custom_call.1} parent=11 // pred_fallthru
          _
        // Predicated region
        $region53: #{tpu_custom_call.1} parent=11 // pred_check
          %p415 = pneg %p281
        $region54: #{tpu_custom_call.1} parent=11 // pred_check_branch
          %417 = sbr.rel (%p415) target = $region56
        $region55: #{tpu_custom_call.1} parent=11 // pred_region
          _
        $region56: #{tpu_custom_call.1} parent=11 // pred_fallthru
          _
        // Predicated region
        $region57: #{tpu_custom_call.1} parent=11 // pred_check
          %p418 = pneg %p302
        $region58: #{tpu_custom_call.1} parent=11 // pred_check_branch
          %420 = sbr.rel (%p418) target = $region60
        $region59: #{tpu_custom_call.1} parent=11 // pred_region
          _
        $region60: #{tpu_custom_call.1} parent=11 // pred_fallthru
          _
        // Predicated region
        $region61: #{tpu_custom_call.1} parent=11 // pred_check
          %p421 = pneg %p323
        $region62: #{tpu_custom_call.1} parent=11 // pred_check_branch
          %423 = sbr.rel (%p421) target = $region64
        $region63: #{tpu_custom_call.1} parent=11 // pred_region
          _
        $region64: #{tpu_custom_call.1} parent=11 // pred_fallthru
          _
        // Predicated region
        $region65: #{tpu_custom_call.1} parent=11 // pred_check
          %p424 = pneg %p344
        $region66: #{tpu_custom_call.1} parent=11 // pred_check_branch
          %426 = sbr.rel (%p424) target = $region68
        $region67: #{tpu_custom_call.1} parent=11 // pred_region
          _
        $region68: #{tpu_custom_call.1} parent=11 // pred_fallthru
          _
      $region12: #{tpu_custom_call.1} parent=5 // pred_fallthru
        _
      %p427 = scmp.lt.s32.totalorder %s24, 2
      // Predicated region
      $region69: #{tpu_custom_call.1} parent=5 // pred_check
        %p428 = pneg %p427
      $region70: #{tpu_custom_call.1} parent=5 // pred_check_branch
        %430 = sbr.rel (%p428) target = $region72
      $region71: #{tpu_custom_call.1} parent=5 // pred_region
        // Predicated region
        $region73: #{tpu_custom_call.1} parent=71 // pred_check
          %p431 = pneg %p44
        $region74: #{tpu_custom_call.1} parent=71 // pred_check_branch
          %433 = sbr.rel (%p431) target = $region76
        $region75: #{tpu_custom_call.1} parent=71 // pred_region
          %p434 = scmp.lt.s32.totalorder %s24, 1
          %s435 = scalar_select %p434, %s24, 1
          %s436 = smul.addr %s435, 4
          %s437 = smul.addr %s436, 8
          %s438 = scalar_lea.vmem %s0, %s437
        $region76: #{tpu_custom_call.1} parent=71 // pred_fallthru
          _
      $region72: #{tpu_custom_call.1} parent=5 // pred_fallthru
        _
      %p439 = scmp.le.s32.totalorder 1, %s24
      %p440 = scmp.lt.s32.totalorder %s24, 3
      %p441 = pnand %p439, %p440
      %p442 = pneg %p441
      // Predicated region
      $region77: #{tpu_custom_call.1} parent=5 // pred_check
        _
      $region78: #{tpu_custom_call.1} parent=5 // pred_check_branch
        %444 = sbr.rel (%p441) target = $region80
      $region79: #{tpu_custom_call.1} parent=5 // pred_region
        %s445 = ssub.s32 %s24, 1
        %p446 = scmp.lt.s32.totalorder %s29, 1
        %s447 = scalar_select %p446, %s29, 1
        %s448 = smul.addr %s447, 4
        %s449 = smul.addr %s448, 8
        %s450 = scalar_lea.vmem %s0, %s449
        %p451 = pneg %p50
        %p452 = pneg %p47
        %p453 = pneg %p71
        %p454 = pneg %p68
        %p455 = pneg %p92
        %p456 = pneg %p89
        %p457 = pneg %p113
        %p458 = pneg %p110
        %p459 = pneg %p134
        %p460 = pneg %p131
        %p461 = pneg %p155
        %p462 = pneg %p152
        %p463 = pneg %p176
        %p464 = pneg %p173
        %p465 = pneg %p197
        %p466 = pneg %p194
        %p467 = pneg %p218
        %p468 = pneg %p215
        %p469 = pneg %p239
        %p470 = pneg %p236
        %p471 = pneg %p260
        %p472 = pneg %p257
        %p473 = pneg %p281
        %p474 = pneg %p278
        %p475 = pneg %p302
        %p476 = pneg %p299
        %p477 = pneg %p323
        %p478 = pneg %p320
        %p479 = pneg %p344
        %p480 = pneg %p341
        %p481 = pneg %p370
        %p482 = pneg %p367
        %s483 = sand.u32 %s357, 1
        %s484 = scalar_lea.sflag [#allocation3], %s483
        %s485 = sand.u32 %s357, 1
        %s486 = smul.addr %s485, 16
        %s487 = scalar_lea.vmem [#allocation2], %s486
        %p488 = scmp.lt.s32.totalorder %s29, 1
        %s489 = scalar_select %p488, %s29, 1
        %s490 = smul.addr %s489, 4
        %s491 = smul.addr %s490, 8
        %s492 = scalar_lea.vmem %s0, %s491
        %v494 = vld [vmem:[%s1] sm:$0xff]
        %v495 = vld [vmem:[%s1 + $0x8] sm:$0xff]
        %v496 = vld [vmem:[%s1 + $0x10] sm:$0x3f]
        %v497 = vld [vmem:[%s2] sm:$0x3]
        %v498 = vld [vmem:[%s492] sm:$0xff]
        %v499 = vld [vmem:[%s492 + $0x8] sm:$0xff]
        %v500 = vld [vmem:[%s492 + $0x10] sm:$0xff]
        %v501 = vld [vmem:[%s492 + $0x18] sm:$0xff]
        %502 = vxpose.xlu0.b32.start [1/16] %v498, 128
        %503 = vxpose.xlu0.b32.cont [2/16] %v499, 128
        %504 = vxpose.xlu0.b32.cont [3/16] %v500, 128
        %505 = vxpose.xlu0.b32.cont [4/16] %v501, 128
        %506 = vxpose.xlu0.b32.cont [5/16] 0.0, 128
        %507 = vxpose.xlu0.b32.cont [6/16] 0.0, 128
        %508 = vxpose.xlu0.b32.cont [7/16] 0.0, 128
        %509 = vxpose.xlu0.b32.cont [8/16] 0.0, 128
        %510 = vxpose.xlu0.b32.cont [9/16] 0.0, 128
        %511 = vxpose.xlu0.b32.cont [10/16] 0.0, 128
        %512 = vxpose.xlu0.b32.cont [11/16] 0.0, 128
        %513 = vxpose.xlu0.b32.cont [12/16] 0.0, 128
        %514 = vxpose.xlu0.b32.cont [13/16] 0.0, 128
        %515 = vxpose.xlu0.b32.cont [14/16] 0.0, 128
        %516 = vxpose.xlu0.b32.cont [15/16] 0.0, 128
        %517 = vxpose.xlu0.b32.end [16/16] 0.0, 128
        %v518 = vpop.trf.xlu0
        %v519 = vpop.trf.xlu0
        %v520 = vpop.trf.xlu0
        %v521 = vpop.trf.xlu0
        %v522 = vpop.trf.xlu0
        %v523 = vpop.trf.xlu0
        %v524 = vpop.trf.xlu0
        %v525 = vpop.trf.xlu0
        %v526 = vpop.trf.xlu0
        %v527 = vpop.trf.xlu0
        %v528 = vpop.trf.xlu0
        %v529 = vpop.trf.xlu0
        %v530 = vpop.trf.xlu0
        %v531 = vpop.trf.xlu0
        %v532 = vpop.trf.xlu0
        %v533 = vpop.trf.xlu0
        %v534 = vmul.f32 %v518, 0.5
        %v535 = vmul.f32 %v519, 0.5
        %vm536 = vcmask 261120
        %v537 = vsel %vm536, %v518, 0.0
        %538 = vadd.xlane.f32.xlu0 %v537
        %v539 = vpop.xlane.xlu0 %538
        %v540 = vsel %vm536, %v519, 0.0
        %541 = vadd.xlane.f32.xlu0 %v540
        %v542 = vpop.xlane.xlu0 %541
        %v543 = vrcp.pop 32.0
        %v544 = vmul.f32 %v539, %v543
        %v545 = vmul.f32 %v542, %v543
        %v546 = vsub.f32 %v518, %v544
        %v547 = vsub.f32 %v519, %v545
        %v548 = vmul.f32 %v546, %v546
        %v549 = vmul.f32 %v547, %v547
        %v550 = vsel %vm536, %v548, 0.0
        %551 = vadd.xlane.f32.xlu0 %v550
        %v552 = vpop.xlane.xlu0 %551
        %v553 = vsel %vm536, %v549, 0.0
        %554 = vadd.xlane.f32.xlu0 %v553
        %v555 = vpop.xlane.xlu0 %554
        %v556 = vmul.f32 %v552, %v543
        %v557 = vmul.f32 %v555, %v543
        %v558 = vadd.f32 %v556, 1e-05
        %v559 = vadd.f32 %v557, 1e-05
        %v560 = vrsqrt.pop %v558
        %v561 = vrsqrt.pop %v559
        %v562 = vmul.f32 %v546, %v560
        %v563 = vmul.f32 %v547, %v561
        %v564 = vlaneseq
        %v565 = vshrl.u32 %v564, 7
        %v566 = vsub.s32 0, %v565
        %v567 = vrot.slane %v494, %v566
        %v568 = vmul.f32 %v562, %v567
        %v569 = vmul.f32 %v563, %v567
        %v570 = vlaneseq
        %v571 = vshrl.u32 %v570, 7
        %v572 = vsub.s32 1, %v571
        %v573 = vrot.slane %v494, %v572
        %v574 = vadd.f32 %v568, %v573
        %v575 = vadd.f32 %v569, %v573
        %v576 = vpack.c.bf16 %v575, %v574
        %v577 = vld [vmem:[%s3] sm:$0xf]
        %v578 = vld [vmem:[%s3 + $0x4] sm:$0xf]
        %v579 = vld [vmem:[%s3 + $0x8] sm:$0xf]
        %v580 = vld [vmem:[%s3 + $0xc] sm:$0xf]
        %v581 = vlaneseq
        %v582 = vshrl.u32 %v581, 7
        %v583 = vsub.s32 0, %v582
        %v584 = vrot.slane %v497, %v583
        %v589 = vunpack.c.l.b16 %v577
        %v590 = vunpack.c.l.b16 %v578
        %v591 = vunpack.c.l.b16 %v579
        %v592 = vunpack.c.l.b16 %v580
        %v593 = vpack.c.b16 %v590, %v589
        %v594 = vpack.c.b16 %v592, %v591
        %v598 = vsel %vm536, %v576, 0
        %600 = vmatprep.subr.bf16.mxu0 0
        %601 = vmatpush1.bf16.msra.mxu0 %v593
        %602 = vmatprep.subr.bf16.mxu0 0
        %603 = vmatpush1.bf16.msra.mxu0 %v594
        %604 = vmatprep.subr.bf16.mxu0 0
        %605 = vmatpush1.bf16.msra.mxu0 0
        %606 = vmatprep.subr.bf16.mxu0 0
        %607 = vmatpush1.bf16.msra.mxu0 0
        %608 = vmatprep.subr.bf16.mxu0 0
        %609 = vmatpush1.bf16.msra.mxu0 0
        %610 = vmatprep.subr.bf16.mxu0 0
        %611 = vmatpush1.bf16.msra.mxu0 0
        %612 = vmatprep.subr.bf16.mxu0 0
        %613 = vmatpush1.bf16.msra.mxu0 0
        %614 = vmatprep.subr.bf16.mxu0 0
        %615 = vmatpush1.bf16.msra.mxu0 0
        %616 = vmatprep.subr.bf16.mxu0 0
        %617 = vmatpush1.bf16.msra.mxu0 0
        %618 = vmatprep.subr.bf16.mxu0 0
        %619 = vmatpush1.bf16.msra.mxu0 0
        %620 = vmatprep.subr.bf16.mxu0 0
        %621 = vmatpush1.bf16.msra.mxu0 0
        %622 = vmatprep.subr.bf16.mxu0 0
        %623 = vmatpush1.bf16.msra.mxu0 0
        %624 = vmatprep.subr.bf16.mxu0 0
        %625 = vmatpush1.bf16.msra.mxu0 0
        %626 = vmatprep.subr.bf16.mxu0 0
        %627 = vmatpush1.bf16.msra.mxu0 0
        %628 = vmatprep.subr.bf16.mxu0 0
        %629 = vmatpush1.bf16.msra.mxu0 0
        %630 = vmatprep.subr.bf16.mxu0 0
        %631 = vmatpush1.bf16.msra.mxu0 0
        %632 = vmatprep.mubr.bf16.mxu0 0
        %633 = vmatmul.mubr.bf16.gmra.mrb[0].mxu0 %v598
        %v634 = vpop.f32.mrb[0].mxu0
        %v635 = vadd.f32 %v584, %v634
        %v636 = vpop.f32.mrb[0].mxu0
        %v637 = vpop.f32.mrb[0].mxu0
        %v638 = vadd.f32 %v584, %v637
        %v639 = vpop.f32.mrb[0].mxu0
        %640 = vdwg.mxu0
        %v641 = vxor.u32 %v635, 2147483648
        %v642 = vxor.u32 %v638, 2147483648
        %v643 = vmul.f32 %v641, 1.442695
        %v644 = vpow.pop %v643
        %v645 = vmul.f32 %v642, 1.442695
        %v646 = vpow.pop %v645
        %v647 = vadd.f32 %v644, 1.0
        %v648 = vadd.f32 %v646, 1.0
        %v649 = vrcp.pop %v647
        %v650 = vmul.f32 1.0, %v649
        %v651 = vrcp.pop %v648
        %v652 = vmul.f32 1.0, %v651
        %v653 = vmul.f32 %v635, %v650
        %v654 = vmul.f32 %v638, %v652
        %v655 = vpack.c.bf16 %v654, %v653
        %v656 = vld [vmem:[%s4] sm:$0xf]
        %v657 = vld [vmem:[%s4 + $0x4] sm:$0xf]
        %v658 = vld [vmem:[%s4 + $0x8] sm:$0xf]
        %v659 = vld [vmem:[%s4 + $0xc] sm:$0xf]
        %v660 = vld [vmem:[%s4 + $0x10] sm:$0xf]
        %v661 = vld [vmem:[%s4 + $0x14] sm:$0xf]
        %v662 = vld [vmem:[%s4 + $0x18] sm:$0xf]
        %v663 = vld [vmem:[%s4 + $0x1c] sm:$0xf]
        %v664 = vlaneseq
        %v665 = vshrl.u32 %v664, 7
        %v666 = vsub.s32 2, %v665
        %v667 = vrot.slane %v494, %v666
        %v676 = vunpack.c.l.b16 %v656
        %v677 = vunpack.c.l.b16 %v657
        %v678 = vunpack.c.l.b16 %v658
        %v679 = vunpack.c.l.b16 %v659
        %v680 = vunpack.c.l.b16 %v660
        %v681 = vunpack.c.l.b16 %v661
        %v682 = vunpack.c.l.b16 %v662
        %v683 = vunpack.c.l.b16 %v663
        %v684 = vpack.c.b16 %v677, %v676
        %v685 = vpack.c.b16 %v679, %v678
        %v686 = vpack.c.b16 %v681, %v680
        %v687 = vpack.c.b16 %v683, %v682
        %vm692 = vcmask 523264
        %v694 = vsel %vm692, %v655, 0
        %696 = vmatprep.subr.bf16.mxu0 0
        %697 = vmatpush1.bf16.msra.mxu0 %v684
        %698 = vmatprep.subr.bf16.mxu0 0
        %699 = vmatpush1.bf16.msra.mxu0 %v685
        %700 = vmatprep.subr.bf16.mxu0 0
        %701 = vmatpush1.bf16.msra.mxu0 %v686
        %702 = vmatprep.subr.bf16.mxu0 0
        %703 = vmatpush1.bf16.msra.mxu0 %v687
        %704 = vmatprep.subr.bf16.mxu0 0
        %705 = vmatpush1.bf16.msra.mxu0 0
        %706 = vmatprep.subr.bf16.mxu0 0
        %707 = vmatpush1.bf16.msra.mxu0 0
        %708 = vmatprep.subr.bf16.mxu0 0
        %709 = vmatpush1.bf16.msra.mxu0 0
        %710 = vmatprep.subr.bf16.mxu0 0
        %711 = vmatpush1.bf16.msra.mxu0 0
        %712 = vmatprep.subr.bf16.mxu0 0
        %713 = vmatpush1.bf16.msra.mxu0 0
        %714 = vmatprep.subr.bf16.mxu0 0
        %715 = vmatpush1.bf16.msra.mxu0 0
        %716 = vmatprep.subr.bf16.mxu0 0
        %717 = vmatpush1.bf16.msra.mxu0 0
        %718 = vmatprep.subr.bf16.mxu0 0
        %719 = vmatpush1.bf16.msra.mxu0 0
        %720 = vmatprep.subr.bf16.mxu0 0
        %721 = vmatpush1.bf16.msra.mxu0 0
        %722 = vmatprep.subr.bf16.mxu0 0
        %723 = vmatpush1.bf16.msra.mxu0 0
        %724 = vmatprep.subr.bf16.mxu0 0
        %725 = vmatpush1.bf16.msra.mxu0 0
        %726 = vmatprep.subr.bf16.mxu0 0
        %727 = vmatpush1.bf16.msra.mxu0 0
        %728 = vmatprep.mubr.bf16.mxu0 0
        %729 = vmatmul.mubr.bf16.gmra.mrb[0].mxu0 %v694
        %v730 = vpop.f32.mrb[0].mxu0
        %v731 = vadd.f32 %v667, %v730
        %v732 = vpop.f32.mrb[0].mxu0
        %v733 = vpop.f32.mrb[0].mxu0
        %v734 = vadd.f32 %v667, %v733
        %v735 = vpop.f32.mrb[0].mxu0
        %736 = vdwg.mxu0
        %v737 = vadd.f32 %v534, %v731
        %v738 = vadd.f32 %v535, %v734
        %v739 = vsel %vm536, %v737, 0.0
        %740 = vadd.xlane.f32.xlu0 %v739
        %v741 = vpop.xlane.xlu0 %740
        %v742 = vsel %vm536, %v738, 0.0
        %743 = vadd.xlane.f32.xlu0 %v742
        %v744 = vpop.xlane.xlu0 %743
        %v745 = vmul.f32 %v741, %v543
        %v746 = vmul.f32 %v744, %v543
        %v747 = vsub.f32 %v737, %v745
        %v748 = vsub.f32 %v738, %v746
        %v749 = vmul.f32 %v747, %v747
        %v750 = vmul.f32 %v748, %v748
        %v751 = vsel %vm536, %v749, 0.0
        %752 = vadd.xlane.f32.xlu0 %v751
        %v753 = vpop.xlane.xlu0 %752
        %v754 = vsel %vm536, %v750, 0.0
        %755 = vadd.xlane.f32.xlu0 %v754
        %v756 = vpop.xlane.xlu0 %755
        %v757 = vmul.f32 %v753, %v543
        %v758 = vmul.f32 %v756, %v543
        %v759 = vadd.f32 %v757, 1e-05
        %v760 = vadd.f32 %v758, 1e-05
        %v761 = vrsqrt.pop %v759
        %v762 = vrsqrt.pop %v760
        %v763 = vmul.f32 %v747, %v761
        %v764 = vmul.f32 %v748, %v762
        %v765 = vlaneseq
        %v766 = vshrl.u32 %v765, 7
        %v767 = vsub.s32 3, %v766
        %v768 = vrot.slane %v494, %v767
        %v769 = vmul.f32 %v763, %v768
        %v770 = vmul.f32 %v764, %v768
        %v771 = vlaneseq
        %v772 = vshrl.u32 %v771, 7
        %v773 = vsub.s32 4, %v772
        %v774 = vrot.slane %v494, %v773
        %v775 = vadd.f32 %v769, %v774
        %v776 = vadd.f32 %v770, %v774
        %v777 = vpack.c.bf16 %v776, %v775
        %v778 = vld [vmem:[%s5] sm:$0xf]
        %v779 = vld [vmem:[%s5 + $0x4] sm:$0xf]
        %v780 = vld [vmem:[%s5 + $0x8] sm:$0xf]
        %v781 = vld [vmem:[%s5 + $0xc] sm:$0xf]
        %v782 = vlaneseq
        %v783 = vshrl.u32 %v782, 7
        %v784 = vsub.s32 5, %v783
        %v785 = vrot.slane %v494, %v784
        %v790 = vunpack.c.l.b16 %v778
        %v791 = vunpack.c.l.b16 %v779
        %v792 = vunpack.c.l.b16 %v780
        %v793 = vunpack.c.l.b16 %v781
        %v794 = vpack.c.b16 %v791, %v790
        %v795 = vpack.c.b16 %v793, %v792
        %v799 = vsel %vm536, %v777, 0
        %801 = vmatprep.subr.bf16.mxu0 0
        %802 = vmatpush1.bf16.msra.mxu0 %v794
        %803 = vmatprep.subr.bf16.mxu0 0
        %804 = vmatpush1.bf16.msra.mxu0 %v795
        %805 = vmatprep.subr.bf16.mxu0 0
        %806 = vmatpush1.bf16.msra.mxu0 0
        %807 = vmatprep.subr.bf16.mxu0 0
        %808 = vmatpush1.bf16.msra.mxu0 0
        %809 = vmatprep.subr.bf16.mxu0 0
        %810 = vmatpush1.bf16.msra.mxu0 0
        %811 = vmatprep.subr.bf16.mxu0 0
        %812 = vmatpush1.bf16.msra.mxu0 0
        %813 = vmatprep.subr.bf16.mxu0 0
        %814 = vmatpush1.bf16.msra.mxu0 0
        %815 = vmatprep.subr.bf16.mxu0 0
        %816 = vmatpush1.bf16.msra.mxu0 0
        %817 = vmatprep.subr.bf16.mxu0 0
        %818 = vmatpush1.bf16.msra.mxu0 0
        %819 = vmatprep.subr.bf16.mxu0 0
        %820 = vmatpush1.bf16.msra.mxu0 0
        %821 = vmatprep.subr.bf16.mxu0 0
        %822 = vmatpush1.bf16.msra.mxu0 0
        %823 = vmatprep.subr.bf16.mxu0 0
        %824 = vmatpush1.bf16.msra.mxu0 0
        %825 = vmatprep.subr.bf16.mxu0 0
        %826 = vmatpush1.bf16.msra.mxu0 0
        %827 = vmatprep.subr.bf16.mxu0 0
        %828 = vmatpush1.bf16.msra.mxu0 0
        %829 = vmatprep.subr.bf16.mxu0 0
        %830 = vmatpush1.bf16.msra.mxu0 0
        %831 = vmatprep.subr.bf16.mxu0 0
        %832 = vmatpush1.bf16.msra.mxu0 0
        %833 = vmatprep.mubr.bf16.mxu0 0
        %834 = vmatmul.mubr.bf16.gmra.mrb[0].mxu0 %v799
        %v835 = vpop.f32.mrb[0].mxu0
        %v836 = vadd.f32 %v785, %v835
        %v837 = vpop.f32.mrb[0].mxu0
        %v838 = vpop.f32.mrb[0].mxu0
        %v839 = vadd.f32 %v785, %v838
        %v840 = vpop.f32.mrb[0].mxu0
        %841 = vdwg.mxu0
        %v842 = vld [vmem:[%s6] sm:$0xf]
        %v843 = vld [vmem:[%s6 + $0x4] sm:$0xf]
        %v844 = vld [vmem:[%s6 + $0x8] sm:$0xf]
        %v845 = vld [vmem:[%s6 + $0xc] sm:$0xf]
        %v846 = vlaneseq
        %v847 = vshrl.u32 %v846, 7
        %v848 = vsub.s32 6, %v847
        %v849 = vrot.slane %v494, %v848
        %v854 = vunpack.c.l.b16 %v842
        %v855 = vunpack.c.l.b16 %v843
        %v856 = vunpack.c.l.b16 %v844
        %v857 = vunpack.c.l.b16 %v845
        %v858 = vpack.c.b16 %v855, %v854
        %v859 = vpack.c.b16 %v857, %v856
        %862 = vmatprep.subr.bf16.mxu0 0
        %863 = vmatpush1.bf16.msra.mxu0 %v858
        %864 = vmatprep.subr.bf16.mxu0 0
        %865 = vmatpush1.bf16.msra.mxu0 %v859
        %866 = vmatprep.subr.bf16.mxu0 0
        %867 = vmatpush1.bf16.msra.mxu0 0
        %868 = vmatprep.subr.bf16.mxu0 0
        %869 = vmatpush1.bf16.msra.mxu0 0
        %870 = vmatprep.subr.bf16.mxu0 0
        %871 = vmatpush1.bf16.msra.mxu0 0
        %872 = vmatprep.subr.bf16.mxu0 0
        %873 = vmatpush1.bf16.msra.mxu0 0
        %874 = vmatprep.subr.bf16.mxu0 0
        %875 = vmatpush1.bf16.msra.mxu0 0
        %876 = vmatprep.subr.bf16.mxu0 0
        %877 = vmatpush1.bf16.msra.mxu0 0
        %878 = vmatprep.subr.bf16.mxu0 0
        %879 = vmatpush1.bf16.msra.mxu0 0
        %880 = vmatprep.subr.bf16.mxu0 0
        %881 = vmatpush1.bf16.msra.mxu0 0
        %882 = vmatprep.subr.bf16.mxu0 0
        %883 = vmatpush1.bf16.msra.mxu0 0
        %884 = vmatprep.subr.bf16.mxu0 0
        %885 = vmatpush1.bf16.msra.mxu0 0
        %886 = vmatprep.subr.bf16.mxu0 0
        %887 = vmatpush1.bf16.msra.mxu0 0
        %888 = vmatprep.subr.bf16.mxu0 0
        %889 = vmatpush1.bf16.msra.mxu0 0
        %890 = vmatprep.subr.bf16.mxu0 0
        %891 = vmatpush1.bf16.msra.mxu0 0
        %892 = vmatprep.subr.bf16.mxu0 0
        %893 = vmatpush1.bf16.msra.mxu0 0
        %894 = vmatprep.mubr.bf16.mxu0 0
        %895 = vmatmul.mubr.bf16.gmra.mrb[0].mxu0 %v799
        %v896 = vpop.f32.mrb[0].mxu0
        %v897 = vadd.f32 %v849, %v896
        %v898 = vpop.f32.mrb[0].mxu0
        %v899 = vpop.f32.mrb[0].mxu0
        %v900 = vadd.f32 %v849, %v899
        %v901 = vpop.f32.mrb[0].mxu0
        %902 = vdwg.mxu0
        %v903 = vld [vmem:[%s7] sm:$0xf]
        %v904 = vld [vmem:[%s7 + $0x4] sm:$0xf]
        %v905 = vld [vmem:[%s7 + $0x8] sm:$0xf]
        %v906 = vld [vmem:[%s7 + $0xc] sm:$0xf]
        %v907 = vlaneseq
        %v908 = vshrl.u32 %v907, 7
        %v909 = vsub.s32 7, %v908
        %v910 = vrot.slane %v494, %v909
        %v915 = vunpack.c.l.b16 %v903
        %v916 = vunpack.c.l.b16 %v904
        %v917 = vunpack.c.l.b16 %v905
        %v918 = vunpack.c.l.b16 %v906
        %v919 = vpack.c.b16 %v916, %v915
        %v920 = vpack.c.b16 %v918, %v917
        %923 = vmatprep.subr.bf16.mxu0 0
        %924 = vmatpush1.bf16.msra.mxu0 %v919
        %925 = vmatprep.subr.bf16.mxu0 0
        %926 = vmatpush1.bf16.msra.mxu0 %v920
        %927 = vmatprep.subr.bf16.mxu0 0
        %928 = vmatpush1.bf16.msra.mxu0 0
        %929 = vmatprep.subr.bf16.mxu0 0
        %930 = vmatpush1.bf16.msra.mxu0 0
        %931 = vmatprep.subr.bf16.mxu0 0
        %932 = vmatpush1.bf16.msra.mxu0 0
        %933 = vmatprep.subr.bf16.mxu0 0
        %934 = vmatpush1.bf16.msra.mxu0 0
        %935 = vmatprep.subr.bf16.mxu0 0
        %936 = vmatpush1.bf16.msra.mxu0 0
        %937 = vmatprep.subr.bf16.mxu0 0
        %938 = vmatpush1.bf16.msra.mxu0 0
        %939 = vmatprep.subr.bf16.mxu0 0
        %940 = vmatpush1.bf16.msra.mxu0 0
        %941 = vmatprep.subr.bf16.mxu0 0
        %942 = vmatpush1.bf16.msra.mxu0 0
        %943 = vmatprep.subr.bf16.mxu0 0
        %944 = vmatpush1.bf16.msra.mxu0 0
        %945 = vmatprep.subr.bf16.mxu0 0
        %946 = vmatpush1.bf16.msra.mxu0 0
        %947 = vmatprep.subr.bf16.mxu0 0
        %948 = vmatpush1.bf16.msra.mxu0 0
        %949 = vmatprep.subr.bf16.mxu0 0
        %950 = vmatpush1.bf16.msra.mxu0 0
        %951 = vmatprep.subr.bf16.mxu0 0
        %952 = vmatpush1.bf16.msra.mxu0 0
        %953 = vmatprep.subr.bf16.mxu0 0
        %954 = vmatpush1.bf16.msra.mxu0 0
        %955 = vmatprep.mubr.bf16.mxu0 0
        %956 = vmatmul.mubr.bf16.gmra.mrb[0].mxu0 %v799
        %v957 = vpop.f32.mrb[0].mxu0
        %v958 = vadd.f32 %v910, %v957
        %v959 = vpop.f32.mrb[0].mxu0
        %v960 = vpop.f32.mrb[0].mxu0
        %v961 = vadd.f32 %v910, %v960
        %v962 = vpop.f32.mrb[0].mxu0
        %963 = vdwg.mxu0
        %v964 = vpack.c.bf16 %v839, %v836
        %v965 = vpack.c.bf16 %v900, %v897
        %v966 = vpack.c.bf16 %v961, %v958
        %vm967 = vcmask 64512
        %v969 = vsel %vm967, %v964, 0
        %v972 = vsel %vm967, %v965, 0
        %974 = vmatprep.subr.bf16.mxu0 0
        %975 = vmatpush1.bf16.xpose.msra.mxu0 %v972
        %976 = vmatprep.subr.bf16.mxu0 0
        %977 = vmatpush1.bf16.xpose.msra.mxu0 0
        %978 = vmatprep.subr.bf16.mxu0 0
        %979 = vmatpush1.bf16.xpose.msra.mxu0 0
        %980 = vmatprep.subr.bf16.mxu0 0
        %981 = vmatpush1.bf16.xpose.msra.mxu0 0
        %982 = vmatprep.subr.bf16.mxu0 0
        %983 = vmatpush1.bf16.xpose.msra.mxu0 0
        %984 = vmatprep.subr.bf16.mxu0 0
        %985 = vmatpush1.bf16.xpose.msra.mxu0 0
        %986 = vmatprep.subr.bf16.mxu0 0
        %987 = vmatpush1.bf16.xpose.msra.mxu0 0
        %988 = vmatprep.subr.bf16.mxu0 0
        %989 = vmatpush1.bf16.xpose.msra.mxu0 0
        %990 = vmatprep.subr.bf16.mxu0 0
        %991 = vmatpush1.bf16.xpose.msra.mxu0 0
        %992 = vmatprep.subr.bf16.mxu0 0
        %993 = vmatpush1.bf16.xpose.msra.mxu0 0
        %994 = vmatprep.subr.bf16.mxu0 0
        %995 = vmatpush1.bf16.xpose.msra.mxu0 0
        %996 = vmatprep.subr.bf16.mxu0 0
        %997 = vmatpush1.bf16.xpose.msra.mxu0 0
        %998 = vmatprep.subr.bf16.mxu0 0
        %999 = vmatpush1.bf16.xpose.msra.mxu0 0
        %1000 = vmatprep.subr.bf16.mxu0 0
        %1001 = vmatpush1.bf16.xpose.msra.mxu0 0
        %1002 = vmatprep.subr.bf16.mxu0 0
        %1003 = vmatpush1.bf16.xpose.msra.mxu0 0
        %1004 = vmatprep.subr.bf16.mxu0 0
        %1005 = vmatpush1.bf16.xpose.msra.mxu0 0
        %1006 = vmatprep.mubr.bf16.mxu0 0
        %1007 = vmatmul.mubr.bf16.gmra.mrb[0].mxu0 %v969
        %v1008 = vpop.f32.mrb[0].mxu0
        %v1009 = vadd.f32 0.0, %v1008
        %v1010 = vpop.f32.mrb[0].mxu0
        %v1011 = vpop.f32.mrb[0].mxu0
        %v1012 = vadd.f32 0.0, %v1011
        %v1013 = vpop.f32.mrb[0].mxu0
        %1014 = vdwg.mxu0
        %vm1015 = vcmask 130048
        %v1016 = vsel %vm1015, %v1009, -inf
        %1017 = vmax.xlane.f32.xlu0 %v1016
        %v1018 = vpop.xlane.xlu0 %1017
        %v1019 = vsel %vm1015, %v1012, -inf
        %1020 = vmax.xlane.f32.xlu0 %v1019
        %v1021 = vpop.xlane.xlu0 %1020
        %v1022 = vsub.f32 %v1009, %v1018
        %v1023 = vsub.f32 %v1012, %v1021
        %v1024 = vmul.f32 %v1022, 1.442695
        %v1025 = vpow.pop %v1024
        %v1026 = vmul.f32 %v1023, 1.442695
        %v1027 = vpow.pop %v1026
        %v1028 = vsel %vm1015, %v1025, 0.0
        %1029 = vadd.xlane.f32.xlu0 %v1028
        %v1030 = vpop.xlane.xlu0 %1029
        %v1031 = vsel %vm1015, %v1027, 0.0
        %1032 = vadd.xlane.f32.xlu0 %v1031
        %v1033 = vpop.xlane.xlu0 %1032
        %v1034 = vrcp.pop %v1030
        %v1035 = vrcp.pop %v1033
        %v1036 = vmul.f32 %v1025, %v1034
        %v1037 = vmul.f32 %v1027, %v1035
        %v1038 = vpack.c.bf16 %v1037, %v1036
        %v1040 = vsel %vm1015, %v1038, 0
        %1042 = vmatprep.subr.bf16.mxu0 0
        %1043 = vmatpush1.bf16.msra.mxu0 %v966
        %1044 = vmatprep.subr.bf16.mxu0 0
        %1045 = vmatpush1.bf16.msra.mxu0 0
        %1046 = vmatprep.subr.bf16.mxu0 0
        %1047 = vmatpush1.bf16.msra.mxu0 0
        %1048 = vmatprep.subr.bf16.mxu0 0
        %1049 = vmatpush1.bf16.msra.mxu0 0
        %1050 = vmatprep.subr.bf16.mxu0 0
        %1051 = vmatpush1.bf16.msra.mxu0 0
        %1052 = vmatprep.subr.bf16.mxu0 0
        %1053 = vmatpush1.bf16.msra.mxu0 0
        %1054 = vmatprep.subr.bf16.mxu0 0
        %1055 = vmatpush1.bf16.msra.mxu0 0
        %1056 = vmatprep.subr.bf16.mxu0 0
        %1057 = vmatpush1.bf16.msra.mxu0 0
        %1058 = vmatprep.subr.bf16.mxu0 0
        %1059 = vmatpush1.bf16.msra.mxu0 0
        %1060 = vmatprep.subr.bf16.mxu0 0
        %1061 = vmatpush1.bf16.msra.mxu0 0
        %1062 = vmatprep.subr.bf16.mxu0 0
        %1063 = vmatpush1.bf16.msra.mxu0 0
        %1064 = vmatprep.subr.bf16.mxu0 0
        %1065 = vmatpush1.bf16.msra.mxu0 0
        %1066 = vmatprep.subr.bf16.mxu0 0
        %1067 = vmatpush1.bf16.msra.mxu0 0
        %1068 = vmatprep.subr.bf16.mxu0 0
        %1069 = vmatpush1.bf16.msra.mxu0 0
        %1070 = vmatprep.subr.bf16.mxu0 0
        %1071 = vmatpush1.bf16.msra.mxu0 0
        %1072 = vmatprep.subr.bf16.mxu0 0
        %1073 = vmatpush1.bf16.msra.mxu0 0
        %1074 = vmatprep.mubr.bf16.mxu0 0
        %1075 = vmatmul.mubr.bf16.gmra.mrb[0].mxu0 %v1040
        %v1076 = vpop.f32.mrb[0].mxu0
        %v1077 = vadd.f32 0.0, %v1076
        %v1078 = vpop.f32.mrb[0].mxu0
        %v1079 = vpop.f32.mrb[0].mxu0
        %v1080 = vadd.f32 0.0, %v1079
        %v1081 = vpop.f32.mrb[0].mxu0
        %1082 = vdwg.mxu0
        %v1083 = vpack.c.bf16 %v1080, %v1077
        %1085 = vrot.lane.b32.xlu0 %v964, 120
        %v1086 = vpop.permute.xlu0 %1085
        %1088 = vrot.lane.b32.xlu0 %v965, 120
        %v1089 = vpop.permute.xlu0 %1088
        %v1091 = vsel %vm967, %v1086, 0
        %v1094 = vsel %vm967, %v1089, 0
        %1096 = vmatprep.subr.bf16.mxu0 0
        %1097 = vmatpush1.bf16.xpose.msra.mxu0 %v1094
        %1098 = vmatprep.subr.bf16.mxu0 0
        %1099 = vmatpush1.bf16.xpose.msra.mxu0 0
        %1100 = vmatprep.subr.bf16.mxu0 0
        %1101 = vmatpush1.bf16.xpose.msra.mxu0 0
        %1102 = vmatprep.subr.bf16.mxu0 0
        %1103 = vmatpush1.bf16.xpose.msra.mxu0 0
        %1104 = vmatprep.subr.bf16.mxu0 0
        %1105 = vmatpush1.bf16.xpose.msra.mxu0 0
        %1106 = vmatprep.subr.bf16.mxu0 0
        %1107 = vmatpush1.bf16.xpose.msra.mxu0 0
        %1108 = vmatprep.subr.bf16.mxu0 0
        %1109 = vmatpush1.bf16.xpose.msra.mxu0 0
        %1110 = vmatprep.subr.bf16.mxu0 0
        %1111 = vmatpush1.bf16.xpose.msra.mxu0 0
        %1112 = vmatprep.subr.bf16.mxu0 0
        %1113 = vmatpush1.bf16.xpose.msra.mxu0 0
        %1114 = vmatprep.subr.bf16.mxu0 0
        %1115 = vmatpush1.bf16.xpose.msra.mxu0 0
        %1116 = vmatprep.subr.bf16.mxu0 0
        %1117 = vmatpush1.bf16.xpose.msra.mxu0 0
        %1118 = vmatprep.subr.bf16.mxu0 0
        %1119 = vmatpush1.bf16.xpose.msra.mxu0 0
        %1120 = vmatprep.subr.bf16.mxu0 0
        %1121 = vmatpush1.bf16.xpose.msra.mxu0 0
        %1122 = vmatprep.subr.bf16.mxu0 0
        %1123 = vmatpush1.bf16.xpose.msra.mxu0 0
        %1124 = vmatprep.subr.bf16.mxu0 0
        %1125 = vmatpush1.bf16.xpose.msra.mxu0 0
        %1126 = vmatprep.subr.bf16.mxu0 0
        %1127 = vmatpush1.bf16.xpose.msra.mxu0 0
        %1128 = vmatprep.mubr.bf16.mxu0 0
        %1129 = vmatmul.mubr.bf16.gmra.mrb[0].mxu0 %v1091
        %v1130 = vpop.f32.mrb[0].mxu0
        %v1131 = vadd.f32 0.0, %v1130
        %v1132 = vpop.f32.mrb[0].mxu0
        %v1133 = vpop.f32.mrb[0].mxu0
        %v1134 = vadd.f32 0.0, %v1133
        %v1135 = vpop.f32.mrb[0].mxu0
        %1136 = vdwg.mxu0
        %v1137 = vsel %vm1015, %v1131, -inf
        %1138 = vmax.xlane.f32.xlu0 %v1137
        %v1139 = vpop.xlane.xlu0 %1138
        %v1140 = vsel %vm1015, %v1134, -inf
        %1141 = vmax.xlane.f32.xlu0 %v1140
        %v1142 = vpop.xlane.xlu0 %1141
        %v1143 = vsub.f32 %v1131, %v1139
        %v1144 = vsub.f32 %v1134, %v1142
        %v1145 = vmul.f32 %v1143, 1.442695
        %v1146 = vpow.pop %v1145
        %v1147 = vmul.f32 %v1144, 1.442695
        %v1148 = vpow.pop %v1147
        %v1149 = vsel %vm1015, %v1146, 0.0
        %1150 = vadd.xlane.f32.xlu0 %v1149
        %v1151 = vpop.xlane.xlu0 %1150
        %v1152 = vsel %vm1015, %v1148, 0.0
        %1153 = vadd.xlane.f32.xlu0 %v1152
        %v1154 = vpop.xlane.xlu0 %1153
        %v1155 = vrcp.pop %v1151
        %v1156 = vrcp.pop %v1154
        %v1157 = vmul.f32 %v1146, %v1155
        %v1158 = vmul.f32 %v1148, %v1156
        %v1159 = vpack.c.bf16 %v1158, %v1157
        %1161 = vrot.lane.b32.xlu0 %v966, 120
        %v1162 = vpop.permute.xlu0 %1161
        %v1165 = vsel %vm1015, %v1159, 0
        %1167 = vmatprep.subr.bf16.mxu0 0
        %1168 = vmatpush1.bf16.msra.mxu0 %v1162
        %1169 = vmatprep.subr.bf16.mxu0 0
        %1170 = vmatpush1.bf16.msra.mxu0 0
        %1171 = vmatprep.subr.bf16.mxu0 0
        %1172 = vmatpush1.bf16.msra.mxu0 0
        %1173 = vmatprep.subr.bf16.mxu0 0
        %1174 = vmatpush1.bf16.msra.mxu0 0
        %1175 = vmatprep.subr.bf16.mxu0 0
        %1176 = vmatpush1.bf16.msra.mxu0 0
        %1177 = vmatprep.subr.bf16.mxu0 0
        %1178 = vmatpush1.bf16.msra.mxu0 0
        %1179 = vmatprep.subr.bf16.mxu0 0
        %1180 = vmatpush1.bf16.msra.mxu0 0
        %1181 = vmatprep.subr.bf16.mxu0 0
        %1182 = vmatpush1.bf16.msra.mxu0 0
        %1183 = vmatprep.subr.bf16.mxu0 0
        %1184 = vmatpush1.bf16.msra.mxu0 0
        %1185 = vmatprep.subr.bf16.mxu0 0
        %1186 = vmatpush1.bf16.msra.mxu0 0
        %1187 = vmatprep.subr.bf16.mxu0 0
        %1188 = vmatpush1.bf16.msra.mxu0 0
        %1189 = vmatprep.subr.bf16.mxu0 0
        %1190 = vmatpush1.bf16.msra.mxu0 0
        %1191 = vmatprep.subr.bf16.mxu0 0
        %1192 = vmatpush1.bf16.msra.mxu0 0
        %1193 = vmatprep.subr.bf16.mxu0 0
        %1194 = vmatpush1.bf16.msra.mxu0 0
        %1195 = vmatprep.subr.bf16.mxu0 0
        %1196 = vmatpush1.bf16.msra.mxu0 0
        %1197 = vmatprep.subr.bf16.mxu0 0
        %1198 = vmatpush1.bf16.msra.mxu0 0
        %1199 = vmatprep.mubr.bf16.mxu0 0
        %1200 = vmatmul.mubr.bf16.gmra.mrb[0].mxu0 %v1165
        %v1201 = vpop.f32.mrb[0].mxu0
        %v1202 = vadd.f32 0.0, %v1201
        %v1203 = vpop.f32.mrb[0].mxu0
        %v1204 = vpop.f32.mrb[0].mxu0
        %v1205 = vadd.f32 0.0, %v1204
        %v1206 = vpop.f32.mrb[0].mxu0
        %1207 = vdwg.mxu0
        %v1208 = vpack.c.bf16 %v1205, %v1202
        %1209 = vrot.lane.b32.xlu0 %v964, 112
        %v1210 = vpop.permute.xlu0 %1209
        %1211 = vrot.lane.b32.xlu0 %v965, 112
        %v1212 = vpop.permute.xlu0 %1211
        %v1214 = vsel %vm967, %v1210, 0
        %v1217 = vsel %vm967, %v1212, 0
        %1219 = vmatprep.subr.bf16.mxu0 0
        %1220 = vmatpush1.bf16.xpose.msra.mxu0 %v1217
        %1221 = vmatprep.subr.bf16.mxu0 0
        %1222 = vmatpush1.bf16.xpose.msra.mxu0 0
        %1223 = vmatprep.subr.bf16.mxu0 0
        %1224 = vmatpush1.bf16.xpose.msra.mxu0 0
        %1225 = vmatprep.subr.bf16.mxu0 0
        %1226 = vmatpush1.bf16.xpose.msra.mxu0 0
        %1227 = vmatprep.subr.bf16.mxu0 0
        %1228 = vmatpush1.bf16.xpose.msra.mxu0 0
        %1229 = vmatprep.subr.bf16.mxu0 0
        %1230 = vmatpush1.bf16.xpose.msra.mxu0 0
        %1231 = vmatprep.subr.bf16.mxu0 0
        %1232 = vmatpush1.bf16.xpose.msra.mxu0 0
        %1233 = vmatprep.subr.bf16.mxu0 0
        %1234 = vmatpush1.bf16.xpose.msra.mxu0 0
        %1235 = vmatprep.subr.bf16.mxu0 0
        %1236 = vmatpush1.bf16.xpose.msra.mxu0 0
        %1237 = vmatprep.subr.bf16.mxu0 0
        %1238 = vmatpush1.bf16.xpose.msra.mxu0 0
        %1239 = vmatprep.subr.bf16.mxu0 0
        %1240 = vmatpush1.bf16.xpose.msra.mxu0 0
        %1241 = vmatprep.subr.bf16.mxu0 0
        %1242 = vmatpush1.bf16.xpose.msra.mxu0 0
        %1243 = vmatprep.subr.bf16.mxu0 0
        %1244 = vmatpush1.bf16.xpose.msra.mxu0 0
        %1245 = vmatprep.subr.bf16.mxu0 0
        %1246 = vmatpush1.bf16.xpose.msra.mxu0 0
        %1247 = vmatprep.subr.bf16.mxu0 0
        %1248 = vmatpush1.bf16.xpose.msra.mxu0 0
        %1249 = vmatprep.subr.bf16.mxu0 0
        %1250 = vmatpush1.bf16.xpose.msra.mxu0 0
        %1251 = vmatprep.mubr.bf16.mxu0 0
        %1252 = vmatmul.mubr.bf16.gmra.mrb[0].mxu0 %v1214
        %v1253 = vpop.f32.mrb[0].mxu0
        %v1254 = vadd.f32 0.0, %v1253
        %v1255 = vpop.f32.mrb[0].mxu0
        %v1256 = vpop.f32.mrb[0].mxu0
        %v1257 = vadd.f32 0.0, %v1256
        %v1258 = vpop.f32.mrb[0].mxu0
        %1259 = vdwg.mxu0
        %v1260 = vsel %vm1015, %v1254, -inf
        %1261 = vmax.xlane.f32.xlu0 %v1260
        %v1262 = vpop.xlane.xlu0 %1261
        %v1263 = vsel %vm1015, %v1257, -inf
        %1264 = vmax.xlane.f32.xlu0 %v1263
        %v1265 = vpop.xlane.xlu0 %1264
        %v1266 = vsub.f32 %v1254, %v1262
        %v1267 = vsub.f32 %v1257, %v1265
        %v1268 = vmul.f32 %v1266, 1.442695
        %v1269 = vpow.pop %v1268
        %v1270 = vmul.f32 %v1267, 1.442695
        %v1271 = vpow.pop %v1270
        %v1272 = vsel %vm1015, %v1269, 0.0
        %1273 = vadd.xlane.f32.xlu0 %v1272
        %v1274 = vpop.xlane.xlu0 %1273
        %v1275 = vsel %vm1015, %v1271, 0.0
        %1276 = vadd.xlane.f32.xlu0 %v1275
        %v1277 = vpop.xlane.xlu0 %1276
        %v1278 = vrcp.pop %v1274
        %v1279 = vrcp.pop %v1277
        %v1280 = vmul.f32 %v1269, %v1278
        %v1281 = vmul.f32 %v1271, %v1279
        %v1282 = vpack.c.bf16 %v1281, %v1280
        %1283 = vrot.lane.b32.xlu0 %v966, 112
        %v1284 = vpop.permute.xlu0 %1283
        %v1287 = vsel %vm1015, %v1282, 0
        %1289 = vmatprep.subr.bf16.mxu0 0
        %1290 = vmatpush1.bf16.msra.mxu0 %v1284
        %1291 = vmatprep.subr.bf16.mxu0 0
        %1292 = vmatpush1.bf16.msra.mxu0 0
        %1293 = vmatprep.subr.bf16.mxu0 0
        %1294 = vmatpush1.bf16.msra.mxu0 0
        %1295 = vmatprep.subr.bf16.mxu0 0
        %1296 = vmatpush1.bf16.msra.mxu0 0
        %1297 = vmatprep.subr.bf16.mxu0 0
        %1298 = vmatpush1.bf16.msra.mxu0 0
        %1299 = vmatprep.subr.bf16.mxu0 0
        %1300 = vmatpush1.bf16.msra.mxu0 0
        %1301 = vmatprep.subr.bf16.mxu0 0
        %1302 = vmatpush1.bf16.msra.mxu0 0
        %1303 = vmatprep.subr.bf16.mxu0 0
        %1304 = vmatpush1.bf16.msra.mxu0 0
        %1305 = vmatprep.subr.bf16.mxu0 0
        %1306 = vmatpush1.bf16.msra.mxu0 0
        %1307 = vmatprep.subr.bf16.mxu0 0
        %1308 = vmatpush1.bf16.msra.mxu0 0
        %1309 = vmatprep.subr.bf16.mxu0 0
        %1310 = vmatpush1.bf16.msra.mxu0 0
        %1311 = vmatprep.subr.bf16.mxu0 0
        %1312 = vmatpush1.bf16.msra.mxu0 0
        %1313 = vmatprep.subr.bf16.mxu0 0
        %1314 = vmatpush1.bf16.msra.mxu0 0
        %1315 = vmatprep.subr.bf16.mxu0 0
        %1316 = vmatpush1.bf16.msra.mxu0 0
        %1317 = vmatprep.subr.bf16.mxu0 0
        %1318 = vmatpush1.bf16.msra.mxu0 0
        %1319 = vmatprep.subr.bf16.mxu0 0
        %1320 = vmatpush1.bf16.msra.mxu0 0
        %1321 = vmatprep.mubr.bf16.mxu0 0
        %1322 = vmatmul.mubr.bf16.gmra.mrb[0].mxu0 %v1287
        %v1323 = vpop.f32.mrb[0].mxu0
        %v1324 = vadd.f32 0.0, %v1323
        %v1325 = vpop.f32.mrb[0].mxu0
        %v1326 = vpop.f32.mrb[0].mxu0
        %v1327 = vadd.f32 0.0, %v1326
        %v1328 = vpop.f32.mrb[0].mxu0
        %1329 = vdwg.mxu0
        %v1330 = vpack.c.bf16 %v1327, %v1324
        %1331 = vrot.lane.b32.xlu0 %v964, 104
        %v1332 = vpop.permute.xlu0 %1331
        %1333 = vrot.lane.b32.xlu0 %v965, 104
        %v1334 = vpop.permute.xlu0 %1333
        %v1336 = vsel %vm967, %v1332, 0
        %v1339 = vsel %vm967, %v1334, 0
        %1341 = vmatprep.subr.bf16.mxu0 0
        %1342 = vmatpush1.bf16.xpose.msra.mxu0 %v1339
        %1343 = vmatprep.subr.bf16.mxu0 0
        %1344 = vmatpush1.bf16.xpose.msra.mxu0 0
        %1345 = vmatprep.subr.bf16.mxu0 0
        %1346 = vmatpush1.bf16.xpose.msra.mxu0 0
        %1347 = vmatprep.subr.bf16.mxu0 0
        %1348 = vmatpush1.bf16.xpose.msra.mxu0 0
        %1349 = vmatprep.subr.bf16.mxu0 0
        %1350 = vmatpush1.bf16.xpose.msra.mxu0 0
        %1351 = vmatprep.subr.bf16.mxu0 0
        %1352 = vmatpush1.bf16.xpose.msra.mxu0 0
        %1353 = vmatprep.subr.bf16.mxu0 0
        %1354 = vmatpush1.bf16.xpose.msra.mxu0 0
        %1355 = vmatprep.subr.bf16.mxu0 0
        %1356 = vmatpush1.bf16.xpose.msra.mxu0 0
        %1357 = vmatprep.subr.bf16.mxu0 0
        %1358 = vmatpush1.bf16.xpose.msra.mxu0 0
        %1359 = vmatprep.subr.bf16.mxu0 0
        %1360 = vmatpush1.bf16.xpose.msra.mxu0 0
        %1361 = vmatprep.subr.bf16.mxu0 0
        %1362 = vmatpush1.bf16.xpose.msra.mxu0 0
        %1363 = vmatprep.subr.bf16.mxu0 0
        %1364 = vmatpush1.bf16.xpose.msra.mxu0 0
        %1365 = vmatprep.subr.bf16.mxu0 0
        %1366 = vmatpush1.bf16.xpose.msra.mxu0 0
        %1367 = vmatprep.subr.bf16.mxu0 0
        %1368 = vmatpush1.bf16.xpose.msra.mxu0 0
        %1369 = vmatprep.subr.bf16.mxu0 0
        %1370 = vmatpush1.bf16.xpose.msra.mxu0 0
        %1371 = vmatprep.subr.bf16.mxu0 0
        %1372 = vmatpush1.bf16.xpose.msra.mxu0 0
        %1373 = vmatprep.mubr.bf16.mxu0 0
        %1374 = vmatmul.mubr.bf16.gmra.mrb[0].mxu0 %v1336
        %v1375 = vpop.f32.mrb[0].mxu0
        %v1376 = vadd.f32 0.0, %v1375
        %v1377 = vpop.f32.mrb[0].mxu0
        %v1378 = vpop.f32.mrb[0].mxu0
        %v1379 = vadd.f32 0.0, %v1378
        %v1380 = vpop.f32.mrb[0].mxu0
        %1381 = vdwg.mxu0
        %v1382 = vsel %vm1015, %v1376, -inf
        %1383 = vmax.xlane.f32.xlu0 %v1382
        %v1384 = vpop.xlane.xlu0 %1383
        %v1385 = vsel %vm1015, %v1379, -inf
        %1386 = vmax.xlane.f32.xlu0 %v1385
        %v1387 = vpop.xlane.xlu0 %1386
        %v1388 = vsub.f32 %v1376, %v1384
        %v1389 = vsub.f32 %v1379, %v1387
        %v1390 = vmul.f32 %v1388, 1.442695
        %v1391 = vpow.pop %v1390
        %v1392 = vmul.f32 %v1389, 1.442695
        %v1393 = vpow.pop %v1392
        %v1394 = vsel %vm1015, %v1391, 0.0
        %1395 = vadd.xlane.f32.xlu0 %v1394
        %v1396 = vpop.xlane.xlu0 %1395
        %v1397 = vsel %vm1015, %v1393, 0.0
        %1398 = vadd.xlane.f32.xlu0 %v1397
        %v1399 = vpop.xlane.xlu0 %1398
        %v1400 = vrcp.pop %v1396
        %v1401 = vrcp.pop %v1399
        %v1402 = vmul.f32 %v1391, %v1400
        %v1403 = vmul.f32 %v1393, %v1401
        %v1404 = vpack.c.bf16 %v1403, %v1402
        %1405 = vrot.lane.b32.xlu0 %v966, 104
        %v1406 = vpop.permute.xlu0 %1405
        %v1409 = vsel %vm1015, %v1404, 0
        %1411 = vmatprep.subr.bf16.mxu0 0
        %1412 = vmatpush1.bf16.msra.mxu0 %v1406
        %1413 = vmatprep.subr.bf16.mxu0 0
        %1414 = vmatpush1.bf16.msra.mxu0 0
        %1415 = vmatprep.subr.bf16.mxu0 0
        %1416 = vmatpush1.bf16.msra.mxu0 0
        %1417 = vmatprep.subr.bf16.mxu0 0
        %1418 = vmatpush1.bf16.msra.mxu0 0
        %1419 = vmatprep.subr.bf16.mxu0 0
        %1420 = vmatpush1.bf16.msra.mxu0 0
        %1421 = vmatprep.subr.bf16.mxu0 0
        %1422 = vmatpush1.bf16.msra.mxu0 0
        %1423 = vmatprep.subr.bf16.mxu0 0
        %1424 = vmatpush1.bf16.msra.mxu0 0
        %1425 = vmatprep.subr.bf16.mxu0 0
        %1426 = vmatpush1.bf16.msra.mxu0 0
        %1427 = vmatprep.subr.bf16.mxu0 0
        %1428 = vmatpush1.bf16.msra.mxu0 0
        %1429 = vmatprep.subr.bf16.mxu0 0
        %1430 = vmatpush1.bf16.msra.mxu0 0
        %1431 = vmatprep.subr.bf16.mxu0 0
        %1432 = vmatpush1.bf16.msra.mxu0 0
        %1433 = vmatprep.subr.bf16.mxu0 0
        %1434 = vmatpush1.bf16.msra.mxu0 0
        %1435 = vmatprep.subr.bf16.mxu0 0
        %1436 = vmatpush1.bf16.msra.mxu0 0
        %1437 = vmatprep.subr.bf16.mxu0 0
        %1438 = vmatpush1.bf16.msra.mxu0 0
        %1439 = vmatprep.subr.bf16.mxu0 0
        %1440 = vmatpush1.bf16.msra.mxu0 0
        %1441 = vmatprep.subr.bf16.mxu0 0
        %1442 = vmatpush1.bf16.msra.mxu0 0
        %1443 = vmatprep.mubr.bf16.mxu0 0
        %1444 = vmatmul.mubr.bf16.gmra.mrb[0].mxu0 %v1409
        %v1445 = vpop.f32.mrb[0].mxu0
        %v1446 = vadd.f32 0.0, %v1445
        %v1447 = vpop.f32.mrb[0].mxu0
        %v1448 = vpop.f32.mrb[0].mxu0
        %v1449 = vadd.f32 0.0, %v1448
        %v1450 = vpop.f32.mrb[0].mxu0
        %1451 = vdwg.mxu0
        %v1452 = vpack.c.bf16 %v1449, %v1446
        %1454 = vrot.lane.b32.xlu0 %v1208, 8
        %v1455 = vpop.permute.xlu0 %1454
        %1457 = vrot.lane.b32.xlu0 %v1330, 16
        %v1458 = vpop.permute.xlu0 %1457
        %1460 = vrot.lane.b32.xlu0 %v1452, 24
        %v1461 = vpop.permute.xlu0 %1460
        %v1464 = vsel %vm967, %v1083, %v1455
        %v1466 = vsel %vm1015, %v1464, %v1458
        %vm1467 = vcmask 195584
        %v1469 = vsel %vm1467, %v1466, %v1461
        %v1470 = vld [vmem:[%s8] sm:$0xf]
        %v1471 = vld [vmem:[%s8 + $0x4] sm:$0xf]
        %v1472 = vld [vmem:[%s8 + $0x8] sm:$0xf]
        %v1473 = vld [vmem:[%s8 + $0xc] sm:$0xf]
        %v1474 = vlaneseq
        %v1475 = vshrl.u32 %v1474, 7
        %v1476 = vsub.s32 0, %v1475
        %v1477 = vrot.slane %v495, %v1476
        %v1482 = vunpack.c.l.b16 %v1470
        %v1483 = vunpack.c.l.b16 %v1471
        %v1484 = vunpack.c.l.b16 %v1472
        %v1485 = vunpack.c.l.b16 %v1473
        %v1486 = vpack.c.b16 %v1483, %v1482
        %v1487 = vpack.c.b16 %v1485, %v1484
        %v1490 = vsel %vm536, %v1469, 0
        %1492 = vmatprep.subr.bf16.mxu0 0
        %1493 = vmatpush1.bf16.msra.mxu0 %v1486
        %1494 = vmatprep.subr.bf16.mxu0 0
        %1495 = vmatpush1.bf16.msra.mxu0 %v1487
        %1496 = vmatprep.subr.bf16.mxu0 0
        %1497 = vmatpush1.bf16.msra.mxu0 0
        %1498 = vmatprep.subr.bf16.mxu0 0
        %1499 = vmatpush1.bf16.msra.mxu0 0
        %1500 = vmatprep.subr.bf16.mxu0 0
        %1501 = vmatpush1.bf16.msra.mxu0 0
        %1502 = vmatprep.subr.bf16.mxu0 0
        %1503 = vmatpush1.bf16.msra.mxu0 0
        %1504 = vmatprep.subr.bf16.mxu0 0
        %1505 = vmatpush1.bf16.msra.mxu0 0
        %1506 = vmatprep.subr.bf16.mxu0 0
        %1507 = vmatpush1.bf16.msra.mxu0 0
        %1508 = vmatprep.subr.bf16.mxu0 0
        %1509 = vmatpush1.bf16.msra.mxu0 0
        %1510 = vmatprep.subr.bf16.mxu0 0
        %1511 = vmatpush1.bf16.msra.mxu0 0
        %1512 = vmatprep.subr.bf16.mxu0 0
        %1513 = vmatpush1.bf16.msra.mxu0 0
        %1514 = vmatprep.subr.bf16.mxu0 0
        %1515 = vmatpush1.bf16.msra.mxu0 0
        %1516 = vmatprep.subr.bf16.mxu0 0
        %1517 = vmatpush1.bf16.msra.mxu0 0
        %1518 = vmatprep.subr.bf16.mxu0 0
        %1519 = vmatpush1.bf16.msra.mxu0 0
        %1520 = vmatprep.subr.bf16.mxu0 0
        %1521 = vmatpush1.bf16.msra.mxu0 0
        %1522 = vmatprep.subr.bf16.mxu0 0
        %1523 = vmatpush1.bf16.msra.mxu0 0
        %1524 = vmatprep.mubr.bf16.mxu0 0
        %1525 = vmatmul.mubr.bf16.gmra.mrb[0].mxu0 %v1490
        %v1526 = vpop.f32.mrb[0].mxu0
        %v1527 = vadd.f32 %v1477, %v1526
        %v1528 = vpop.f32.mrb[0].mxu0
        %v1529 = vpop.f32.mrb[0].mxu0
        %v1530 = vadd.f32 %v1477, %v1529
        %v1531 = vpop.f32.mrb[0].mxu0
        %1532 = vdwg.mxu0
        %v1533 = vadd.f32 %v737, %v1527
        %v1534 = vadd.f32 %v738, %v1530
        %v1535 = vsel %vm536, %v1533, 0.0
        %1536 = vadd.xlane.f32.xlu0 %v1535
        %v1537 = vpop.xlane.xlu0 %1536
        %v1538 = vsel %vm536, %v1534, 0.0
        %1539 = vadd.xlane.f32.xlu0 %v1538
        %v1540 = vpop.xlane.xlu0 %1539
        %v1541 = vmul.f32 %v1537, %v543
        %v1542 = vmul.f32 %v1540, %v543
        %v1543 = vsub.f32 %v1533, %v1541
        %v1544 = vsub.f32 %v1534, %v1542
        %v1545 = vmul.f32 %v1543, %v1543
        %v1546 = vmul.f32 %v1544, %v1544
        %v1547 = vsel %vm536, %v1545, 0.0
        %1548 = vadd.xlane.f32.xlu0 %v1547
        %v1549 = vpop.xlane.xlu0 %1548
        %v1550 = vsel %vm536, %v1546, 0.0
        %1551 = vadd.xlane.f32.xlu0 %v1550
        %v1552 = vpop.xlane.xlu0 %1551
        %v1553 = vmul.f32 %v1549, %v543
        %v1554 = vmul.f32 %v1552, %v543
        %v1555 = vadd.f32 %v1553, 1e-05
        %v1556 = vadd.f32 %v1554, 1e-05
        %v1557 = vrsqrt.pop %v1555
        %v1558 = vrsqrt.pop %v1556
        %v1559 = vmul.f32 %v1543, %v1557
        %v1560 = vmul.f32 %v1544, %v1558
        %v1561 = vlaneseq
        %v1562 = vshrl.u32 %v1561, 7
        %v1563 = vsub.s32 1, %v1562
        %v1564 = vrot.slane %v495, %v1563
        %v1565 = vmul.f32 %v1559, %v1564
        %v1566 = vmul.f32 %v1560, %v1564
        %v1567 = vlaneseq
        %v1568 = vshrl.u32 %v1567, 7
        %v1569 = vsub.s32 2, %v1568
        %v1570 = vrot.slane %v495, %v1569
        %v1571 = vadd.f32 %v1565, %v1570
        %v1572 = vadd.f32 %v1566, %v1570
        %v1573 = vpack.c.bf16 %v1572, %v1571
        %v1574 = vld [vmem:[%s9] sm:$0xf]
        %v1575 = vld [vmem:[%s9 + $0x4] sm:$0xf]
        %v1576 = vld [vmem:[%s9 + $0x8] sm:$0xf]
        %v1577 = vld [vmem:[%s9 + $0xc] sm:$0xf]
        %v1578 = vlaneseq
        %v1579 = vshrl.u32 %v1578, 7
        %v1580 = vsub.s32 3, %v1579
        %v1581 = vrot.slane %v495, %v1580
        %v1586 = vunpack.c.l.b16 %v1574
        %v1587 = vunpack.c.l.b16 %v1575
        %v1588 = vunpack.c.l.b16 %v1576
        %v1589 = vunpack.c.l.b16 %v1577
        %v1590 = vpack.c.b16 %v1587, %v1586
        %v1591 = vpack.c.b16 %v1589, %v1588
        %v1595 = vsel %vm536, %v1573, 0
        %1597 = vmatprep.subr.bf16.mxu0 0
        %1598 = vmatpush1.bf16.msra.mxu0 %v1590
        %1599 = vmatprep.subr.bf16.mxu0 0
        %1600 = vmatpush1.bf16.msra.mxu0 %v1591
        %1601 = vmatprep.subr.bf16.mxu0 0
        %1602 = vmatpush1.bf16.msra.mxu0 0
        %1603 = vmatprep.subr.bf16.mxu0 0
        %1604 = vmatpush1.bf16.msra.mxu0 0
        %1605 = vmatprep.subr.bf16.mxu0 0
        %1606 = vmatpush1.bf16.msra.mxu0 0
        %1607 = vmatprep.subr.bf16.mxu0 0
        %1608 = vmatpush1.bf16.msra.mxu0 0
        %1609 = vmatprep.subr.bf16.mxu0 0
        %1610 = vmatpush1.bf16.msra.mxu0 0
        %1611 = vmatprep.subr.bf16.mxu0 0
        %1612 = vmatpush1.bf16.msra.mxu0 0
        %1613 = vmatprep.subr.bf16.mxu0 0
        %1614 = vmatpush1.bf16.msra.mxu0 0
        %1615 = vmatprep.subr.bf16.mxu0 0
        %1616 = vmatpush1.bf16.msra.mxu0 0
        %1617 = vmatprep.subr.bf16.mxu0 0
        %1618 = vmatpush1.bf16.msra.mxu0 0
        %1619 = vmatprep.subr.bf16.mxu0 0
        %1620 = vmatpush1.bf16.msra.mxu0 0
        %1621 = vmatprep.subr.bf16.mxu0 0
        %1622 = vmatpush1.bf16.msra.mxu0 0
        %1623 = vmatprep.subr.bf16.mxu0 0
        %1624 = vmatpush1.bf16.msra.mxu0 0
        %1625 = vmatprep.subr.bf16.mxu0 0
        %1626 = vmatpush1.bf16.msra.mxu0 0
        %1627 = vmatprep.subr.bf16.mxu0 0
        %1628 = vmatpush1.bf16.msra.mxu0 0
        %1629 = vmatprep.mubr.bf16.mxu0 0
        %1630 = vmatmul.mubr.bf16.gmra.mrb[0].mxu0 %v1595
        %v1631 = vpop.f32.mrb[0].mxu0
        %v1632 = vadd.f32 %v1581, %v1631
        %v1633 = vpop.f32.mrb[0].mxu0
        %v1634 = vpop.f32.mrb[0].mxu0
        %v1635 = vadd.f32 %v1581, %v1634
        %v1636 = vpop.f32.mrb[0].mxu0
        %1637 = vdwg.mxu0
        %v1638 = vld [vmem:[%s10] sm:$0xf]
        %v1639 = vld [vmem:[%s10 + $0x4] sm:$0xf]
        %v1640 = vld [vmem:[%s10 + $0x8] sm:$0xf]
        %v1641 = vld [vmem:[%s10 + $0xc] sm:$0xf]
        %v1642 = vlaneseq
        %v1643 = vshrl.u32 %v1642, 7
        %v1644 = vsub.s32 4, %v1643
        %v1645 = vrot.slane %v495, %v1644
        %v1650 = vunpack.c.l.b16 %v1638
        %v1651 = vunpack.c.l.b16 %v1639
        %v1652 = vunpack.c.l.b16 %v1640
        %v1653 = vunpack.c.l.b16 %v1641
        %v1654 = vpack.c.b16 %v1651, %v1650
        %v1655 = vpack.c.b16 %v1653, %v1652
        %1658 = vmatprep.subr.bf16.mxu0 0
        %1659 = vmatpush1.bf16.msra.mxu0 %v1654
        %1660 = vmatprep.subr.bf16.mxu0 0
        %1661 = vmatpush1.bf16.msra.mxu0 %v1655
        %1662 = vmatprep.subr.bf16.mxu0 0
        %1663 = vmatpush1.bf16.msra.mxu0 0
        %1664 = vmatprep.subr.bf16.mxu0 0
        %1665 = vmatpush1.bf16.msra.mxu0 0
        %1666 = vmatprep.subr.bf16.mxu0 0
        %1667 = vmatpush1.bf16.msra.mxu0 0
        %1668 = vmatprep.subr.bf16.mxu0 0
        %1669 = vmatpush1.bf16.msra.mxu0 0
        %1670 = vmatprep.subr.bf16.mxu0 0
        %1671 = vmatpush1.bf16.msra.mxu0 0
        %1672 = vmatprep.subr.bf16.mxu0 0
        %1673 = vmatpush1.bf16.msra.mxu0 0
        %1674 = vmatprep.subr.bf16.mxu0 0
        %1675 = vmatpush1.bf16.msra.mxu0 0
        %1676 = vmatprep.subr.bf16.mxu0 0
        %1677 = vmatpush1.bf16.msra.mxu0 0
        %1678 = vmatprep.subr.bf16.mxu0 0
        %1679 = vmatpush1.bf16.msra.mxu0 0
        %1680 = vmatprep.subr.bf16.mxu0 0
        %1681 = vmatpush1.bf16.msra.mxu0 0
        %1682 = vmatprep.subr.bf16.mxu0 0
        %1683 = vmatpush1.bf16.msra.mxu0 0
        %1684 = vmatprep.subr.bf16.mxu0 0
        %1685 = vmatpush1.bf16.msra.mxu0 0
        %1686 = vmatprep.subr.bf16.mxu0 0
        %1687 = vmatpush1.bf16.msra.mxu0 0
        %1688 = vmatprep.subr.bf16.mxu0 0
        %1689 = vmatpush1.bf16.msra.mxu0 0
        %1690 = vmatprep.mubr.bf16.mxu0 0
        %1691 = vmatmul.mubr.bf16.gmra.mrb[0].mxu0 %v1595
        %v1692 = vpop.f32.mrb[0].mxu0
        %v1693 = vadd.f32 %v1645, %v1692
        %v1694 = vpop.f32.mrb[0].mxu0
        %v1695 = vpop.f32.mrb[0].mxu0
        %v1696 = vadd.f32 %v1645, %v1695
        %v1697 = vpop.f32.mrb[0].mxu0
        %1698 = vdwg.mxu0
        %v1699 = vxor.u32 %v1693, 2147483648
        %v1700 = vxor.u32 %v1696, 2147483648
        %v1701 = vmul.f32 %v1699, 1.442695
        %v1702 = vpow.pop %v1701
        %v1703 = vmul.f32 %v1700, 1.442695
        %v1704 = vpow.pop %v1703
        %v1705 = vadd.f32 %v1702, 1.0
        %v1706 = vadd.f32 %v1704, 1.0
        %v1707 = vrcp.pop %v1705
        %v1708 = vmul.f32 1.0, %v1707
        %v1709 = vrcp.pop %v1706
        %v1710 = vmul.f32 1.0, %v1709
        %v1711 = vmul.f32 %v1632, %v1708
        %v1712 = vmul.f32 %v1635, %v1710
        %v1713 = vlaneseq
        %v1714 = vshrl.u32 %v1713, 7
        %v1715 = vadd.s32 %v1714, 8
        %v1716 = vld [vmem:[%s11] sm:$0x7f]
        %v1717 = vrot.slane %v1711, 5
        %v1718 = vrot.slane %v1712, 5
        %vm1719 = vcmp.lt.s32.totalorder %v1714, 3
        %v1720 = vsel %vm1719, %v1717, %v1718
        %v1721 = vsel %vm1719, %v1718, %v1717
        %vm1722 = vcmp.ge.s32.totalorder %v1714, 3
        %vm1723 = vcmp.ge.s32.totalorder %v1715, 3
        %v1724 = vsel %vm1722, 1, 0
        %v1725 = vsel %vm1723, 1, 0
        %vm1726 = vcmp.eq.s32.totalorder %v1724, 1
        %vm1727 = vcmp.eq.s32.totalorder %v1725, 1
        %v1728 = vsel %vm1726, %v1721, 0.0
        %v1729 = vsel %vm1727, %v1720, 0.0
        %v1730 = vlaneseq
        %v1731 = vshrl.u32 %v1730, 7
        %v1732 = vsub.s32 0, %v1731
        %v1733 = vrot.slane %v1716, %v1732
        %v1734 = vmul.f32 %v1728, %v1733
        %v1735 = vmul.f32 %v1729, %v1733
        %v1736 = vadd.f32 %v1734, 0.0
        %v1737 = vadd.f32 %v1735, 0.0
        %v1738 = vrot.slane %v1711, 6
        %v1739 = vrot.slane %v1712, 6
        %vm1740 = vcmp.lt.s32.totalorder %v1714, 2
        %v1741 = vsel %vm1740, %v1738, %v1739
        %v1742 = vsel %vm1740, %v1739, %v1738
        %vm1743 = vcmp.ge.s32.totalorder %v1714, 2
        %vm1744 = vcmp.ge.s32.totalorder %v1715, 2
        %v1745 = vsel %vm1743, 1, 0
        %v1746 = vsel %vm1744, 1, 0
        %vm1747 = vcmp.eq.s32.totalorder %v1745, 1
        %vm1748 = vcmp.eq.s32.totalorder %v1746, 1
        %v1749 = vsel %vm1747, %v1742, 0.0
        %v1750 = vsel %vm1748, %v1741, 0.0
        %v1751 = vlaneseq
        %v1752 = vshrl.u32 %v1751, 7
        %v1753 = vsub.s32 1, %v1752
        %v1754 = vrot.slane %v1716, %v1753
        %v1755 = vmul.f32 %v1749, %v1754
        %v1756 = vmul.f32 %v1750, %v1754
        %v1757 = vadd.f32 %v1736, %v1755
        %v1758 = vadd.f32 %v1737, %v1756
        %v1759 = vrot.slane %v1711, 7
        %v1760 = vrot.slane %v1712, 7
        %vm1761 = vcmp.lt.s32.totalorder %v1714, 1
        %v1762 = vsel %vm1761, %v1759, %v1760
        %v1763 = vsel %vm1761, %v1760, %v1759
        %vm1764 = vcmp.ge.s32.totalorder %v1714, 1
        %vm1765 = vcmp.ge.s32.totalorder %v1715, 1
        %v1766 = vsel %vm1764, 1, 0
        %v1767 = vsel %vm1765, 1, 0
        %vm1768 = vcmp.eq.s32.totalorder %v1766, 1
        %vm1769 = vcmp.eq.s32.totalorder %v1767, 1
        %v1770 = vsel %vm1768, %v1763, 0.0
        %v1771 = vsel %vm1769, %v1762, 0.0
        %v1772 = vlaneseq
        %v1773 = vshrl.u32 %v1772, 7
        %v1774 = vsub.s32 2, %v1773
        %v1775 = vrot.slane %v1716, %v1774
        %v1776 = vmul.f32 %v1770, %v1775
        %v1777 = vmul.f32 %v1771, %v1775
        %v1778 = vadd.f32 %v1757, %v1776
        %v1779 = vadd.f32 %v1758, %v1777
        %v1780 = vlaneseq
        %v1781 = vshrl.u32 %v1780, 7
        %v1782 = vsub.s32 3, %v1781
        %v1783 = vrot.slane %v1716, %v1782
        %v1784 = vmul.f32 %v1711, %v1783
        %v1785 = vmul.f32 %v1712, %v1783
        %v1786 = vadd.f32 %v1778, %v1784
        %v1787 = vadd.f32 %v1779, %v1785
        %v1788 = vrot.slane %v1711, 1
        %v1789 = vrot.slane %v1712, 1
        %vm1790 = vcmp.lt.s32.totalorder %v1714, 7
        %v1791 = vsel %vm1790, %v1788, %v1789
        %v1792 = vsel %vm1790, %v1789, %v1788
        %vm1793 = vcmp.lt.s32.totalorder %v1714, 15
        %vm1794 = vcmp.lt.s32.totalorder %v1715, 15
        %v1795 = vsel %vm1793, 1, 0
        %v1796 = vsel %vm1794, 1, 0
        %vm1797 = vcmp.eq.s32.totalorder %v1795, 1
        %vm1798 = vcmp.eq.s32.totalorder %v1796, 1
        %v1799 = vsel %vm1797, %v1791, 0.0
        %v1800 = vsel %vm1798, %v1792, 0.0
        %v1801 = vlaneseq
        %v1802 = vshrl.u32 %v1801, 7
        %v1803 = vsub.s32 4, %v1802
        %v1804 = vrot.slane %v1716, %v1803
        %v1805 = vmul.f32 %v1799, %v1804
        %v1806 = vmul.f32 %v1800, %v1804
        %v1807 = vadd.f32 %v1786, %v1805
        %v1808 = vadd.f32 %v1787, %v1806
        %v1809 = vrot.slane %v1711, 2
        %v1810 = vrot.slane %v1712, 2
        %vm1811 = vcmp.lt.s32.totalorder %v1714, 6
        %v1812 = vsel %vm1811, %v1809, %v1810
        %v1813 = vsel %vm1811, %v1810, %v1809
        %vm1814 = vcmp.lt.s32.totalorder %v1714, 14
        %vm1815 = vcmp.lt.s32.totalorder %v1715, 14
        %v1816 = vsel %vm1814, 1, 0
        %v1817 = vsel %vm1815, 1, 0
        %vm1818 = vcmp.eq.s32.totalorder %v1816, 1
        %vm1819 = vcmp.eq.s32.totalorder %v1817, 1
        %v1820 = vsel %vm1818, %v1812, 0.0
        %v1821 = vsel %vm1819, %v1813, 0.0
        %v1822 = vlaneseq
        %v1823 = vshrl.u32 %v1822, 7
        %v1824 = vsub.s32 5, %v1823
        %v1825 = vrot.slane %v1716, %v1824
        %v1826 = vmul.f32 %v1820, %v1825
        %v1827 = vmul.f32 %v1821, %v1825
        %v1828 = vadd.f32 %v1807, %v1826
        %v1829 = vadd.f32 %v1808, %v1827
        %v1830 = vrot.slane %v1711, 3
        %v1831 = vrot.slane %v1712, 3
        %vm1832 = vcmp.lt.s32.totalorder %v1714, 5
        %v1833 = vsel %vm1832, %v1830, %v1831
        %v1834 = vsel %vm1832, %v1831, %v1830
        %vm1835 = vcmp.lt.s32.totalorder %v1714, 13
        %vm1836 = vcmp.lt.s32.totalorder %v1715, 13
        %v1837 = vsel %vm1835, 1, 0
        %v1838 = vsel %vm1836, 1, 0
        %vm1839 = vcmp.eq.s32.totalorder %v1837, 1
        %vm1840 = vcmp.eq.s32.totalorder %v1838, 1
        %v1841 = vsel %vm1839, %v1833, 0.0
        %v1842 = vsel %vm1840, %v1834, 0.0
        %v1843 = vlaneseq
        %v1844 = vshrl.u32 %v1843, 7
        %v1845 = vsub.s32 6, %v1844
        %v1846 = vrot.slane %v1716, %v1845
        %v1847 = vmul.f32 %v1841, %v1846
        %v1848 = vmul.f32 %v1842, %v1846
        %v1849 = vadd.f32 %v1828, %v1847
        %v1850 = vadd.f32 %v1829, %v1848
        %v1851 = vlaneseq
        %v1852 = vshrl.u32 %v1851, 7
        %v1853 = vsub.s32 5, %v1852
        %v1854 = vrot.slane %v495, %v1853
        %v1855 = vadd.f32 %v1849, %v1854
        %v1856 = vadd.f32 %v1850, %v1854
        %v1857 = vlaneseq
        %v1858 = vshrl.u32 %v1857, 7
        %v1859 = vsub.s32 6, %v1858
        %v1860 = vrot.slane %v495, %v1859
        %v1861 = vmul.f32 %v1855, %v1860
        %v1862 = vmul.f32 %v1856, %v1860
        %v1863 = vlaneseq
        %v1864 = vshrl.u32 %v1863, 7
        %v1865 = vsub.s32 7, %v1864
        %v1866 = vrot.slane %v495, %v1865
        %v1867 = vadd.f32 %v1861, %v1866
        %v1868 = vadd.f32 %v1862, %v1866
        %v1869 = vxor.u32 %v1867, 2147483648
        %v1870 = vxor.u32 %v1868, 2147483648
        %v1871 = vmul.f32 %v1869, 1.442695
        %v1872 = vpow.pop %v1871
        %v1873 = vmul.f32 %v1870, 1.442695
        %v1874 = vpow.pop %v1873
        %v1875 = vadd.f32 %v1872, 1.0
        %v1876 = vadd.f32 %v1874, 1.0
        %v1877 = vrcp.pop %v1875
        %v1878 = vmul.f32 1.0, %v1877
        %v1879 = vrcp.pop %v1876
        %v1880 = vmul.f32 1.0, %v1879
        %v1881 = vmul.f32 %v1867, %v1878
        %v1882 = vmul.f32 %v1868, %v1880
        %v1883 = vpack.c.bf16 %v1882, %v1881
        %v1884 = vld [vmem:[%s12] sm:$0xf]
        %v1885 = vld [vmem:[%s12 + $0x4] sm:$0xf]
        %v1886 = vld [vmem:[%s12 + $0x8] sm:$0xf]
        %v1887 = vld [vmem:[%s12 + $0xc] sm:$0xf]
        %v1888 = vlaneseq
        %v1889 = vshrl.u32 %v1888, 7
        %v1890 = vsub.s32 0, %v1889
        %v1891 = vrot.slane %v496, %v1890
        %v1896 = vunpack.c.l.b16 %v1884
        %v1897 = vunpack.c.l.b16 %v1885
        %v1898 = vunpack.c.l.b16 %v1886
        %v1899 = vunpack.c.l.b16 %v1887
        %v1900 = vpack.c.b16 %v1897, %v1896
        %v1901 = vpack.c.b16 %v1899, %v1898
        %v1905 = vsel %vm536, %v1883, 0
        %1907 = vmatprep.subr.bf16.mxu0 0
        %1908 = vmatpush1.bf16.msra.mxu0 %v1900
        %1909 = vmatprep.subr.bf16.mxu0 0
        %1910 = vmatpush1.bf16.msra.mxu0 %v1901
        %1911 = vmatprep.subr.bf16.mxu0 0
        %1912 = vmatpush1.bf16.msra.mxu0 0
        %1913 = vmatprep.subr.bf16.mxu0 0
        %1914 = vmatpush1.bf16.msra.mxu0 0
        %1915 = vmatprep.subr.bf16.mxu0 0
        %1916 = vmatpush1.bf16.msra.mxu0 0
        %1917 = vmatprep.subr.bf16.mxu0 0
        %1918 = vmatpush1.bf16.msra.mxu0 0
        %1919 = vmatprep.subr.bf16.mxu0 0
        %1920 = vmatpush1.bf16.msra.mxu0 0
        %1921 = vmatprep.subr.bf16.mxu0 0
        %1922 = vmatpush1.bf16.msra.mxu0 0
        %1923 = vmatprep.subr.bf16.mxu0 0
        %1924 = vmatpush1.bf16.msra.mxu0 0
        %1925 = vmatprep.subr.bf16.mxu0 0
        %1926 = vmatpush1.bf16.msra.mxu0 0
        %1927 = vmatprep.subr.bf16.mxu0 0
        %1928 = vmatpush1.bf16.msra.mxu0 0
        %1929 = vmatprep.subr.bf16.mxu0 0
        %1930 = vmatpush1.bf16.msra.mxu0 0
        %1931 = vmatprep.subr.bf16.mxu0 0
        %1932 = vmatpush1.bf16.msra.mxu0 0
        %1933 = vmatprep.subr.bf16.mxu0 0
        %1934 = vmatpush1.bf16.msra.mxu0 0
        %1935 = vmatprep.subr.bf16.mxu0 0
        %1936 = vmatpush1.bf16.msra.mxu0 0
        %1937 = vmatprep.subr.bf16.mxu0 0
        %1938 = vmatpush1.bf16.msra.mxu0 0
        %1939 = vmatprep.mubr.bf16.mxu0 0
        %1940 = vmatmul.mubr.bf16.gmra.mrb[0].mxu0 %v1905
        %v1941 = vpop.f32.mrb[0].mxu0
        %v1942 = vadd.f32 %v1891, %v1941
        %v1943 = vpop.f32.mrb[0].mxu0
        %v1944 = vpop.f32.mrb[0].mxu0
        %v1945 = vadd.f32 %v1891, %v1944
        %v1946 = vpop.f32.mrb[0].mxu0
        %1947 = vdwg.mxu0
        %v1948 = vadd.f32 %v1533, %v1942
        %v1949 = vadd.f32 %v1534, %v1945
        %v1950 = vmul.f32 %v1948, 0.5
        %v1951 = vmul.f32 %v1949, 0.5
        %v1952 = vsel %vm536, %v1948, 0.0
        %1953 = vadd.xlane.f32.xlu0 %v1952
        %v1954 = vpop.xlane.xlu0 %1953
        %v1955 = vsel %vm536, %v1949, 0.0
        %1956 = vadd.xlane.f32.xlu0 %v1955
        %v1957 = vpop.xlane.xlu0 %1956
        %v1958 = vmul.f32 %v1954, %v543
        %v1959 = vmul.f32 %v1957, %v543
        %v1960 = vsub.f32 %v1948, %v1958
        %v1961 = vsub.f32 %v1949, %v1959
        %v1962 = vmul.f32 %v1960, %v1960
        %v1963 = vmul.f32 %v1961, %v1961
        %v1964 = vsel %vm536, %v1962, 0.0
        %1965 = vadd.xlane.f32.xlu0 %v1964
        %v1966 = vpop.xlane.xlu0 %1965
        %v1967 = vsel %vm536, %v1963, 0.0
        %1968 = vadd.xlane.f32.xlu0 %v1967
        %v1969 = vpop.xlane.xlu0 %1968
        %v1970 = vmul.f32 %v1966, %v543
        %v1971 = vmul.f32 %v1969, %v543
        %v1972 = vadd.f32 %v1970, 1e-05
        %v1973 = vadd.f32 %v1971, 1e-05
        %v1974 = vrsqrt.pop %v1972
        %v1975 = vrsqrt.pop %v1973
        %v1976 = vmul.f32 %v1960, %v1974
        %v1977 = vmul.f32 %v1961, %v1975
        %v1978 = vlaneseq
        %v1979 = vshrl.u32 %v1978, 7
        %v1980 = vsub.s32 1, %v1979
        %v1981 = vrot.slane %v496, %v1980
        %v1982 = vmul.f32 %v1976, %v1981
        %v1983 = vmul.f32 %v1977, %v1981
        %v1984 = vlaneseq
        %v1985 = vshrl.u32 %v1984, 7
        %v1986 = vsub.s32 2, %v1985
        %v1987 = vrot.slane %v496, %v1986
        %v1988 = vadd.f32 %v1982, %v1987
        %v1989 = vadd.f32 %v1983, %v1987
        %v1990 = vpack.c.bf16 %v1989, %v1988
        %v1991 = vld [vmem:[%s13] sm:$0xf]
        %v1992 = vld [vmem:[%s13 + $0x4] sm:$0xf]
        %v1993 = vld [vmem:[%s13 + $0x8] sm:$0xf]
        %v1994 = vld [vmem:[%s13 + $0xc] sm:$0xf]
        %v1995 = vlaneseq
        %v1996 = vshrl.u32 %v1995, 7
        %v1997 = vsub.s32 1, %v1996
        %v1998 = vrot.slane %v497, %v1997
        %v2003 = vunpack.c.l.b16 %v1991
        %v2004 = vunpack.c.l.b16 %v1992
        %v2005 = vunpack.c.l.b16 %v1993
        %v2006 = vunpack.c.l.b16 %v1994
        %v2007 = vpack.c.b16 %v2004, %v2003
        %v2008 = vpack.c.b16 %v2006, %v2005
        %v2012 = vsel %vm536, %v1990, 0
        %2014 = vmatprep.subr.bf16.mxu0 0
        %2015 = vmatpush1.bf16.msra.mxu0 %v2007
        %2016 = vmatprep.subr.bf16.mxu0 0
        %2017 = vmatpush1.bf16.msra.mxu0 %v2008
        %2018 = vmatprep.subr.bf16.mxu0 0
        %2019 = vmatpush1.bf16.msra.mxu0 0
        %2020 = vmatprep.subr.bf16.mxu0 0
        %2021 = vmatpush1.bf16.msra.mxu0 0
        %2022 = vmatprep.subr.bf16.mxu0 0
        %2023 = vmatpush1.bf16.msra.mxu0 0
        %2024 = vmatprep.subr.bf16.mxu0 0
        %2025 = vmatpush1.bf16.msra.mxu0 0
        %2026 = vmatprep.subr.bf16.mxu0 0
        %2027 = vmatpush1.bf16.msra.mxu0 0
        %2028 = vmatprep.subr.bf16.mxu0 0
        %2029 = vmatpush1.bf16.msra.mxu0 0
        %2030 = vmatprep.subr.bf16.mxu0 0
        %2031 = vmatpush1.bf16.msra.mxu0 0
        %2032 = vmatprep.subr.bf16.mxu0 0
        %2033 = vmatpush1.bf16.msra.mxu0 0
        %2034 = vmatprep.subr.bf16.mxu0 0
        %2035 = vmatpush1.bf16.msra.mxu0 0
        %2036 = vmatprep.subr.bf16.mxu0 0
        %2037 = vmatpush1.bf16.msra.mxu0 0
        %2038 = vmatprep.subr.bf16.mxu0 0
        %2039 = vmatpush1.bf16.msra.mxu0 0
        %2040 = vmatprep.subr.bf16.mxu0 0
        %2041 = vmatpush1.bf16.msra.mxu0 0
        %2042 = vmatprep.subr.bf16.mxu0 0
        %2043 = vmatpush1.bf16.msra.mxu0 0
        %2044 = vmatprep.subr.bf16.mxu0 0
        %2045 = vmatpush1.bf16.msra.mxu0 0
        %2046 = vmatprep.mubr.bf16.mxu0 0
        %2047 = vmatmul.mubr.bf16.gmra.mrb[0].mxu0 %v2012
        %v2048 = vpop.f32.mrb[0].mxu0
        %v2049 = vadd.f32 %v1998, %v2048
        %v2050 = vpop.f32.mrb[0].mxu0
        %v2051 = vpop.f32.mrb[0].mxu0
        %v2052 = vadd.f32 %v1998, %v2051
        %v2053 = vpop.f32.mrb[0].mxu0
        %2054 = vdwg.mxu0
        %v2055 = vxor.u32 %v2049, 2147483648
        %v2056 = vxor.u32 %v2052, 2147483648
        %v2057 = vmul.f32 %v2055, 1.442695
        %v2058 = vpow.pop %v2057
        %v2059 = vmul.f32 %v2056, 1.442695
        %v2060 = vpow.pop %v2059
        %v2061 = vadd.f32 %v2058, 1.0
        %v2062 = vadd.f32 %v2060, 1.0
        %v2063 = vrcp.pop %v2061
        %v2064 = vmul.f32 1.0, %v2063
        %v2065 = vrcp.pop %v2062
        %v2066 = vmul.f32 1.0, %v2065
        %v2067 = vmul.f32 %v2049, %v2064
        %v2068 = vmul.f32 %v2052, %v2066
        %v2069 = vpack.c.bf16 %v2068, %v2067
        %v2070 = vld [vmem:[%s14] sm:$0xf]
        %v2071 = vld [vmem:[%s14 + $0x4] sm:$0xf]
        %v2072 = vld [vmem:[%s14 + $0x8] sm:$0xf]
        %v2073 = vld [vmem:[%s14 + $0xc] sm:$0xf]
        %v2074 = vld [vmem:[%s14 + $0x10] sm:$0xf]
        %v2075 = vld [vmem:[%s14 + $0x14] sm:$0xf]
        %v2076 = vld [vmem:[%s14 + $0x18] sm:$0xf]
        %v2077 = vld [vmem:[%s14 + $0x1c] sm:$0xf]
        %v2078 = vlaneseq
        %v2079 = vshrl.u32 %v2078, 7
        %v2080 = vsub.s32 3, %v2079
        %v2081 = vrot.slane %v496, %v2080
        %v2090 = vunpack.c.l.b16 %v2070
        %v2091 = vunpack.c.l.b16 %v2071
        %v2092 = vunpack.c.l.b16 %v2072
        %v2093 = vunpack.c.l.b16 %v2073
        %v2094 = vunpack.c.l.b16 %v2074
        %v2095 = vunpack.c.l.b16 %v2075
        %v2096 = vunpack.c.l.b16 %v2076
        %v2097 = vunpack.c.l.b16 %v2077
        %v2098 = vpack.c.b16 %v2091, %v2090
        %v2099 = vpack.c.b16 %v2093, %v2092
        %v2100 = vpack.c.b16 %v2095, %v2094
        %v2101 = vpack.c.b16 %v2097, %v2096
        %v2107 = vsel %vm692, %v2069, 0
        %2109 = vmatprep.subr.bf16.mxu0 0
        %2110 = vmatpush1.bf16.msra.mxu0 %v2098
        %2111 = vmatprep.subr.bf16.mxu0 0
        %2112 = vmatpush1.bf16.msra.mxu0 %v2099
        %2113 = vmatprep.subr.bf16.mxu0 0
        %2114 = vmatpush1.bf16.msra.mxu0 %v2100
        %2115 = vmatprep.subr.bf16.mxu0 0
        %2116 = vmatpush1.bf16.msra.mxu0 %v2101
        %2117 = vmatprep.subr.bf16.mxu0 0
        %2118 = vmatpush1.bf16.msra.mxu0 0
        %2119 = vmatprep.subr.bf16.mxu0 0
        %2120 = vmatpush1.bf16.msra.mxu0 0
        %2121 = vmatprep.subr.bf16.mxu0 0
        %2122 = vmatpush1.bf16.msra.mxu0 0
        %2123 = vmatprep.subr.bf16.mxu0 0
        %2124 = vmatpush1.bf16.msra.mxu0 0
        %2125 = vmatprep.subr.bf16.mxu0 0
        %2126 = vmatpush1.bf16.msra.mxu0 0
        %2127 = vmatprep.subr.bf16.mxu0 0
        %2128 = vmatpush1.bf16.msra.mxu0 0
        %2129 = vmatprep.subr.bf16.mxu0 0
        %2130 = vmatpush1.bf16.msra.mxu0 0
        %2131 = vmatprep.subr.bf16.mxu0 0
        %2132 = vmatpush1.bf16.msra.mxu0 0
        %2133 = vmatprep.subr.bf16.mxu0 0
        %2134 = vmatpush1.bf16.msra.mxu0 0
        %2135 = vmatprep.subr.bf16.mxu0 0
        %2136 = vmatpush1.bf16.msra.mxu0 0
        %2137 = vmatprep.subr.bf16.mxu0 0
        %2138 = vmatpush1.bf16.msra.mxu0 0
        %2139 = vmatprep.subr.bf16.mxu0 0
        %2140 = vmatpush1.bf16.msra.mxu0 0
        %2141 = vmatprep.mubr.bf16.mxu0 0
        %2142 = vmatmul.mubr.bf16.gmra.mrb[0].mxu0 %v2107
        %v2143 = vpop.f32.mrb[0].mxu0
        %v2144 = vadd.f32 %v2081, %v2143
        %v2145 = vpop.f32.mrb[0].mxu0
        %v2146 = vpop.f32.mrb[0].mxu0
        %v2147 = vadd.f32 %v2081, %v2146
        %v2148 = vpop.f32.mrb[0].mxu0
        %2149 = vdwg.mxu0
        %v2150 = vadd.f32 %v1950, %v2144
        %v2151 = vadd.f32 %v1951, %v2147
        %v2152 = vsel %vm536, %v2150, 0.0
        %2153 = vadd.xlane.f32.xlu0 %v2152
        %v2154 = vpop.xlane.xlu0 %2153
        %v2155 = vsel %vm536, %v2151, 0.0
        %2156 = vadd.xlane.f32.xlu0 %v2155
        %v2157 = vpop.xlane.xlu0 %2156
        %v2158 = vmul.f32 %v2154, %v543
        %v2159 = vmul.f32 %v2157, %v543
        %v2160 = vsub.f32 %v2150, %v2158
        %v2161 = vsub.f32 %v2151, %v2159
        %v2162 = vmul.f32 %v2160, %v2160
        %v2163 = vmul.f32 %v2161, %v2161
        %v2164 = vsel %vm536, %v2162, 0.0
        %2165 = vadd.xlane.f32.xlu0 %v2164
        %v2166 = vpop.xlane.xlu0 %2165
        %v2167 = vsel %vm536, %v2163, 0.0
        %2168 = vadd.xlane.f32.xlu0 %v2167
        %v2169 = vpop.xlane.xlu0 %2168
        %v2170 = vmul.f32 %v2166, %v543
        %v2171 = vmul.f32 %v2169, %v543
        %v2172 = vadd.f32 %v2170, 1e-05
        %v2173 = vadd.f32 %v2171, 1e-05
        %v2174 = vrsqrt.pop %v2172
        %v2175 = vrsqrt.pop %v2173
        %v2176 = vmul.f32 %v2160, %v2174
        %v2177 = vmul.f32 %v2161, %v2175
        %v2178 = vlaneseq
        %v2179 = vshrl.u32 %v2178, 7
        %v2180 = vsub.s32 4, %v2179
        %v2181 = vrot.slane %v496, %v2180
        %v2182 = vmul.f32 %v2176, %v2181
        %v2183 = vmul.f32 %v2177, %v2181
        %v2184 = vlaneseq
        %v2185 = vshrl.u32 %v2184, 7
        %v2186 = vsub.s32 5, %v2185
        %v2187 = vrot.slane %v496, %v2186
        %v2188 = vadd.f32 %v2182, %v2187
        %v2189 = vadd.f32 %v2183, %v2187
        %2190 = vst.msk [vmem:[%s487] sm:$0xff] %vm536, %v2188
        %2191 = vst.msk [vmem:[%s487 + $0x8] sm:$0xff] %vm536, %v2189
        %s2192 = sand.u32 %s357, 1
        %s2193 = scalar_lea.sflag [#allocation3], %s2192
        %s2194 = sand.u32 %s357, 1
        %s2195 = smul.addr %s2194, 16
        %s2196 = scalar_lea.vmem [#allocation2], %s2195
        // Predicated region
        $region81: #{tpu_custom_call.1} parent=79 // pred_check
          %p2197 = pneg %p367
        $region82: #{tpu_custom_call.1} parent=79 // pred_check_branch
          %2199 = sbr.rel (%p2197) target = $region84
        $region83: #{tpu_custom_call.1} parent=79 // pred_region
          %s2201 = ssub.s32 256, 256
          %2202 = vsyncadd %s2193, %s2201
          %s2203 = smul.addr %s29, 2
          %s2204 = smul.addr %s2203, 128
          %s2205 = scalar_lea.hbm %s15, %s2204
          %s2206 = sshll.u32 %s2196, 4
          %s2207 = int_to_ptr.vmem [resolvable:$true] %s2206
          %2212 = dma.vmem_to_hbm [thread:$0]  %s2207, 256, %s2205, %s2193, 128, 128, 8
        $region84: #{tpu_custom_call.1} parent=79 // pred_fallthru
          _
      $region80: #{tpu_custom_call.1} parent=5 // pred_fallthru
        _
      %p2213 = scmp.le.s32.totalorder 2, %s24
      // Predicated region
      $region85: #{tpu_custom_call.1} parent=5 // pred_check
        %p2214 = pneg %p2213
      $region86: #{tpu_custom_call.1} parent=5 // pred_check_branch
        %2216 = sbr.rel (%p2214) target = $region88
      $region87: #{tpu_custom_call.1} parent=5 // pred_region
        %s2217 = ssub.s32 %s24, 2
        // Predicated region
        $region89: #{tpu_custom_call.1} parent=87 // pred_check
          %p2218 = pneg %p373
        $region90: #{tpu_custom_call.1} parent=87 // pred_check_branch
          %2220 = sbr.rel (%p2218) target = $region92
        $region91: #{tpu_custom_call.1} parent=87 // pred_region
          %s2221 = sand.u32 %s358, 1
          %s2222 = scalar_lea.sflag [#allocation3], %s2221
          %s2223 = sand.u32 %s358, 1
          %s2224 = smul.addr %s2223, 16
          %s2225 = scalar_lea.vmem [#allocation2], %s2224
          %2226 = dma.done %s2222, 256
        $region92: #{tpu_custom_call.1} parent=87 // pred_fallthru
          _
      $region88: #{tpu_custom_call.1} parent=5 // pred_fallthru
        _
    $region6: #{tpu_custom_call.1} parent=1 // loop_footer
      %s28 = sadd.s32 1, %s24
    $region7: #{tpu_custom_call.1} parent=1 // loop_footer_branch
      %23 = sbr.rel target = $region3
    $region8: #{tpu_custom_call.1} parent=1 // loop_exit
      _
    %2227 = vsyncpa [#allocation3], 1
    %s2228 = scalar_lea.sflag [#allocation3], 1
    %2229 = vsyncpa %s2228, 1

</llo_original>
